<compile_context>
chip_gen: v7x
topology: tpu7x:2x2x1
jax: 0.10.0
libtpu: 0.0.40
codegen_flags: <defaults>
</compile_context>

<pallas_src>
import math

import jax
import jax.numpy as jnp
from jax.experimental import pallas as pl
from jax.experimental.pallas import tpu as pltpu

# Model hyper-parameters (from the PyTorch module defaults)
V = 27        # vocab_size
E = 128       # embed_size
H = 8         # nhead
HD = E // H   # head_dim = 16
FF = 256      # dim_feedforward
L = 2         # num_layers
S = 19        # max_seq_length
SP = 24       # padded sequence length (multiple of 8, bf16 sublane-pack friendly)
VP = 128      # padded vocab width (lane-dense output)
NEG = -1e9    # additive causal-mask value (acts like -inf in softmax)


def _layer_norm_fused(h, w, b):
    # One-pass statistics: var = E[x^2] - mu^2 (saves a VPU pass + XLU reduce).
    mu = jnp.mean(h, axis=-1, keepdims=True)
    var = jnp.mean(h * h, axis=-1, keepdims=True) - mu * mu
    return (h - mu) * jax.lax.rsqrt(var + 1e-5) * w + b


def _layer_norm_ref(h, w, b):
    mu = jnp.mean(h, axis=-1, keepdims=True)
    var = jnp.mean((h - mu) ** 2, axis=-1, keepdims=True)
    return (h - mu) * jax.lax.rsqrt(var + 1e-5) * w + b


def lm_kernel(x_ref, mask_ref, rsel_ref,
              wqkv_ref, bqkv_ref, wo_ref, bo_ref,
              ln1w_ref, ln1b_ref, ln2w_ref, ln2b_ref,
              w1_ref, b1_ref, w2_ref, b2_ref,
              wout_ref, bout_ref, o_ref, h_ref):
    l = pl.program_id(0)
    scale = 1.0 / math.sqrt(HD)

    @pl.when(l == 0)
    def _():
        h_ref[...] = x_ref[...]          # residual stream lives in VMEM scratch

    h = h_ref[...]                       # [N, E]   f32
    rsel = rsel_ref[...]                 # [H*N, E] bf16, rsel[h*N+m, e] = (e//HD == h)
    mask = mask_ref[...]                 # [N, H*N] f32 pre-tiled block-diag causal mask

    # --- self-attention: all heads as one block-diagonal 2-D problem ---
    qkv = jnp.dot(h.astype(jnp.bfloat16), wqkv_ref[...],
                  preferred_element_type=jnp.float32) + bqkv_ref[...]
    q16 = qkv[:, :E].astype(jnp.bfloat16)
    k16 = qkv[:, E:2 * E].astype(jnp.bfloat16)
    v16 = qkv[:, 2 * E:].astype(jnp.bfloat16)

    # Row h*N+m of k_blk / v_blk holds K[m] / V[m] restricted to head h's 16 cols.
    k_blk = jnp.concatenate([k16] * H, axis=0) * rsel     # [H*N, E] bf16
    v_blk = jnp.concatenate([v16] * H, axis=0) * rsel     # [H*N, E] bf16

    # scores[n, h*N+m] = Q_h[n] . K_h[m]   (single [N,E] x [H*N,E]^T MXU matmul)
    s = jax.lax.dot_general(q16, k_blk, (((1,), (1,)), ((), ())),
                            preferred_element_type=jnp.float32)
    s = s * scale + mask
    m_row = jnp.max(s, axis=-1, keepdims=True)   # shared per-query shift (exact)
    p16 = jnp.exp(s - m_row).astype(jnp.bfloat16)

    attn_raw = jnp.dot(p16, v_blk, preferred_element_type=jnp.float32)   # [N, E]
    denom = jnp.dot(p16, rsel, preferred_element_type=jnp.float32)       # [N, E]
    attn = attn_raw * pl.reciprocal(jnp.maximum(denom, 1e-20), approx=True)

    attn = jnp.dot(attn.astype(jnp.bfloat16), wo_ref[...],
                   preferred_element_type=jnp.float32) + bo_ref[...]
    h = _layer_norm_fused(h + attn, ln1w_ref[...], ln1b_ref[...])

    # --- feed-forward (ReLU) ---
    ff = jnp.dot(h.astype(jnp.bfloat16), w1_ref[...],
                 preferred_element_type=jnp.float32) + b1_ref[...]
    ff = jnp.maximum(ff, 0.0)
    ff = jnp.dot(ff.astype(jnp.bfloat16), w2_ref[...],
                 preferred_element_type=jnp.float32) + b2_ref[...]
    h = _layer_norm_fused(h + ff, ln2w_ref[...], ln2b_ref[...])

    h_ref[...] = h

    # --- fc_out (lane-dense 128 cols, padded bias = NEG) + log_softmax ---
    @pl.when(l == L - 1)
    def _():
        logits = jnp.dot(h.astype(jnp.bfloat16), wout_ref[...],
                         preferred_element_type=jnp.float32) + bout_ref[...]
        mx = jnp.max(logits, axis=-1, keepdims=True)
        lse = mx + jnp.log(jnp.sum(jnp.exp(logits - mx), axis=-1, keepdims=True))
        o_ref[...] = logits - lse


def make_params(key):
    keys = jax.random.split(key, 12)

    def nrm(k, shape, s=0.02):
        return jax.random.normal(k, shape, jnp.float32) * s

    return dict(
        emb=nrm(keys[0], (V, E), 0.1),          # nn.Embedding(vocab, embed)
        pos=nrm(keys[1], (1, S, E), 0.02),      # positional_encoding parameter
        wqkv=nrm(keys[2], (L, E, 3 * E)),       # in_proj_weight^T per layer
        bqkv=nrm(keys[3], (L, 1, 3 * E)),
        wo=nrm(keys[4], (L, E, E)),             # out_proj.weight^T
        bo=nrm(keys[5], (L, 1, E)),
        ln1w=jnp.ones((L, 1, E), jnp.float32),
        ln1b=jnp.zeros((L, 1, E), jnp.float32),
        ln2w=jnp.ones((L, 1, E), jnp.float32),
        ln2b=jnp.zeros((L, 1, E), jnp.float32),
        w1=nrm(keys[6], (L, E, FF)),            # linear1.weight^T
        b1=nrm(keys[7], (L, 1, FF)),
        w2=nrm(keys[8], (L, FF, E)),            # linear2.weight^T
        b2=nrm(keys[9], (L, 1, E)),
        wout=nrm(keys[10], (E, V)),             # fc_out.weight^T
        bout=nrm(keys[11], (1, V)),
    )


def prepare(params, batch, seq_len):
    """One-time, input-independent constants (hoisted out of the per-call path)."""
    N = batch * SP
    HN = H * N

    # Block-diagonal causal mask over flattened (batch, padded position) rows,
    # pre-tiled across heads to [N, H*N] so the kernel does no lane concat.
    n_idx = jnp.arange(N)
    b_idx = n_idx // SP
    p_idx = n_idx % SP
    allow = ((b_idx[:, None] == b_idx[None, :])
             & (p_idx[None, :] <= p_idx[:, None])
             & (p_idx[None, :] < seq_len))
    mask = jnp.where(allow, 0.0, NEG).astype(jnp.float32)            # [N, N]
    mask = jnp.tile(mask, (1, H))                                    # [N, H*N]

    # Head selector for the stacked-head layout: rsel_blk[h*N+m, e] = (e//HD == h).
    row_head = (jnp.arange(HN) // N)[:, None]
    col_head = (jnp.arange(E) // HD)[None, :]
    rsel_blk = (row_head == col_head).astype(jnp.bfloat16)           # [H*N, E]

    bf = jnp.bfloat16
    # fc_out padded to 128 lane-dense columns; padded bias = NEG so the padded
    # logits never affect the log-softmax normalizer.
    wout_p = jnp.zeros((E, VP), jnp.float32).at[:, :V].set(params['wout']).astype(bf)
    bout_p = jnp.full((1, VP), NEG, jnp.float32).at[:, :V].set(params['bout'])

    return dict(
        mask=mask, rsel_blk=rsel_blk,
        wqkv=params['wqkv'].astype(bf), bqkv=params['bqkv'],
        wo=params['wo'].astype(bf), bo=params['bo'],
        ln1w=params['ln1w'], ln1b=params['ln1b'],
        ln2w=params['ln2w'], ln2b=params['ln2b'],
        w1=params['w1'].astype(bf), b1=params['b1'],
        w2=params['w2'].astype(bf), b2=params['b2'],
        wout=wout_p, bout=bout_p,
    )


@jax.jit
def forward(src, emb, pos, consts):
    """src: [B, S] int32 tokens -> log-probs [B, S, V] float32."""
    B, Sq = src.shape
    assert Sq <= SP
    N = B * SP
    HN = H * N

    # Embedding + positional encoding (jitted glue), pad seq to SP, flatten batch.
    x = emb[src] + pos[:, :Sq, :]
    x = jnp.pad(x, ((0, 0), (0, SP - Sq), (0, 0))).reshape(N, E).astype(jnp.float32)

    per_layer = lambda shape: pl.BlockSpec(shape, lambda l: (l, 0, 0))
    shared2d = lambda shape: pl.BlockSpec(shape, lambda l: (0, 0))

    in_specs = [
        shared2d((N, E)),               # x
        shared2d((N, HN)),              # mask (pre-tiled)
        shared2d((HN, E)),              # rsel_blk
        per_layer((None, E, 3 * E)),    # wqkv
        per_layer((None, 1, 3 * E)),    # bqkv
        per_layer((None, E, E)),        # wo
        per_layer((None, 1, E)),        # bo
        per_layer((None, 1, E)),        # ln1w
        per_layer((None, 1, E)),        # ln1b
        per_layer((None, 1, E)),        # ln2w
        per_layer((None, 1, E)),        # ln2b
        per_layer((None, E, FF)),       # w1
        per_layer((None, 1, FF)),       # b1
        per_layer((None, FF, E)),       # w2
        per_layer((None, 1, E)),        # b2
        shared2d((E, VP)),              # wout (lane-padded)
        shared2d((1, VP)),              # bout (lane-padded)
    ]

    out = pl.pallas_call(
        lm_kernel,
        out_shape=jax.ShapeDtypeStruct((N, VP), jnp.float32),
        grid_spec=pltpu.PrefetchScalarGridSpec(
            num_scalar_prefetch=0,
            grid=(L,),                                   # layer grid: hides layer l+1 weight DMA
            in_specs=in_specs,
            out_specs=pl.BlockSpec((N, VP), lambda l: (0, 0)),
            scratch_shapes=[pltpu.VMEM((N, E), jnp.float32)],   # residual stream
        ),
        compiler_params=pltpu.CompilerParams(
            dimension_semantics=("arbitrary",)),
    )(x, consts['mask'], consts['rsel_blk'],
      consts['wqkv'], consts['bqkv'], consts['wo'], consts['bo'],
      consts['ln1w'], consts['ln1b'], consts['ln2w'], consts['ln2b'],
      consts['w1'], consts['b1'], consts['w2'], consts['b2'],
      consts['wout'], consts['bout'])

    return out.reshape(B, SP, VP)[:, :Sq, :V]


def forward_ref(src, params):
    """Pure-JAX f32 reference of the same math for correctness checking."""
    Sq = src.shape[1]
    x = params['emb'][src] + params['pos'][:, :Sq, :]
    mask = jnp.where(jnp.triu(jnp.ones((Sq, Sq), jnp.float32), k=1) > 0,
                     jnp.float32(NEG), jnp.float32(0.0))

    def one(h):
        for l in range(L):
            qkv = h @ params['wqkv'][l] + params['bqkv'][l]
            q, k, v = qkv[:, :E], qkv[:, E:2 * E], qkv[:, 2 * E:]
            outs = []
            for hh in range(H):
                sl = slice(hh * HD, (hh + 1) * HD)
                s = (q[:, sl] @ k[:, sl].T) / math.sqrt(HD) + mask
                outs.append(jax.nn.softmax(s, axis=-1) @ v[:, sl])
            a = jnp.concatenate(outs, -1) @ params['wo'][l] + params['bo'][l]
            h = _layer_norm_ref(h + a, params['ln1w'][l], params['ln1b'][l])
            f = jnp.maximum(h @ params['w1'][l] + params['b1'][l], 0.0)
            f = f @ params['w2'][l] + params['b2'][l]
            h = _layer_norm_ref(h + f, params['ln2w'][l], params['ln2b'][l])
        logits = h @ params['wout'] + params['bout']
        return jax.nn.log_softmax(logits, axis=-1)

    return jax.vmap(one)(x)


if __name__ == "__main__":
    key = jax.random.PRNGKey(0)
    pkey, skey = jax.random.split(key)
    params = make_params(pkey)

    # batch=2 sequences of length 19 (max_seq_length), vocab_size=27
    src = jax.random.randint(skey, (2, S), 0, V, dtype=jnp.int32)

    consts = prepare(params, batch=2, seq_len=S)     # hoisted, built once
    out = forward(src, params['emb'], params['pos'], consts)
    jax.block_until_ready(out)

    ref = forward_ref(src, params)
    assert out.shape == (2, S, V), out.shape
    # bf16 weight streaming + approx reciprocal -> relaxed tolerance vs f32 ref.
    assert jnp.allclose(out, ref, atol=1e-2, rtol=1e-2), \
        float(jnp.max(jnp.abs(out - ref)))

    print("KERNEL_OK")
</pallas_src>

<mosaic_0001>
module attributes {stable_mosaic.version = 11 : i64} {
  func.func @lm_kernel(%arg0: i32, %arg1: memref<48x128xf32, #tpu.memory_space<vmem>>, %arg2: memref<48x384xf32, #tpu.memory_space<vmem>>, %arg3: memref<384x128xbf16, #tpu.memory_space<vmem>>, %arg4: memref<1x128x384xbf16, #tpu.memory_space<vmem>>, %arg5: memref<1x1x384xf32, #tpu.memory_space<vmem>>, %arg6: memref<1x128x128xbf16, #tpu.memory_space<vmem>>, %arg7: memref<1x1x128xf32, #tpu.memory_space<vmem>>, %arg8: memref<1x1x128xf32, #tpu.memory_space<vmem>>, %arg9: memref<1x1x128xf32, #tpu.memory_space<vmem>>, %arg10: memref<1x1x128xf32, #tpu.memory_space<vmem>>, %arg11: memref<1x1x128xf32, #tpu.memory_space<vmem>>, %arg12: memref<1x128x256xbf16, #tpu.memory_space<vmem>>, %arg13: memref<1x1x256xf32, #tpu.memory_space<vmem>>, %arg14: memref<1x256x128xbf16, #tpu.memory_space<vmem>>, %arg15: memref<1x1x128xf32, #tpu.memory_space<vmem>>, %arg16: memref<128x128xbf16, #tpu.memory_space<vmem>>, %arg17: memref<1x128xf32, #tpu.memory_space<vmem>>, %arg18: memref<48x128xf32, #tpu.memory_space<vmem>>, %arg19: memref<48x128xf32, #tpu.memory_space<vmem>>) attributes {dimension_semantics = [#tpu.dimension_semantics<arbitrary>], iteration_bounds = array<i64: 2>, scalar_prefetch = 0 : i64, scratch_operands = 1 : i64, tpu.core_type = #tpu.core_type<tc>, window_params = [{pipeline_mode = #tpu.pipeline_mode<synchronous>, transform_indices = @transform_0, window_bounds = array<i64: 48, 128>}, {pipeline_mode = #tpu.pipeline_mode<synchronous>, transform_indices = @transform_1, window_bounds = array<i64: 48, 384>}, {pipeline_mode = #tpu.pipeline_mode<synchronous>, transform_indices = @transform_2, window_bounds = array<i64: 384, 128>}, {transform_indices = @transform_3, window_bounds = array<i64: 1, 128, 384>}, {transform_indices = @transform_4, window_bounds = array<i64: 1, 1, 384>}, {transform_indices = @transform_5, window_bounds = array<i64: 1, 128, 128>}, {transform_indices = @transform_6, window_bounds = array<i64: 1, 1, 128>}, {transform_indices = @transform_7, window_bounds = array<i64: 1, 1, 128>}, {transform_indices = @transform_8, window_bounds = array<i64: 1, 1, 128>}, {transform_indices = @transform_9, window_bounds = array<i64: 1, 1, 128>}, {transform_indices = @transform_10, window_bounds = array<i64: 1, 1, 128>}, {transform_indices = @transform_11, window_bounds = array<i64: 1, 128, 256>}, {transform_indices = @transform_12, window_bounds = array<i64: 1, 1, 256>}, {transform_indices = @transform_13, window_bounds = array<i64: 1, 256, 128>}, {transform_indices = @transform_14, window_bounds = array<i64: 1, 1, 128>}, {pipeline_mode = #tpu.pipeline_mode<synchronous>, transform_indices = @transform_15, window_bounds = array<i64: 128, 128>}, {pipeline_mode = #tpu.pipeline_mode<synchronous>, transform_indices = @transform_16, window_bounds = array<i64: 1, 128>}, {pipeline_mode = #tpu.pipeline_mode<synchronous>, transform_indices = @transform_17, window_bounds = array<i64: 48, 128>}]} {
    %c0_i32 = arith.constant 0 : i32
    %0 = arith.cmpi eq, %arg0, %c0_i32 : i32
    %1 = arith.extui %0 : i1 to i32
    %c0_i32_0 = arith.constant 0 : i32
    %2 = arith.cmpi ne, %1, %c0_i32_0 : i32
    scf.if %2 {
      %c0_65 = arith.constant 0 : index
      %c0_66 = arith.constant 0 : index
      %124 = vector.load %arg1[%c0_65, %c0_66] : memref<48x128xf32, #tpu.memory_space<vmem>>, vector<48x128xf32>
      %c0_67 = arith.constant 0 : index
      %c0_68 = arith.constant 0 : index
      %125 = vector.load %arg19[%c0_67, %c0_68] : memref<48x128xf32, #tpu.memory_space<vmem>>, vector<48x128xf32>
      tpu.vector_store %arg19[%c0_67, %c0_68], %124 {strides = array<i32>} : memref<48x128xf32, #tpu.memory_space<vmem>>, vector<48x128xf32>,
    } else {
    }
    %c0 = arith.constant 0 : index
    %c0_1 = arith.constant 0 : index
    %3 = vector.load %arg19[%c0, %c0_1] : memref<48x128xf32, #tpu.memory_space<vmem>>, vector<48x128xf32>
    %c0_2 = arith.constant 0 : index
    %c0_3 = arith.constant 0 : index
    %4 = vector.load %arg3[%c0_2, %c0_3] : memref<384x128xbf16, #tpu.memory_space<vmem>>, vector<384x128xbf16>
    %c0_4 = arith.constant 0 : index
    %c0_5 = arith.constant 0 : index
    %5 = vector.load %arg2[%c0_4, %c0_5] : memref<48x384xf32, #tpu.memory_space<vmem>>, vector<48x384xf32>
    %6 = arith.truncf %3 : vector<48x128xf32> to vector<48x128xbf16>
    %c0_6 = arith.constant 0 : index
    %c0_7 = arith.constant 0 : index
    %c0_8 = arith.constant 0 : index
    %7 = vector.load %arg4[%c0_6, %c0_7, %c0_8] : memref<1x128x384xbf16, #tpu.memory_space<vmem>>, vector<1x128x384xbf16>
    %8 = vector.shape_cast %7 : vector<1x128x384xbf16> to vector<128x384xbf16>
    %cst = arith.constant dense<0.000000e+00> : vector<48x384xf32>
    %9 = tpu.matmul %6, %8, %cst {dimension_numbers = #tpu.dot_dimension_numbers<[1], [0], [0], [1], [0, 0, 1, 1], [], []>} : vector<48x128xbf16>, vector<128x384xbf16>, vector<48x384xf32> -> vector<48x384xf32>
    %c0_9 = arith.constant 0 : index
    %c0_10 = arith.constant 0 : index
    %c0_11 = arith.constant 0 : index
    %10 = vector.load %arg5[%c0_9, %c0_10, %c0_11] : memref<1x1x384xf32, #tpu.memory_space<vmem>>, vector<1x1x384xf32>
    %11 = vector.shape_cast %10 : vector<1x1x384xf32> to vector<1x384xf32>
    %12 = vector.broadcast %11 : vector<1x384xf32> to vector<48x384xf32>
    %13 = arith.addf %9, %12 : vector<48x384xf32>
    %14 = vector.extract_strided_slice %13 {offsets = [0, 0], sizes = [48, 128], strides = [1, 1]} : vector<48x384xf32> to vector<48x128xf32>
    %15 = arith.truncf %14 : vector<48x128xf32> to vector<48x128xbf16>
    %16 = vector.extract_strided_slice %13 {offsets = [0, 128], sizes = [48, 128], strides = [1, 1]} : vector<48x384xf32> to vector<48x128xf32>
    %17 = arith.truncf %16 : vector<48x128xf32> to vector<48x128xbf16>
    %18 = vector.extract_strided_slice %13 {offsets = [0, 256], sizes = [48, 128], strides = [1, 1]} : vector<48x384xf32> to vector<48x128xf32>
    %19 = arith.truncf %18 : vector<48x128xf32> to vector<48x128xbf16>
    %20 = tpu.concatenate %17, %17, %17, %17, %17, %17, %17, %17 in 0 : vector<48x128xbf16>, vector<48x128xbf16>, vector<48x128xbf16>, vector<48x128xbf16>, vector<48x128xbf16>, vector<48x128xbf16>, vector<48x128xbf16>, vector<48x128xbf16> -> vector<384x128xbf16>
    %21 = arith.mulf %20, %4 : vector<384x128xbf16>
    %22 = tpu.concatenate %19, %19, %19, %19, %19, %19, %19, %19 in 0 : vector<48x128xbf16>, vector<48x128xbf16>, vector<48x128xbf16>, vector<48x128xbf16>, vector<48x128xbf16>, vector<48x128xbf16>, vector<48x128xbf16>, vector<48x128xbf16> -> vector<384x128xbf16>
    %23 = arith.mulf %22, %4 : vector<384x128xbf16>
    %cst_12 = arith.constant dense<0.000000e+00> : vector<48x384xf32>
    %24 = tpu.matmul %15, %21, %cst_12 {dimension_numbers = #tpu.dot_dimension_numbers<[1], [1], [0], [0], [0, 0, 1, 0], [], []>} : vector<48x128xbf16>, vector<384x128xbf16>, vector<48x384xf32> -> vector<48x384xf32>
    %cst_13 = arith.constant 2.500000e-01 : f32
    %25 = vector.broadcast %cst_13 : f32 to vector<48x384xf32>
    %26 = arith.mulf %24, %25 : vector<48x384xf32>
    %27 = arith.addf %26, %5 : vector<48x384xf32>
    %cst_14 = arith.constant dense<0xFF800000> : vector<48xf32>
    %28 = vector.multi_reduction <maximumf>, %27, %cst_14 [1] : vector<48x384xf32> to vector<48xf32>
    %29 = vector.shape_cast %28 : vector<48xf32> to vector<48x1xf32>
    %30 = vector.broadcast %29 : vector<48x1xf32> to vector<48x384xf32>
    %31 = arith.subf %27, %30 : vector<48x384xf32>
    %32 = math.exp %31 : vector<48x384xf32>
    %33 = arith.truncf %32 : vector<48x384xf32> to vector<48x384xbf16>
    %cst_15 = arith.constant dense<0.000000e+00> : vector<48x128xf32>
    %34 = tpu.matmul %33, %23, %cst_15 {dimension_numbers = #tpu.dot_dimension_numbers<[1], [0], [0], [1], [0, 0, 1, 1], [], []>} : vector<48x384xbf16>, vector<384x128xbf16>, vector<48x128xf32> -> vector<48x128xf32>
    %cst_16 = arith.constant dense<0.000000e+00> : vector<48x128xf32>
    %35 = tpu.matmul %33, %4, %cst_16 {dimension_numbers = #tpu.dot_dimension_numbers<[1], [0], [0], [1], [0, 0, 1, 1], [], []>} : vector<48x384xbf16>, vector<384x128xbf16>, vector<48x128xf32> -> vector<48x128xf32>
    %cst_17 = arith.constant 9.99999968E-21 : f32
    %36 = vector.broadcast %cst_17 : f32 to vector<48x128xf32>
    %37 = arith.maximumf %35, %36 : vector<48x128xf32>
    %38 = tpu.reciprocal %37 {approx = true} : vector<48x128xf32> -> vector<48x128xf32>
    %39 = arith.mulf %34, %38 : vector<48x128xf32>
    %40 = arith.truncf %39 : vector<48x128xf32> to vector<48x128xbf16>
    %c0_18 = arith.constant 0 : index
    %c0_19 = arith.constant 0 : index
    %c0_20 = arith.constant 0 : index
    %41 = vector.load %arg6[%c0_18, %c0_19, %c0_20] : memref<1x128x128xbf16, #tpu.memory_space<vmem>>, vector<1x128x128xbf16>
    %42 = vector.shape_cast %41 : vector<1x128x128xbf16> to vector<128x128xbf16>
    %cst_21 = arith.constant dense<0.000000e+00> : vector<48x128xf32>
    %43 = tpu.matmul %40, %42, %cst_21 {dimension_numbers = #tpu.dot_dimension_numbers<[1], [0], [0], [1], [0, 0, 1, 1], [], []>} : vector<48x128xbf16>, vector<128x128xbf16>, vector<48x128xf32> -> vector<48x128xf32>
    %c0_22 = arith.constant 0 : index
    %c0_23 = arith.constant 0 : index
    %c0_24 = arith.constant 0 : index
    %44 = vector.load %arg7[%c0_22, %c0_23, %c0_24] : memref<1x1x128xf32, #tpu.memory_space<vmem>>, vector<1x1x128xf32>
    %45 = vector.shape_cast %44 : vector<1x1x128xf32> to vector<1x128xf32>
    %46 = vector.broadcast %45 : vector<1x128xf32> to vector<48x128xf32>
    %47 = arith.addf %43, %46 : vector<48x128xf32>
    %48 = arith.addf %3, %47 : vector<48x128xf32>
    %c0_25 = arith.constant 0 : index
    %c0_26 = arith.constant 0 : index
    %c0_27 = arith.constant 0 : index
    %49 = vector.load %arg8[%c0_25, %c0_26, %c0_27] : memref<1x1x128xf32, #tpu.memory_space<vmem>>, vector<1x1x128xf32>
    %50 = vector.shape_cast %49 : vector<1x1x128xf32> to vector<1x128xf32>
    %c0_28 = arith.constant 0 : index
    %c0_29 = arith.constant 0 : index
    %c0_30 = arith.constant 0 : index
    %51 = vector.load %arg9[%c0_28, %c0_29, %c0_30] : memref<1x1x128xf32, #tpu.memory_space<vmem>>, vector<1x1x128xf32>
    %52 = vector.shape_cast %51 : vector<1x1x128xf32> to vector<1x128xf32>
    %cst_31 = arith.constant dense<0.000000e+00> : vector<48xf32>
    %53 = vector.multi_reduction <add>, %48, %cst_31 [1] : vector<48x128xf32> to vector<48xf32>
    %54 = vector.shape_cast %53 : vector<48xf32> to vector<48x1xf32>
    %cst_32 = arith.constant 1.280000e+02 : f32
    %55 = vector.broadcast %cst_32 : f32 to vector<48x1xf32>
    %56 = arith.divf %54, %55 : vector<48x1xf32>
    %57 = arith.mulf %48, %48 : vector<48x128xf32>
    %cst_33 = arith.constant dense<0.000000e+00> : vector<48xf32>
    %58 = vector.multi_reduction <add>, %57, %cst_33 [1] : vector<48x128xf32> to vector<48xf32>
    %59 = vector.shape_cast %58 : vector<48xf32> to vector<48x1xf32>
    %cst_34 = arith.constant 1.280000e+02 : f32
    %60 = vector.broadcast %cst_34 : f32 to vector<48x1xf32>
    %61 = arith.divf %59, %60 : vector<48x1xf32>
    %62 = arith.mulf %56, %56 : vector<48x1xf32>
    %63 = arith.subf %61, %62 : vector<48x1xf32>
    %64 = vector.broadcast %56 : vector<48x1xf32> to vector<48x128xf32>
    %65 = arith.subf %48, %64 : vector<48x128xf32>
    %cst_35 = arith.constant 9.99999974E-6 : f32
    %66 = vector.broadcast %cst_35 : f32 to vector<48x1xf32>
    %67 = arith.addf %63, %66 : vector<48x1xf32>
    %68 = math.rsqrt %67 : vector<48x1xf32>
    %69 = vector.broadcast %68 : vector<48x1xf32> to vector<48x128xf32>
    %70 = arith.mulf %65, %69 : vector<48x128xf32>
    %71 = vector.broadcast %50 : vector<1x128xf32> to vector<48x128xf32>
    %72 = arith.mulf %70, %71 : vector<48x128xf32>
    %73 = vector.broadcast %52 : vector<1x128xf32> to vector<48x128xf32>
    %74 = arith.addf %72, %73 : vector<48x128xf32>
    %75 = arith.truncf %74 : vector<48x128xf32> to vector<48x128xbf16>
    %c0_36 = arith.constant 0 : index
    %c0_37 = arith.constant 0 : index
    %c0_38 = arith.constant 0 : index
    %76 = vector.load %arg12[%c0_36, %c0_37, %c0_38] : memref<1x128x256xbf16, #tpu.memory_space<vmem>>, vector<1x128x256xbf16>
    %77 = vector.shape_cast %76 : vector<1x128x256xbf16> to vector<128x256xbf16>
    %cst_39 = arith.constant dense<0.000000e+00> : vector<48x256xf32>
    %78 = tpu.matmul %75, %77, %cst_39 {dimension_numbers = #tpu.dot_dimension_numbers<[1], [0], [0], [1], [0, 0, 1, 1], [], []>} : vector<48x128xbf16>, vector<128x256xbf16>, vector<48x256xf32> -> vector<48x256xf32>
    %c0_40 = arith.constant 0 : index
    %c0_41 = arith.constant 0 : index
    %c0_42 = arith.constant 0 : index
    %79 = vector.load %arg13[%c0_40, %c0_41, %c0_42] : memref<1x1x256xf32, #tpu.memory_space<vmem>>, vector<1x1x256xf32>
    %80 = vector.shape_cast %79 : vector<1x1x256xf32> to vector<1x256xf32>
    %81 = vector.broadcast %80 : vector<1x256xf32> to vector<48x256xf32>
    %82 = arith.addf %78, %81 : vector<48x256xf32>
    %cst_43 = arith.constant 0.000000e+00 : f32
    %83 = vector.broadcast %cst_43 : f32 to vector<48x256xf32>
    %84 = arith.maximumf %82, %83 : vector<48x256xf32>
    %85 = arith.truncf %84 : vector<48x256xf32> to vector<48x256xbf16>
    %c0_44 = arith.constant 0 : index
    %c0_45 = arith.constant 0 : index
    %c0_46 = arith.constant 0 : index
    %86 = vector.load %arg14[%c0_44, %c0_45, %c0_46] : memref<1x256x128xbf16, #tpu.memory_space<vmem>>, vector<1x256x128xbf16>
    %87 = vector.shape_cast %86 : vector<1x256x128xbf16> to vector<256x128xbf16>
    %cst_47 = arith.constant dense<0.000000e+00> : vector<48x128xf32>
    %88 = tpu.matmul %85, %87, %cst_47 {dimension_numbers = #tpu.dot_dimension_numbers<[1], [0], [0], [1], [0, 0, 1, 1], [], []>} : vector<48x256xbf16>, vector<256x128xbf16>, vector<48x128xf32> -> vector<48x128xf32>
    %c0_48 = arith.constant 0 : index
    %c0_49 = arith.constant 0 : index
    %c0_50 = arith.constant 0 : index
    %89 = vector.load %arg15[%c0_48, %c0_49, %c0_50] : memref<1x1x128xf32, #tpu.memory_space<vmem>>, vector<1x1x128xf32>
    %90 = vector.shape_cast %89 : vector<1x1x128xf32> to vector<1x128xf32>
    %91 = vector.broadcast %90 : vector<1x128xf32> to vector<48x128xf32>
    %92 = arith.addf %88, %91 : vector<48x128xf32>
    %93 = arith.addf %74, %92 : vector<48x128xf32>
    %c0_51 = arith.constant 0 : index
    %c0_52 = arith.constant 0 : index
    %c0_53 = arith.constant 0 : index
    %94 = vector.load %arg10[%c0_51, %c0_52, %c0_53] : memref<1x1x128xf32, #tpu.memory_space<vmem>>, vector<1x1x128xf32>
    %95 = vector.shape_cast %94 : vector<1x1x128xf32> to vector<1x128xf32>
    %c0_54 = arith.constant 0 : index
    %c0_55 = arith.constant 0 : index
    %c0_56 = arith.constant 0 : index
    %96 = vector.load %arg11[%c0_54, %c0_55, %c0_56] : memref<1x1x128xf32, #tpu.memory_space<vmem>>, vector<1x1x128xf32>
    %97 = vector.shape_cast %96 : vector<1x1x128xf32> to vector<1x128xf32>
    %cst_57 = arith.constant dense<0.000000e+00> : vector<48xf32>
    %98 = vector.multi_reduction <add>, %93, %cst_57 [1] : vector<48x128xf32> to vector<48xf32>
    %99 = vector.shape_cast %98 : vector<48xf32> to vector<48x1xf32>
    %cst_58 = arith.constant 1.280000e+02 : f32
    %100 = vector.broadcast %cst_58 : f32 to vector<48x1xf32>
    %101 = arith.divf %99, %100 : vector<48x1xf32>
    %102 = arith.mulf %93, %93 : vector<48x128xf32>
    %cst_59 = arith.constant dense<0.000000e+00> : vector<48xf32>
    %103 = vector.multi_reduction <add>, %102, %cst_59 [1] : vector<48x128xf32> to vector<48xf32>
    %104 = vector.shape_cast %103 : vector<48xf32> to vector<48x1xf32>
    %cst_60 = arith.constant 1.280000e+02 : f32
    %105 = vector.broadcast %cst_60 : f32 to vector<48x1xf32>
    %106 = arith.divf %104, %105 : vector<48x1xf32>
    %107 = arith.mulf %101, %101 : vector<48x1xf32>
    %108 = arith.subf %106, %107 : vector<48x1xf32>
    %109 = vector.broadcast %101 : vector<48x1xf32> to vector<48x128xf32>
    %110 = arith.subf %93, %109 : vector<48x128xf32>
    %cst_61 = arith.constant 9.99999974E-6 : f32
    %111 = vector.broadcast %cst_61 : f32 to vector<48x1xf32>
    %112 = arith.addf %108, %111 : vector<48x1xf32>
    %113 = math.rsqrt %112 : vector<48x1xf32>
    %114 = vector.broadcast %113 : vector<48x1xf32> to vector<48x128xf32>
    %115 = arith.mulf %110, %114 : vector<48x128xf32>
    %116 = vector.broadcast %95 : vector<1x128xf32> to vector<48x128xf32>
    %117 = arith.mulf %115, %116 : vector<48x128xf32>
    %118 = vector.broadcast %97 : vector<1x128xf32> to vector<48x128xf32>
    %119 = arith.addf %117, %118 : vector<48x128xf32>
    %c0_62 = arith.constant 0 : index
    %c0_63 = arith.constant 0 : index
    %120 = vector.load %arg19[%c0_62, %c0_63] : memref<48x128xf32, #tpu.memory_space<vmem>>, vector<48x128xf32>
    tpu.vector_store %arg19[%c0_62, %c0_63], %119 {strides = array<i32>} : memref<48x128xf32, #tpu.memory_space<vmem>>, vector<48x128xf32>,
    %c1_i32 = arith.constant 1 : i32
    %121 = arith.cmpi eq, %arg0, %c1_i32 : i32
    %122 = arith.extui %121 : i1 to i32
    %c0_i32_64 = arith.constant 0 : i32
    %123 = arith.cmpi ne, %122, %c0_i32_64 : i32
    scf.if %123 {
      %124 = arith.truncf %119 : vector<48x128xf32> to vector<48x128xbf16>
      %c0_65 = arith.constant 0 : index
      %c0_66 = arith.constant 0 : index
      %125 = vector.load %arg16[%c0_65, %c0_66] : memref<128x128xbf16, #tpu.memory_space<vmem>>, vector<128x128xbf16>
      %cst_67 = arith.constant dense<0.000000e+00> : vector<48x128xf32>
      %126 = tpu.matmul %124, %125, %cst_67 {dimension_numbers = #tpu.dot_dimension_numbers<[1], [0], [0], [1], [0, 0, 1, 1], [], []>} : vector<48x128xbf16>, vector<128x128xbf16>, vector<48x128xf32> -> vector<48x128xf32>
      %c0_68 = arith.constant 0 : index
      %c0_69 = arith.constant 0 : index
      %127 = vector.load %arg17[%c0_68, %c0_69] : memref<1x128xf32, #tpu.memory_space<vmem>>, vector<1x128xf32>
      %128 = vector.broadcast %127 : vector<1x128xf32> to vector<48x128xf32>
      %129 = arith.addf %126, %128 : vector<48x128xf32>
      %cst_70 = arith.constant dense<0xFF800000> : vector<48xf32>
      %130 = vector.multi_reduction <maximumf>, %129, %cst_70 [1] : vector<48x128xf32> to vector<48xf32>
      %131 = vector.shape_cast %130 : vector<48xf32> to vector<48x1xf32>
      %132 = vector.broadcast %131 : vector<48x1xf32> to vector<48x128xf32>
      %133 = arith.subf %129, %132 : vector<48x128xf32>
      %134 = math.exp %133 : vector<48x128xf32>
      %cst_71 = arith.constant dense<0.000000e+00> : vector<48xf32>
      %135 = vector.multi_reduction <add>, %134, %cst_71 [1] : vector<48x128xf32> to vector<48xf32>
      %136 = vector.shape_cast %135 : vector<48xf32> to vector<48x1xf32>
      %137 = math.log %136 : vector<48x1xf32>
      %138 = arith.addf %131, %137 : vector<48x1xf32>
      %139 = vector.broadcast %138 : vector<48x1xf32> to vector<48x128xf32>
      %140 = arith.subf %129, %139 : vector<48x128xf32>
      %c0_72 = arith.constant 0 : index
      %c0_73 = arith.constant 0 : index
      %141 = vector.load %arg18[%c0_72, %c0_73] : memref<48x128xf32, #tpu.memory_space<vmem>>, vector<48x128xf32>
      tpu.vector_store %arg18[%c0_72, %c0_73], %140 {strides = array<i32>} : memref<48x128xf32, #tpu.memory_space<vmem>>, vector<48x128xf32>,
    } else {
    }
    return
  }
  func.func @transform_0(%arg0: i32) -> (i32, i32) {
    %c0_i32 = arith.constant 0 : i32
    %c0_i32_0 = arith.constant 0 : i32
    %c0_i32_1 = arith.constant 0 : i32
    return %c0_i32, %c0_i32_0 : i32, i32
  }
  func.func @transform_1(%arg0: i32) -> (i32, i32) {
    %c0_i32 = arith.constant 0 : i32
    %c0_i32_0 = arith.constant 0 : i32
    %c0_i32_1 = arith.constant 0 : i32
    return %c0_i32, %c0_i32_0 : i32, i32
  }
  func.func @transform_2(%arg0: i32) -> (i32, i32) {
    %c0_i32 = arith.constant 0 : i32
    %c0_i32_0 = arith.constant 0 : i32
    %c0_i32_1 = arith.constant 0 : i32
    return %c0_i32, %c0_i32_0 : i32, i32
  }
  func.func @transform_3(%arg0: i32) -> (i32, i32, i32) {
    %c0_i32 = arith.constant 0 : i32
    %c0_i32_0 = arith.constant 0 : i32
    %c0_i32_1 = arith.constant 0 : i32
    return %arg0, %c0_i32, %c0_i32_0 : i32, i32, i32
  }
  func.func @transform_4(%arg0: i32) -> (i32, i32, i32) {
    %c0_i32 = arith.constant 0 : i32
    %c0_i32_0 = arith.constant 0 : i32
    %c0_i32_1 = arith.constant 0 : i32
    return %arg0, %c0_i32, %c0_i32_0 : i32, i32, i32
  }
  func.func @transform_5(%arg0: i32) -> (i32, i32, i32) {
    %c0_i32 = arith.constant 0 : i32
    %c0_i32_0 = arith.constant 0 : i32
    %c0_i32_1 = arith.constant 0 : i32
    return %arg0, %c0_i32, %c0_i32_0 : i32, i32, i32
  }
  func.func @transform_6(%arg0: i32) -> (i32, i32, i32) {
    %c0_i32 = arith.constant 0 : i32
    %c0_i32_0 = arith.constant 0 : i32
    %c0_i32_1 = arith.constant 0 : i32
    return %arg0, %c0_i32, %c0_i32_0 : i32, i32, i32
  }
  func.func @transform_7(%arg0: i32) -> (i32, i32, i32) {
    %c0_i32 = arith.constant 0 : i32
    %c0_i32_0 = arith.constant 0 : i32
    %c0_i32_1 = arith.constant 0 : i32
    return %arg0, %c0_i32, %c0_i32_0 : i32, i32, i32
  }
  func.func @transform_8(%arg0: i32) -> (i32, i32, i32) {
    %c0_i32 = arith.constant 0 : i32
    %c0_i32_0 = arith.constant 0 : i32
    %c0_i32_1 = arith.constant 0 : i32
    return %arg0, %c0_i32, %c0_i32_0 : i32, i32, i32
  }
  func.func @transform_9(%arg0: i32) -> (i32, i32, i32) {
    %c0_i32 = arith.constant 0 : i32
    %c0_i32_0 = arith.constant 0 : i32
    %c0_i32_1 = arith.constant 0 : i32
    return %arg0, %c0_i32, %c0_i32_0 : i32, i32, i32
  }
  func.func @transform_10(%arg0: i32) -> (i32, i32, i32) {
    %c0_i32 = arith.constant 0 : i32
    %c0_i32_0 = arith.constant 0 : i32
    %c0_i32_1 = arith.constant 0 : i32
    return %arg0, %c0_i32, %c0_i32_0 : i32, i32, i32
  }
  func.func @transform_11(%arg0: i32) -> (i32, i32, i32) {
    %c0_i32 = arith.constant 0 : i32
    %c0_i32_0 = arith.constant 0 : i32
    %c0_i32_1 = arith.constant 0 : i32
    return %arg0, %c0_i32, %c0_i32_0 : i32, i32, i32
  }
  func.func @transform_12(%arg0: i32) -> (i32, i32, i32) {
    %c0_i32 = arith.constant 0 : i32
    %c0_i32_0 = arith.constant 0 : i32
    %c0_i32_1 = arith.constant 0 : i32
    return %arg0, %c0_i32, %c0_i32_0 : i32, i32, i32
  }
  func.func @transform_13(%arg0: i32) -> (i32, i32, i32) {
    %c0_i32 = arith.constant 0 : i32
    %c0_i32_0 = arith.constant 0 : i32
    %c0_i32_1 = arith.constant 0 : i32
    return %arg0, %c0_i32, %c0_i32_0 : i32, i32, i32
  }
  func.func @transform_14(%arg0: i32) -> (i32, i32, i32) {
    %c0_i32 = arith.constant 0 : i32
    %c0_i32_0 = arith.constant 0 : i32
    %c0_i32_1 = arith.constant 0 : i32
    return %arg0, %c0_i32, %c0_i32_0 : i32, i32, i32
  }
  func.func @transform_15(%arg0: i32) -> (i32, i32) {
    %c0_i32 = arith.constant 0 : i32
    %c0_i32_0 = arith.constant 0 : i32
    %c0_i32_1 = arith.constant 0 : i32
    return %c0_i32, %c0_i32_0 : i32, i32
  }
  func.func @transform_16(%arg0: i32) -> (i32, i32) {
    %c0_i32 = arith.constant 0 : i32
    %c0_i32_0 = arith.constant 0 : i32
    %c0_i32_1 = arith.constant 0 : i32
    return %c0_i32, %c0_i32_0 : i32, i32
  }
  func.func @transform_17(%arg0: i32) -> (i32, i32) {
    %c0_i32 = arith.constant 0 : i32
    %c0_i32_0 = arith.constant 0 : i32
    %c0_i32_1 = arith.constant 0 : i32
    return %c0_i32, %c0_i32_0 : i32, i32
  }
}

</mosaic_0001>

<llo_original>
// kernel: forward.1
$region0: #{forward.1}
  #allocation0 [shape = 'u32[]', space=smem, size = 0x4, offset = 0x4, fixed_abs, tag = 'smem constant byte address 0x4 - core index']
  #allocation1 [shape = 'u32[144,128]{1,0:T(1,128)}', space=vmem, size = 0x12000, scoped, tag = 'internal scratch']
  #allocation2 [shape = 'f32[48,128]{1,0:T(8,128)}', space=vmem, size = 0x6000, scoped, tag = 'scratch operand']
  %s0 = inlined_call_operand.vmem [shape: f32[48,128], index: 0, kind: input, shape index: {}]
  %s1 = inlined_call_operand.vmem [shape: f32[48,384], index: 1, kind: input, shape index: {}]
  %s2 = inlined_call_operand.hbm [shape: bf16[384,128], index: 2, kind: input, shape index: {}]
  %s3 = inlined_call_operand.vmem [shape: bf16[2,128,384], index: 3, kind: input, shape index: {}]
  %s4 = inlined_call_operand.vmem [shape: f32[2,1,384], index: 4, kind: input, shape index: {}]
  %s5 = inlined_call_operand.hbm [shape: bf16[2,128,128], index: 5, kind: input, shape index: {}]
  %s6 = inlined_call_operand.vmem [shape: f32[2,1,128], index: 6, kind: input, shape index: {}]
  %s7 = inlined_call_operand.vmem [shape: f32[2,1,128], index: 7, kind: input, shape index: {}]
  %s8 = inlined_call_operand.vmem [shape: f32[2,1,128], index: 8, kind: input, shape index: {}]
  %s9 = inlined_call_operand.vmem [shape: f32[2,1,128], index: 9, kind: input, shape index: {}]
  %s10 = inlined_call_operand.vmem [shape: f32[2,1,128], index: 10, kind: input, shape index: {}]
  %s11 = inlined_call_operand.vmem [shape: bf16[2,128,256], index: 11, kind: input, shape index: {}]
  %s12 = inlined_call_operand.vmem [shape: f32[2,1,256], index: 12, kind: input, shape index: {}]
  %s13 = inlined_call_operand.hbm [shape: bf16[2,256,128], index: 13, kind: input, shape index: {}]
  %s14 = inlined_call_operand.vmem [shape: f32[2,1,128], index: 14, kind: input, shape index: {}]
  %s15 = inlined_call_operand.hbm [shape: bf16[128,128], index: 15, kind: input, shape index: {}]
  %s16 = inlined_call_operand.vmem [shape: f32[1,128], index: 16, kind: input, shape index: {}]
  %s17 = inlined_call_operand.vmem [shape: f32[48,128], index: 17, kind: output, shape index: {}]
  %s18 = sld [smem:[#allocation0]]
  $region125: #{forward.1} parent=0
    _
  %s20 = ssub.s32 1, %s18
  %s21 = scalar_select 0, %s20, %s18
  $region1: #{forward.1} parent=0
    #allocation3 [shape = 'u8[98304]{0}', space=vmem, size = 0x18000, scoped, tag = 'input window, operand 2, single buffered']
    #allocation4 [shape = 's32[2]{0}', space=sflag, size = 0x8, scoped, tag = 'scoped memory for forward.1']
    #allocation5 [shape = 'u8[65536]{0}', space=vmem, size = 0x10000, scoped, tag = 'input window, operand 5']
    #allocation6 [shape = 's32[2]{0}', space=sflag, size = 0x8, scoped, tag = 'scoped memory for forward.1']
    #allocation7 [shape = 'u8[131072]{0}', space=vmem, size = 0x20000, scoped, tag = 'input window, operand 13']
    #allocation8 [shape = 'u8[32768]{0}', space=vmem, size = 0x8000, scoped, tag = 'input window, operand 15, single buffered']
    #allocation9 [shape = 's32[1]{0}', space=sflag, size = 0x4, scoped, tag = 'scoped memory for forward.1']
    %22 = vsyncpa [#allocation4], 0
    %23 = vsyncpa [#allocation6], 0
    %s24 = scalar_lea.sflag [#allocation6], 1
    %25 = vsyncpa %s24, 0
    %26 = vsyncpa [#allocation9], 0
    loop: start=0, step=1, limit=4
    $region2: #{forward.1} parent=1 // loop_pre_header
      _
    $region3: #{forward.1} parent=1 // loop_header
      %s28 = sphi 0, %s32
      %p29 = scmp.ge.s32.totalorder %s28, 4
      %s36 = sphi 0, %s36
      %s38 = sphi 0, %s36
      %s39 = sphi 0, %s38
      %s53 = sphi 0, %s39
      %s57 = sphi 0, %s57
      %s59 = sphi 0, %s57
      %s60 = sphi 0, %s59
      %s74 = sphi 0, %s60
      %s78 = sphi 0, %s78
      %s80 = sphi 0, %s78
      %s81 = sphi 0, %s80
      %s95 = sphi 0, %s81
      %s101 = sphi 0, %s103
      %s104 = sphi 0, %s101
      %s105 = sphi 0, %s104
      %s121 = sphi 0, %s105
      %s127 = sphi 0, %s129
      %s130 = sphi 0, %s127
      %s131 = sphi 0, %s130
      %s147 = sphi 0, %s131
      %s153 = sphi 0, %s155
      %s156 = sphi 0, %s153
      %s157 = sphi 0, %s156
      %s173 = sphi 0, %s157
      %s179 = sphi 0, %s181
      %s182 = sphi 0, %s179
      %s183 = sphi 0, %s182
      %s199 = sphi 0, %s183
      %s205 = sphi 0, %s207
      %s208 = sphi 0, %s205
      %s209 = sphi 0, %s208
      %s225 = sphi 0, %s209
      %s231 = sphi 0, %s233
      %s234 = sphi 0, %s231
      %s235 = sphi 0, %s234
      %s251 = sphi 0, %s235
      %s257 = sphi 0, %s259
      %s260 = sphi 0, %s257
      %s261 = sphi 0, %s260
      %s277 = sphi 0, %s261
      %s283 = sphi 0, %s285
      %s286 = sphi 0, %s283
      %s287 = sphi 0, %s286
      %s303 = sphi 0, %s287
      %s309 = sphi 0, %s311
      %s312 = sphi 0, %s309
      %s313 = sphi 0, %s312
      %s329 = sphi 0, %s313
      %s335 = sphi 0, %s337
      %s338 = sphi 0, %s335
      %s339 = sphi 0, %s338
      %s355 = sphi 0, %s339
      %s361 = sphi 0, %s363
      %s364 = sphi 0, %s361
      %s365 = sphi 0, %s364
      %s381 = sphi 0, %s365
      %s387 = sphi 0, %s389
      %s390 = sphi 0, %s387
      %s391 = sphi 0, %s390
      %s407 = sphi 0, %s391
      %s411 = sphi 0, %s411
      %s413 = sphi 0, %s411
      %s414 = sphi 0, %s413
      %s428 = sphi 0, %s414
      %s432 = sphi 0, %s432
      %s434 = sphi 0, %s432
      %s435 = sphi 0, %s434
      %s449 = sphi 0, %s435
      %s453 = sphi 0, %s453
      %s455 = sphi 0, %s453
      %s456 = sphi 0, %s455
      %s470 = sphi 0, %s456
    $region4: #{forward.1} parent=1 // loop_header_branch
      %31 = sbr.rel (%p29) target = $region8
    $region5: #{forward.1} parent=1 // loop_body
      %s33 = ssub.s32 %s28, 1
      %s34 = ssub.s32 %s28, 2
      %s35 = sadd.s32 %s28, 1
      %s37 = sadd.s32 %s36, 1
      %p40 = scmp.eq.s32.totalorder %s28, 1
      %p41 = scmp.ne.s32.totalorder %s36, %s38
      %p42 = scmp.eq.s32.totalorder %s28, 0
      %p43 = por %p41, %p42
      %p44 = scmp.ne.s32.totalorder %s36, %s38
      %p45 = scmp.eq.s32.totalorder %s33, 1
      %p46 = por %p44, %p45
      %p47 = scmp.ne.s32.totalorder %s38, %s39
      %p48 = scmp.eq.s32.totalorder %s33, 0
      %p49 = por %p47, %p48
      %p50 = scmp.ne.s32.totalorder %s38, %s39
      %p51 = scmp.eq.s32.totalorder %s34, 1
      %p52 = por %p50, %p51
      %p54 = scmp.ne.s32.totalorder %s39, %s53
      %p55 = scmp.eq.s32.totalorder %s34, 0
      %p56 = por %p54, %p55
      %s58 = sadd.s32 %s57, 1
      %p61 = scmp.eq.s32.totalorder %s28, 1
      %p62 = scmp.ne.s32.totalorder %s57, %s59
      %p63 = scmp.eq.s32.totalorder %s28, 0
      %p64 = por %p62, %p63
      %p65 = scmp.ne.s32.totalorder %s57, %s59
      %p66 = scmp.eq.s32.totalorder %s33, 1
      %p67 = por %p65, %p66
      %p68 = scmp.ne.s32.totalorder %s59, %s60
      %p69 = scmp.eq.s32.totalorder %s33, 0
      %p70 = por %p68, %p69
      %p71 = scmp.ne.s32.totalorder %s59, %s60
      %p72 = scmp.eq.s32.totalorder %s34, 1
      %p73 = por %p71, %p72
      %p75 = scmp.ne.s32.totalorder %s60, %s74
      %p76 = scmp.eq.s32.totalorder %s34, 0
      %p77 = por %p75, %p76
      %s79 = sadd.s32 %s78, 1
      %p82 = scmp.eq.s32.totalorder %s28, 1
      %p83 = scmp.ne.s32.totalorder %s78, %s80
      %p84 = scmp.eq.s32.totalorder %s28, 0
      %p85 = por %p83, %p84
      %p86 = scmp.ne.s32.totalorder %s78, %s80
      %p87 = scmp.eq.s32.totalorder %s33, 1
      %p88 = por %p86, %p87
      %p89 = scmp.ne.s32.totalorder %s80, %s81
      %p90 = scmp.eq.s32.totalorder %s33, 0
      %p91 = por %p89, %p90
      %p92 = scmp.ne.s32.totalorder %s80, %s81
      %p93 = scmp.eq.s32.totalorder %s34, 1
      %p94 = por %p92, %p93
      %p96 = scmp.ne.s32.totalorder %s81, %s95
      %p97 = scmp.eq.s32.totalorder %s34, 0
      %p98 = por %p96, %p97
      %s99 = ssub.s32 %s28, %s35
      %p100 = scmp.eq.s32.totalorder %s99, 0
      %s102 = sadd.s32 %s101, 1
      %s103 = scalar_select %p100, %s101, %s102
      %p106 = pneg %p100
      %p107 = scmp.eq.s32.totalorder %s28, 1
      %p108 = por %p106, %p107
      %p109 = scmp.ne.s32.totalorder %s101, %s104
      %p110 = scmp.eq.s32.totalorder %s28, 0
      %p111 = por %p109, %p110
      %p112 = scmp.ne.s32.totalorder %s101, %s104
      %p113 = scmp.eq.s32.totalorder %s33, 1
      %p114 = por %p112, %p113
      %p115 = scmp.ne.s32.totalorder %s104, %s105
      %p116 = scmp.eq.s32.totalorder %s33, 0
      %p117 = por %p115, %p116
      %p118 = scmp.ne.s32.totalorder %s104, %s105
      %p119 = scmp.eq.s32.totalorder %s34, 1
      %p120 = por %p118, %p119
      %p122 = scmp.ne.s32.totalorder %s105, %s121
      %p123 = scmp.eq.s32.totalorder %s34, 0
      %p124 = por %p122, %p123
      %s125 = ssub.s32 %s28, %s35
      %p126 = scmp.eq.s32.totalorder %s125, 0
      %s128 = sadd.s32 %s127, 1
      %s129 = scalar_select %p126, %s127, %s128
      %p132 = pneg %p126
      %p133 = scmp.eq.s32.totalorder %s28, 1
      %p134 = por %p132, %p133
      %p135 = scmp.ne.s32.totalorder %s127, %s130
      %p136 = scmp.eq.s32.totalorder %s28, 0
      %p137 = por %p135, %p136
      %p138 = scmp.ne.s32.totalorder %s127, %s130
      %p139 = scmp.eq.s32.totalorder %s33, 1
      %p140 = por %p138, %p139
      %p141 = scmp.ne.s32.totalorder %s130, %s131
      %p142 = scmp.eq.s32.totalorder %s33, 0
      %p143 = por %p141, %p142
      %p144 = scmp.ne.s32.totalorder %s130, %s131
      %p145 = scmp.eq.s32.totalorder %s34, 1
      %p146 = por %p144, %p145
      %p148 = scmp.ne.s32.totalorder %s131, %s147
      %p149 = scmp.eq.s32.totalorder %s34, 0
      %p150 = por %p148, %p149
      %s151 = ssub.s32 %s28, %s35
      %p152 = scmp.eq.s32.totalorder %s151, 0
      %s154 = sadd.s32 %s153, 1
      %s155 = scalar_select %p152, %s153, %s154
      %p158 = pneg %p152
      %p159 = scmp.eq.s32.totalorder %s28, 1
      %p160 = por %p158, %p159
      %p161 = scmp.ne.s32.totalorder %s153, %s156
      %p162 = scmp.eq.s32.totalorder %s28, 0
      %p163 = por %p161, %p162
      %p164 = scmp.ne.s32.totalorder %s153, %s156
      %p165 = scmp.eq.s32.totalorder %s33, 1
      %p166 = por %p164, %p165
      %p167 = scmp.ne.s32.totalorder %s156, %s157
      %p168 = scmp.eq.s32.totalorder %s33, 0
      %p169 = por %p167, %p168
      %p170 = scmp.ne.s32.totalorder %s156, %s157
      %p171 = scmp.eq.s32.totalorder %s34, 1
      %p172 = por %p170, %p171
      %p174 = scmp.ne.s32.totalorder %s157, %s173
      %p175 = scmp.eq.s32.totalorder %s34, 0
      %p176 = por %p174, %p175
      %s177 = ssub.s32 %s28, %s35
      %p178 = scmp.eq.s32.totalorder %s177, 0
      %s180 = sadd.s32 %s179, 1
      %s181 = scalar_select %p178, %s179, %s180
      %p184 = pneg %p178
      %p185 = scmp.eq.s32.totalorder %s28, 1
      %p186 = por %p184, %p185
      %p187 = scmp.ne.s32.totalorder %s179, %s182
      %p188 = scmp.eq.s32.totalorder %s28, 0
      %p189 = por %p187, %p188
      %p190 = scmp.ne.s32.totalorder %s179, %s182
      %p191 = scmp.eq.s32.totalorder %s33, 1
      %p192 = por %p190, %p191
      %p193 = scmp.ne.s32.totalorder %s182, %s183
      %p194 = scmp.eq.s32.totalorder %s33, 0
      %p195 = por %p193, %p194
      %p196 = scmp.ne.s32.totalorder %s182, %s183
      %p197 = scmp.eq.s32.totalorder %s34, 1
      %p198 = por %p196, %p197
      %p200 = scmp.ne.s32.totalorder %s183, %s199
      %p201 = scmp.eq.s32.totalorder %s34, 0
      %p202 = por %p200, %p201
      %s203 = ssub.s32 %s28, %s35
      %p204 = scmp.eq.s32.totalorder %s203, 0
      %s206 = sadd.s32 %s205, 1
      %s207 = scalar_select %p204, %s205, %s206
      %p210 = pneg %p204
      %p211 = scmp.eq.s32.totalorder %s28, 1
      %p212 = por %p210, %p211
      %p213 = scmp.ne.s32.totalorder %s205, %s208
      %p214 = scmp.eq.s32.totalorder %s28, 0
      %p215 = por %p213, %p214
      %p216 = scmp.ne.s32.totalorder %s205, %s208
      %p217 = scmp.eq.s32.totalorder %s33, 1
      %p218 = por %p216, %p217
      %p219 = scmp.ne.s32.totalorder %s208, %s209
      %p220 = scmp.eq.s32.totalorder %s33, 0
      %p221 = por %p219, %p220
      %p222 = scmp.ne.s32.totalorder %s208, %s209
      %p223 = scmp.eq.s32.totalorder %s34, 1
      %p224 = por %p222, %p223
      %p226 = scmp.ne.s32.totalorder %s209, %s225
      %p227 = scmp.eq.s32.totalorder %s34, 0
      %p228 = por %p226, %p227
      %s229 = ssub.s32 %s28, %s35
      %p230 = scmp.eq.s32.totalorder %s229, 0
      %s232 = sadd.s32 %s231, 1
      %s233 = scalar_select %p230, %s231, %s232
      %p236 = pneg %p230
      %p237 = scmp.eq.s32.totalorder %s28, 1
      %p238 = por %p236, %p237
      %p239 = scmp.ne.s32.totalorder %s231, %s234
      %p240 = scmp.eq.s32.totalorder %s28, 0
      %p241 = por %p239, %p240
      %p242 = scmp.ne.s32.totalorder %s231, %s234
      %p243 = scmp.eq.s32.totalorder %s33, 1
      %p244 = por %p242, %p243
      %p245 = scmp.ne.s32.totalorder %s234, %s235
      %p246 = scmp.eq.s32.totalorder %s33, 0
      %p247 = por %p245, %p246
      %p248 = scmp.ne.s32.totalorder %s234, %s235
      %p249 = scmp.eq.s32.totalorder %s34, 1
      %p250 = por %p248, %p249
      %p252 = scmp.ne.s32.totalorder %s235, %s251
      %p253 = scmp.eq.s32.totalorder %s34, 0
      %p254 = por %p252, %p253
      %s255 = ssub.s32 %s28, %s35
      %p256 = scmp.eq.s32.totalorder %s255, 0
      %s258 = sadd.s32 %s257, 1
      %s259 = scalar_select %p256, %s257, %s258
      %p262 = pneg %p256
      %p263 = scmp.eq.s32.totalorder %s28, 1
      %p264 = por %p262, %p263
      %p265 = scmp.ne.s32.totalorder %s257, %s260
      %p266 = scmp.eq.s32.totalorder %s28, 0
      %p267 = por %p265, %p266
      %p268 = scmp.ne.s32.totalorder %s257, %s260
      %p269 = scmp.eq.s32.totalorder %s33, 1
      %p270 = por %p268, %p269
      %p271 = scmp.ne.s32.totalorder %s260, %s261
      %p272 = scmp.eq.s32.totalorder %s33, 0
      %p273 = por %p271, %p272
      %p274 = scmp.ne.s32.totalorder %s260, %s261
      %p275 = scmp.eq.s32.totalorder %s34, 1
      %p276 = por %p274, %p275
      %p278 = scmp.ne.s32.totalorder %s261, %s277
      %p279 = scmp.eq.s32.totalorder %s34, 0
      %p280 = por %p278, %p279
      %s281 = ssub.s32 %s28, %s35
      %p282 = scmp.eq.s32.totalorder %s281, 0
      %s284 = sadd.s32 %s283, 1
      %s285 = scalar_select %p282, %s283, %s284
      %p288 = pneg %p282
      %p289 = scmp.eq.s32.totalorder %s28, 1
      %p290 = por %p288, %p289
      %p291 = scmp.ne.s32.totalorder %s283, %s286
      %p292 = scmp.eq.s32.totalorder %s28, 0
      %p293 = por %p291, %p292
      %p294 = scmp.ne.s32.totalorder %s283, %s286
      %p295 = scmp.eq.s32.totalorder %s33, 1
      %p296 = por %p294, %p295
      %p297 = scmp.ne.s32.totalorder %s286, %s287
      %p298 = scmp.eq.s32.totalorder %s33, 0
      %p299 = por %p297, %p298
      %p300 = scmp.ne.s32.totalorder %s286, %s287
      %p301 = scmp.eq.s32.totalorder %s34, 1
      %p302 = por %p300, %p301
      %p304 = scmp.ne.s32.totalorder %s287, %s303
      %p305 = scmp.eq.s32.totalorder %s34, 0
      %p306 = por %p304, %p305
      %s307 = ssub.s32 %s28, %s35
      %p308 = scmp.eq.s32.totalorder %s307, 0
      %s310 = sadd.s32 %s309, 1
      %s311 = scalar_select %p308, %s309, %s310
      %p314 = pneg %p308
      %p315 = scmp.eq.s32.totalorder %s28, 1
      %p316 = por %p314, %p315
      %p317 = scmp.ne.s32.totalorder %s309, %s312
      %p318 = scmp.eq.s32.totalorder %s28, 0
      %p319 = por %p317, %p318
      %p320 = scmp.ne.s32.totalorder %s309, %s312
      %p321 = scmp.eq.s32.totalorder %s33, 1
      %p322 = por %p320, %p321
      %p323 = scmp.ne.s32.totalorder %s312, %s313
      %p324 = scmp.eq.s32.totalorder %s33, 0
      %p325 = por %p323, %p324
      %p326 = scmp.ne.s32.totalorder %s312, %s313
      %p327 = scmp.eq.s32.totalorder %s34, 1
      %p328 = por %p326, %p327
      %p330 = scmp.ne.s32.totalorder %s313, %s329
      %p331 = scmp.eq.s32.totalorder %s34, 0
      %p332 = por %p330, %p331
      %s333 = ssub.s32 %s28, %s35
      %p334 = scmp.eq.s32.totalorder %s333, 0
      %s336 = sadd.s32 %s335, 1
      %s337 = scalar_select %p334, %s335, %s336
      %p340 = pneg %p334
      %p341 = scmp.eq.s32.totalorder %s28, 1
      %p342 = por %p340, %p341
      %p343 = scmp.ne.s32.totalorder %s335, %s338
      %p344 = scmp.eq.s32.totalorder %s28, 0
      %p345 = por %p343, %p344
      %p346 = scmp.ne.s32.totalorder %s335, %s338
      %p347 = scmp.eq.s32.totalorder %s33, 1
      %p348 = por %p346, %p347
      %p349 = scmp.ne.s32.totalorder %s338, %s339
      %p350 = scmp.eq.s32.totalorder %s33, 0
      %p351 = por %p349, %p350
      %p352 = scmp.ne.s32.totalorder %s338, %s339
      %p353 = scmp.eq.s32.totalorder %s34, 1
      %p354 = por %p352, %p353
      %p356 = scmp.ne.s32.totalorder %s339, %s355
      %p357 = scmp.eq.s32.totalorder %s34, 0
      %p358 = por %p356, %p357
      %s359 = ssub.s32 %s28, %s35
      %p360 = scmp.eq.s32.totalorder %s359, 0
      %s362 = sadd.s32 %s361, 1
      %s363 = scalar_select %p360, %s361, %s362
      %p366 = pneg %p360
      %p367 = scmp.eq.s32.totalorder %s28, 1
      %p368 = por %p366, %p367
      %p369 = scmp.ne.s32.totalorder %s361, %s364
      %p370 = scmp.eq.s32.totalorder %s28, 0
      %p371 = por %p369, %p370
      %p372 = scmp.ne.s32.totalorder %s361, %s364
      %p373 = scmp.eq.s32.totalorder %s33, 1
      %p374 = por %p372, %p373
      %p375 = scmp.ne.s32.totalorder %s364, %s365
      %p376 = scmp.eq.s32.totalorder %s33, 0
      %p377 = por %p375, %p376
      %p378 = scmp.ne.s32.totalorder %s364, %s365
      %p379 = scmp.eq.s32.totalorder %s34, 1
      %p380 = por %p378, %p379
      %p382 = scmp.ne.s32.totalorder %s365, %s381
      %p383 = scmp.eq.s32.totalorder %s34, 0
      %p384 = por %p382, %p383
      %s385 = ssub.s32 %s28, %s35
      %p386 = scmp.eq.s32.totalorder %s385, 0
      %s388 = sadd.s32 %s387, 1
      %s389 = scalar_select %p386, %s387, %s388
      %p392 = pneg %p386
      %p393 = scmp.eq.s32.totalorder %s28, 1
      %p394 = por %p392, %p393
      %p395 = scmp.ne.s32.totalorder %s387, %s390
      %p396 = scmp.eq.s32.totalorder %s28, 0
      %p397 = por %p395, %p396
      %p398 = scmp.ne.s32.totalorder %s387, %s390
      %p399 = scmp.eq.s32.totalorder %s33, 1
      %p400 = por %p398, %p399
      %p401 = scmp.ne.s32.totalorder %s390, %s391
      %p402 = scmp.eq.s32.totalorder %s33, 0
      %p403 = por %p401, %p402
      %p404 = scmp.ne.s32.totalorder %s390, %s391
      %p405 = scmp.eq.s32.totalorder %s34, 1
      %p406 = por %p404, %p405
      %p408 = scmp.ne.s32.totalorder %s391, %s407
      %p409 = scmp.eq.s32.totalorder %s34, 0
      %p410 = por %p408, %p409
      %s412 = sadd.s32 %s411, 1
      %p415 = scmp.eq.s32.totalorder %s28, 1
      %p416 = scmp.ne.s32.totalorder %s411, %s413
      %p417 = scmp.eq.s32.totalorder %s28, 0
      %p418 = por %p416, %p417
      %p419 = scmp.ne.s32.totalorder %s411, %s413
      %p420 = scmp.eq.s32.totalorder %s33, 1
      %p421 = por %p419, %p420
      %p422 = scmp.ne.s32.totalorder %s413, %s414
      %p423 = scmp.eq.s32.totalorder %s33, 0
      %p424 = por %p422, %p423
      %p425 = scmp.ne.s32.totalorder %s413, %s414
      %p426 = scmp.eq.s32.totalorder %s34, 1
      %p427 = por %p425, %p426
      %p429 = scmp.ne.s32.totalorder %s414, %s428
      %p430 = scmp.eq.s32.totalorder %s34, 0
      %p431 = por %p429, %p430
      %s433 = sadd.s32 %s432, 1
      %p436 = scmp.eq.s32.totalorder %s28, 1
      %p437 = scmp.ne.s32.totalorder %s432, %s434
      %p438 = scmp.eq.s32.totalorder %s28, 0
      %p439 = por %p437, %p438
      %p440 = scmp.ne.s32.totalorder %s432, %s434
      %p441 = scmp.eq.s32.totalorder %s33, 1
      %p442 = por %p440, %p441
      %p443 = scmp.ne.s32.totalorder %s434, %s435
      %p444 = scmp.eq.s32.totalorder %s33, 0
      %p445 = por %p443, %p444
      %p446 = scmp.ne.s32.totalorder %s434, %s435
      %p447 = scmp.eq.s32.totalorder %s34, 1
      %p448 = por %p446, %p447
      %p450 = scmp.ne.s32.totalorder %s435, %s449
      %p451 = scmp.eq.s32.totalorder %s34, 0
      %p452 = por %p450, %p451
      %s454 = sadd.s32 %s453, 1
      %p457 = scmp.eq.s32.totalorder %s28, 1
      %p458 = scmp.ne.s32.totalorder %s453, %s455
      %p459 = scmp.eq.s32.totalorder %s28, 0
      %p460 = por %p458, %p459
      %p461 = scmp.ne.s32.totalorder %s453, %s455
      %p462 = scmp.eq.s32.totalorder %s33, 1
      %p463 = por %p461, %p462
      %p464 = scmp.ne.s32.totalorder %s455, %s456
      %p465 = scmp.eq.s32.totalorder %s33, 0
      %p466 = por %p464, %p465
      %p467 = scmp.ne.s32.totalorder %s455, %s456
      %p468 = scmp.eq.s32.totalorder %s34, 1
      %p469 = por %p467, %p468
      %p471 = scmp.ne.s32.totalorder %s456, %s470
      %p472 = scmp.eq.s32.totalorder %s34, 0
      %p473 = por %p471, %p472
      %p474 = scmp.le.s32.totalorder 1, %s28
      %p475 = scmp.lt.s32.totalorder %s28, 3
      %p476 = pnand %p474, %p475
      %p477 = pneg %p476
      // Predicated region
      $region9: #{forward.1} parent=5 // pred_check
        _
      $region10: #{forward.1} parent=5 // pred_check_branch
        %479 = sbr.rel (%p476) target = $region12
      $region11: #{forward.1} parent=5 // pred_region
        %s480 = ssub.s32 %s28, 1
        // Predicated region
        $region13: #{forward.1} parent=11 // pred_check
          %p481 = pneg %p49
        $region14: #{forward.1} parent=11 // pred_check_branch
          %483 = sbr.rel (%p481) target = $region16
        $region15: #{forward.1} parent=11 // pred_region
          _
        $region16: #{forward.1} parent=11 // pred_fallthru
          _
        // Predicated region
        $region17: #{forward.1} parent=11 // pred_check
          %p484 = pneg %p70
        $region18: #{forward.1} parent=11 // pred_check_branch
          %486 = sbr.rel (%p484) target = $region20
        $region19: #{forward.1} parent=11 // pred_region
          _
        $region20: #{forward.1} parent=11 // pred_fallthru
          _
        // Predicated region
        $region21: #{forward.1} parent=11 // pred_check
          %p487 = pneg %p91
        $region22: #{forward.1} parent=11 // pred_check_branch
          %489 = sbr.rel (%p487) target = $region24
        $region23: #{forward.1} parent=11 // pred_region
          %s491 = ssub.s32 3072, 3072
          %492 = vsyncadd [#allocation4], %s491
          %s493 = sshll.u32 [#allocation3], 4
          %s494 = int_to_ptr.vmem [resolvable:$true] %s493
          %499 = dma.hbm_to_vmem [thread:$0]  %s2, 3072, %s494, [#allocation4], 64, 64, 4
        $region24: #{forward.1} parent=11 // pred_fallthru
          _
        // Predicated region
        $region25: #{forward.1} parent=11 // pred_check
          %p500 = pneg %p424
        $region26: #{forward.1} parent=11 // pred_check_branch
          %502 = sbr.rel (%p500) target = $region28
        $region27: #{forward.1} parent=11 // pred_region
          %s504 = ssub.s32 1024, 1024
          %505 = vsyncadd [#allocation9], %s504
          %s506 = sshll.u32 [#allocation8], 4
          %s507 = int_to_ptr.vmem [resolvable:$true] %s506
          %512 = dma.hbm_to_vmem [thread:$0]  %s15, 1024, %s507, [#allocation9], 64, 64, 4
        $region28: #{forward.1} parent=11 // pred_fallthru
          _
        // Predicated region
        $region29: #{forward.1} parent=11 // pred_check
          %p513 = pneg %p445
        $region30: #{forward.1} parent=11 // pred_check_branch
          %515 = sbr.rel (%p513) target = $region32
        $region31: #{forward.1} parent=11 // pred_region
          _
        $region32: #{forward.1} parent=11 // pred_fallthru
          _
      $region12: #{forward.1} parent=5 // pred_fallthru
        _
      %p516 = scmp.lt.s32.totalorder %s28, 2
      // Predicated region
      $region33: #{forward.1} parent=5 // pred_check
        %p517 = pneg %p516
      $region34: #{forward.1} parent=5 // pred_check_branch
        %519 = sbr.rel (%p517) target = $region36
      $region35: #{forward.1} parent=5 // pred_region
        // Predicated region
        $region37: #{forward.1} parent=35 // pred_check
          %p520 = pneg %p111
        $region38: #{forward.1} parent=35 // pred_check_branch
          %522 = sbr.rel (%p520) target = $region40
        $region39: #{forward.1} parent=35 // pred_region
          %p523 = scmp.lt.s32.totalorder %s28, 1
          %s524 = scalar_select %p523, %s28, 1
          %s525 = smul.addr %s524, 48
          %s526 = smul.addr %s525, 4
          %s527 = scalar_lea.vmem %s3, %s526
        $region40: #{forward.1} parent=35 // pred_fallthru
          _
        // Predicated region
        $region41: #{forward.1} parent=35 // pred_check
          %p528 = pneg %p137
        $region42: #{forward.1} parent=35 // pred_check_branch
          %530 = sbr.rel (%p528) target = $region44
        $region43: #{forward.1} parent=35 // pred_region
          %p531 = scmp.lt.s32.totalorder %s28, 1
          %s532 = scalar_select %p531, %s28, 1
          %s533 = smul.addr %s532, 3
          %s534 = scalar_lea.vmem %s4, %s533
        $region44: #{forward.1} parent=35 // pred_fallthru
          _
        // Predicated region
        $region45: #{forward.1} parent=35 // pred_check
          %p535 = pneg %p163
        $region46: #{forward.1} parent=35 // pred_check_branch
          %537 = sbr.rel (%p535) target = $region48
        $region47: #{forward.1} parent=35 // pred_region
          %s538 = sand.u32 %s28, 1
          %s539 = scalar_lea.sflag [#allocation6], %s538
          %s540 = sand.u32 %s153, 1
          %s541 = smul.addr %s540, 64
          %s542 = scalar_lea.vmem [#allocation5], %s541
          %s544 = ssub.s32 1024, 1024
          %545 = vsyncadd %s539, %s544
          %s546 = smul.addr %s28, 16
          %s547 = smul.addr %s546, 64
          %s548 = scalar_lea.hbm %s5, %s547
          %s549 = sshll.u32 %s542, 4
          %s550 = int_to_ptr.vmem [resolvable:$true] %s549
          %555 = dma.hbm_to_vmem [thread:$0]  %s548, 1024, %s550, %s539, 64, 64, 4
        $region48: #{forward.1} parent=35 // pred_fallthru
          _
        // Predicated region
        $region49: #{forward.1} parent=35 // pred_check
          %p556 = pneg %p189
        $region50: #{forward.1} parent=35 // pred_check_branch
          %558 = sbr.rel (%p556) target = $region52
        $region51: #{forward.1} parent=35 // pred_region
          %p559 = scmp.lt.s32.totalorder %s28, 1
          %s560 = scalar_select %p559, %s28, 1
          %s561 = scalar_lea.vmem %s6, %s560
        $region52: #{forward.1} parent=35 // pred_fallthru
          _
        // Predicated region
        $region53: #{forward.1} parent=35 // pred_check
          %p562 = pneg %p215
        $region54: #{forward.1} parent=35 // pred_check_branch
          %564 = sbr.rel (%p562) target = $region56
        $region55: #{forward.1} parent=35 // pred_region
          %p565 = scmp.lt.s32.totalorder %s28, 1
          %s566 = scalar_select %p565, %s28, 1
          %s567 = scalar_lea.vmem %s7, %s566
        $region56: #{forward.1} parent=35 // pred_fallthru
          _
        // Predicated region
        $region57: #{forward.1} parent=35 // pred_check
          %p568 = pneg %p241
        $region58: #{forward.1} parent=35 // pred_check_branch
          %570 = sbr.rel (%p568) target = $region60
        $region59: #{forward.1} parent=35 // pred_region
          %p571 = scmp.lt.s32.totalorder %s28, 1
          %s572 = scalar_select %p571, %s28, 1
          %s573 = scalar_lea.vmem %s8, %s572
        $region60: #{forward.1} parent=35 // pred_fallthru
          _
        // Predicated region
        $region61: #{forward.1} parent=35 // pred_check
          %p574 = pneg %p267
        $region62: #{forward.1} parent=35 // pred_check_branch
          %576 = sbr.rel (%p574) target = $region64
        $region63: #{forward.1} parent=35 // pred_region
          %p577 = scmp.lt.s32.totalorder %s28, 1
          %s578 = scalar_select %p577, %s28, 1
          %s579 = scalar_lea.vmem %s9, %s578
        $region64: #{forward.1} parent=35 // pred_fallthru
          _
        // Predicated region
        $region65: #{forward.1} parent=35 // pred_check
          %p580 = pneg %p293
        $region66: #{forward.1} parent=35 // pred_check_branch
          %582 = sbr.rel (%p580) target = $region68
        $region67: #{forward.1} parent=35 // pred_region
          %p583 = scmp.lt.s32.totalorder %s28, 1
          %s584 = scalar_select %p583, %s28, 1
          %s585 = scalar_lea.vmem %s10, %s584
        $region68: #{forward.1} parent=35 // pred_fallthru
          _
        // Predicated region
        $region69: #{forward.1} parent=35 // pred_check
          %p586 = pneg %p319
        $region70: #{forward.1} parent=35 // pred_check_branch
          %588 = sbr.rel (%p586) target = $region72
        $region71: #{forward.1} parent=35 // pred_region
          %p589 = scmp.lt.s32.totalorder %s28, 1
          %s590 = scalar_select %p589, %s28, 1
          %s591 = smul.addr %s590, 32
          %s592 = smul.addr %s591, 4
          %s593 = scalar_lea.vmem %s11, %s592
        $region72: #{forward.1} parent=35 // pred_fallthru
          _
        // Predicated region
        $region73: #{forward.1} parent=35 // pred_check
          %p594 = pneg %p345
        $region74: #{forward.1} parent=35 // pred_check_branch
          %596 = sbr.rel (%p594) target = $region76
        $region75: #{forward.1} parent=35 // pred_region
          %p597 = scmp.lt.s32.totalorder %s28, 1
          %s598 = scalar_select %p597, %s28, 1
          %s599 = smul.addr %s598, 2
          %s600 = scalar_lea.vmem %s12, %s599
        $region76: #{forward.1} parent=35 // pred_fallthru
          _
        // Predicated region
        $region77: #{forward.1} parent=35 // pred_check
          %p601 = pneg %p371
        $region78: #{forward.1} parent=35 // pred_check_branch
          %603 = sbr.rel (%p601) target = $region80
        $region79: #{forward.1} parent=35 // pred_region
          %s604 = sand.u32 %s28, 1
          %s605 = scalar_lea.sflag [#allocation6], %s604
          %s606 = sand.u32 %s361, 1
          %s607 = smul.addr %s606, 128
          %s608 = scalar_lea.vmem [#allocation7], %s607
          %s610 = ssub.s32 2048, 2048
          %611 = vsyncadd %s605, %s610
          %s612 = smul.addr %s28, 32
          %s613 = smul.addr %s612, 64
          %s614 = scalar_lea.hbm %s13, %s613
          %s615 = sshll.u32 %s608, 4
          %s616 = int_to_ptr.vmem [resolvable:$true] %s615
          %621 = dma.hbm_to_vmem [thread:$0]  %s614, 2048, %s616, %s605, 64, 64, 4
        $region80: #{forward.1} parent=35 // pred_fallthru
          _
        // Predicated region
        $region81: #{forward.1} parent=35 // pred_check
          %p622 = pneg %p397
        $region82: #{forward.1} parent=35 // pred_check_branch
          %624 = sbr.rel (%p622) target = $region84
        $region83: #{forward.1} parent=35 // pred_region
          %p625 = scmp.lt.s32.totalorder %s28, 1
          %s626 = scalar_select %p625, %s28, 1
          %s627 = scalar_lea.vmem %s14, %s626
        $region84: #{forward.1} parent=35 // pred_fallthru
          _
      $region36: #{forward.1} parent=5 // pred_fallthru
        _
      %p628 = scmp.le.s32.totalorder 1, %s28
      %p629 = scmp.lt.s32.totalorder %s28, 3
      %p630 = pnand %p628, %p629
      %p631 = pneg %p630
      // Predicated region
      $region85: #{forward.1} parent=5 // pred_check
        _
      $region86: #{forward.1} parent=5 // pred_check_branch
        %633 = sbr.rel (%p630) target = $region88
      $region87: #{forward.1} parent=5 // pred_region
        %s634 = ssub.s32 %s28, 1
        // Predicated region
        $region89: #{forward.1} parent=87 // pred_check
          %p635 = pneg %p91
        $region90: #{forward.1} parent=87 // pred_check_branch
          %637 = sbr.rel (%p635) target = $region92
        $region91: #{forward.1} parent=87 // pred_region
          %638 = dma.done [#allocation4], 3072
        $region92: #{forward.1} parent=87 // pred_fallthru
          _
        %s639 = sand.u32 %s33, 1
        %s640 = scalar_lea.sflag [#allocation6], %s639
        %s641 = sand.u32 %s156, 1
        %s642 = smul.addr %s641, 64
        %s643 = scalar_lea.vmem [#allocation5], %s642
        // Predicated region
        $region93: #{forward.1} parent=87 // pred_check
          %p644 = pneg %p169
        $region94: #{forward.1} parent=87 // pred_check_branch
          %646 = sbr.rel (%p644) target = $region96
        $region95: #{forward.1} parent=87 // pred_region
          %647 = dma.done %s640, 1024
        $region96: #{forward.1} parent=87 // pred_fallthru
          _
        %s648 = sand.u32 %s33, 1
        %s649 = scalar_lea.sflag [#allocation6], %s648
        %s650 = sand.u32 %s364, 1
        %s651 = smul.addr %s650, 128
        %s652 = scalar_lea.vmem [#allocation7], %s651
        // Predicated region
        $region97: #{forward.1} parent=87 // pred_check
          %p653 = pneg %p377
        $region98: #{forward.1} parent=87 // pred_check_branch
          %655 = sbr.rel (%p653) target = $region100
        $region99: #{forward.1} parent=87 // pred_region
          %656 = dma.done %s649, 2048
        $region100: #{forward.1} parent=87 // pred_fallthru
          _
        // Predicated region
        $region101: #{forward.1} parent=87 // pred_check
          %p657 = pneg %p424
        $region102: #{forward.1} parent=87 // pred_check_branch
          %659 = sbr.rel (%p657) target = $region104
        $region103: #{forward.1} parent=87 // pred_region
          %660 = dma.done [#allocation9], 1024
        $region104: #{forward.1} parent=87 // pred_fallthru
          _
        %p661 = pneg %p49
        %p662 = pneg %p46
        %p663 = pneg %p70
        %p664 = pneg %p67
        %p665 = pneg %p91
        %p666 = pneg %p88
        %p667 = scmp.lt.s32.totalorder %s33, 1
        %s668 = scalar_select %p667, %s33, 1
        %s669 = smul.addr %s668, 48
        %s670 = smul.addr %s669, 4
        %s671 = scalar_lea.vmem %s3, %s670
        %p672 = pneg %p117
        %p673 = pneg %p114
        %p674 = scmp.lt.s32.totalorder %s33, 1
        %s675 = scalar_select %p674, %s33, 1
        %s676 = smul.addr %s675, 3
        %s677 = scalar_lea.vmem %s4, %s676
        %p678 = pneg %p143
        %p679 = pneg %p140
        %s680 = sand.u32 %s33, 1
        %s681 = scalar_lea.sflag [#allocation6], %s680
        %s682 = sand.u32 %s156, 1
        %s683 = smul.addr %s682, 64
        %s684 = scalar_lea.vmem [#allocation5], %s683
        %p685 = pneg %p169
        %p686 = pneg %p166
        %p687 = scmp.lt.s32.totalorder %s33, 1
        %s688 = scalar_select %p687, %s33, 1
        %s689 = scalar_lea.vmem %s6, %s688
        %p690 = pneg %p195
        %p691 = pneg %p192
        %p692 = scmp.lt.s32.totalorder %s33, 1
        %s693 = scalar_select %p692, %s33, 1
        %s694 = scalar_lea.vmem %s7, %s693
        %p695 = pneg %p221
        %p696 = pneg %p218
        %p697 = scmp.lt.s32.totalorder %s33, 1
        %s698 = scalar_select %p697, %s33, 1
        %s699 = scalar_lea.vmem %s8, %s698
        %p700 = pneg %p247
        %p701 = pneg %p244
        %p702 = scmp.lt.s32.totalorder %s33, 1
        %s703 = scalar_select %p702, %s33, 1
        %s704 = scalar_lea.vmem %s9, %s703
        %p705 = pneg %p273
        %p706 = pneg %p270
        %p707 = scmp.lt.s32.totalorder %s33, 1
        %s708 = scalar_select %p707, %s33, 1
        %s709 = scalar_lea.vmem %s10, %s708
        %p710 = pneg %p299
        %p711 = pneg %p296
        %p712 = scmp.lt.s32.totalorder %s33, 1
        %s713 = scalar_select %p712, %s33, 1
        %s714 = smul.addr %s713, 32
        %s715 = smul.addr %s714, 4
        %s716 = scalar_lea.vmem %s11, %s715
        %p717 = pneg %p325
        %p718 = pneg %p322
        %p719 = scmp.lt.s32.totalorder %s33, 1
        %s720 = scalar_select %p719, %s33, 1
        %s721 = smul.addr %s720, 2
        %s722 = scalar_lea.vmem %s12, %s721
        %p723 = pneg %p351
        %p724 = pneg %p348
        %s725 = sand.u32 %s33, 1
        %s726 = scalar_lea.sflag [#allocation6], %s725
        %s727 = sand.u32 %s364, 1
        %s728 = smul.addr %s727, 128
        %s729 = scalar_lea.vmem [#allocation7], %s728
        %p730 = pneg %p377
        %p731 = pneg %p374
        %p732 = scmp.lt.s32.totalorder %s33, 1
        %s733 = scalar_select %p732, %s33, 1
        %s734 = scalar_lea.vmem %s14, %s733
        %p735 = pneg %p403
        %p736 = pneg %p400
        %p737 = pneg %p424
        %p738 = pneg %p421
        %p739 = pneg %p445
        %p740 = pneg %p442
        %p741 = pneg %p466
        %p742 = pneg %p463
        %p743 = scmp.lt.s32.totalorder %s33, 1
        %s744 = scalar_select %p743, %s33, 1
        %s745 = smul.addr %s744, 48
        %s746 = smul.addr %s745, 4
        %s747 = scalar_lea.vmem %s3, %s746
        %p748 = scmp.lt.s32.totalorder %s33, 1
        %s749 = scalar_select %p748, %s33, 1
        %s750 = smul.addr %s749, 3
        %s751 = scalar_lea.vmem %s4, %s750
        %p752 = scmp.lt.s32.totalorder %s33, 1
        %s753 = scalar_select %p752, %s33, 1
        %s754 = scalar_lea.vmem %s6, %s753
        %p755 = scmp.lt.s32.totalorder %s33, 1
        %s756 = scalar_select %p755, %s33, 1
        %s757 = scalar_lea.vmem %s7, %s756
        %p758 = scmp.lt.s32.totalorder %s33, 1
        %s759 = scalar_select %p758, %s33, 1
        %s760 = scalar_lea.vmem %s8, %s759
        %p761 = scmp.lt.s32.totalorder %s33, 1
        %s762 = scalar_select %p761, %s33, 1
        %s763 = scalar_lea.vmem %s9, %s762
        %p764 = scmp.lt.s32.totalorder %s33, 1
        %s765 = scalar_select %p764, %s33, 1
        %s766 = scalar_lea.vmem %s10, %s765
        %p767 = scmp.lt.s32.totalorder %s33, 1
        %s768 = scalar_select %p767, %s33, 1
        %s769 = smul.addr %s768, 32
        %s770 = smul.addr %s769, 4
        %s771 = scalar_lea.vmem %s11, %s770
        %p772 = scmp.lt.s32.totalorder %s33, 1
        %s773 = scalar_select %p772, %s33, 1
        %s774 = smul.addr %s773, 2
        %s775 = scalar_lea.vmem %s12, %s774
        %p776 = scmp.lt.s32.totalorder %s33, 1
        %s777 = scalar_select %p776, %s33, 1
        %s778 = scalar_lea.vmem %s14, %s777
        %p780 = scmp.eq.s32.totalorder %s33, 0
        // Predicated region
        $region105: #{forward.1} parent=87 // pred_check
          %p781 = pneg %p780
        $region106: #{forward.1} parent=87 // pred_check_branch
          %783 = sbr.rel (%p781) target = $region108
        $region107: #{forward.1} parent=87 // pred_region
          %v784 = vld [vmem:[%s0] sm:$0xff]
          %v785 = vld [vmem:[%s0 + $0x8] sm:$0xff]
          %v786 = vld [vmem:[%s0 + $0x10] sm:$0xff]
          %v787 = vld [vmem:[%s0 + $0x18] sm:$0xff]
          %v788 = vld [vmem:[%s0 + $0x20] sm:$0xff]
          %v789 = vld [vmem:[%s0 + $0x28] sm:$0xff]
          %790 = vst [vmem:[#allocation2] sm:$0xff] %v784
          %791 = vst [vmem:[#allocation2 + $0x8] sm:$0xff] %v785
          %792 = vst [vmem:[#allocation2 + $0x10] sm:$0xff] %v786
          %793 = vst [vmem:[#allocation2 + $0x18] sm:$0xff] %v787
          %794 = vst [vmem:[#allocation2 + $0x20] sm:$0xff] %v788
          %795 = vst [vmem:[#allocation2 + $0x28] sm:$0xff] %v789
        $region108: #{forward.1} parent=87 // pred_fallthru
          _
        %v796 = vld [vmem:[#allocation2] sm:$0xff]
        %v797 = vld [vmem:[#allocation2 + $0x8] sm:$0xff]
        %v798 = vld [vmem:[#allocation2 + $0x10] sm:$0xff]
        %v799 = vld [vmem:[#allocation2 + $0x18] sm:$0xff]
        %v800 = vld [vmem:[#allocation2 + $0x20] sm:$0xff]
        %v801 = vld [vmem:[#allocation2 + $0x28] sm:$0xff]
        %v802 = vld [vmem:[#allocation3] sm:$0xf]
        %v803 = vld [vmem:[#allocation3 + $0x4] sm:$0xf]
        %v804 = vld [vmem:[#allocation3 + $0x8] sm:$0xf]
        %v805 = vld [vmem:[#allocation3 + $0xc] sm:$0xf]
        %v806 = vld [vmem:[#allocation3 + $0x10] sm:$0xf]
        %v807 = vld [vmem:[#allocation3 + $0x14] sm:$0xf]
        %v808 = vld [vmem:[#allocation3 + $0x18] sm:$0xf]
        %v809 = vld [vmem:[#allocation3 + $0x1c] sm:$0xf]
        %v810 = vld [vmem:[#allocation3 + $0x20] sm:$0xf]
        %v811 = vld [vmem:[#allocation3 + $0x24] sm:$0xf]
        %v812 = vld [vmem:[#allocation3 + $0x28] sm:$0xf]
        %v813 = vld [vmem:[#allocation3 + $0x2c] sm:$0xf]
        %v814 = vld [vmem:[#allocation3 + $0x30] sm:$0xf]
        %v815 = vld [vmem:[#allocation3 + $0x34] sm:$0xf]
        %v816 = vld [vmem:[#allocation3 + $0x38] sm:$0xf]
        %v817 = vld [vmem:[#allocation3 + $0x3c] sm:$0xf]
        %v818 = vld [vmem:[#allocation3 + $0x40] sm:$0xf]
        %v819 = vld [vmem:[#allocation3 + $0x44] sm:$0xf]
        %v820 = vld [vmem:[#allocation3 + $0x48] sm:$0xf]
        %v821 = vld [vmem:[#allocation3 + $0x4c] sm:$0xf]
        %v822 = vld [vmem:[#allocation3 + $0x50] sm:$0xf]
        %v823 = vld [vmem:[#allocation3 + $0x54] sm:$0xf]
        %v824 = vld [vmem:[#allocation3 + $0x58] sm:$0xf]
        %v825 = vld [vmem:[#allocation3 + $0x5c] sm:$0xf]
        %v826 = vld [vmem:[#allocation3 + $0x60] sm:$0xf]
        %v827 = vld [vmem:[#allocation3 + $0x64] sm:$0xf]
        %v828 = vld [vmem:[#allocation3 + $0x68] sm:$0xf]
        %v829 = vld [vmem:[#allocation3 + $0x6c] sm:$0xf]
        %v830 = vld [vmem:[#allocation3 + $0x70] sm:$0xf]
        %v831 = vld [vmem:[#allocation3 + $0x74] sm:$0xf]
        %v832 = vld [vmem:[#allocation3 + $0x78] sm:$0xf]
        %v833 = vld [vmem:[#allocation3 + $0x7c] sm:$0xf]
        %v834 = vld [vmem:[#allocation3 + $0x80] sm:$0xf]
        %v835 = vld [vmem:[#allocation3 + $0x84] sm:$0xf]
        %v836 = vld [vmem:[#allocation3 + $0x88] sm:$0xf]
        %v837 = vld [vmem:[#allocation3 + $0x8c] sm:$0xf]
        %v838 = vld [vmem:[#allocation3 + $0x90] sm:$0xf]
        %v839 = vld [vmem:[#allocation3 + $0x94] sm:$0xf]
        %v840 = vld [vmem:[#allocation3 + $0x98] sm:$0xf]
        %v841 = vld [vmem:[#allocation3 + $0x9c] sm:$0xf]
        %v842 = vld [vmem:[#allocation3 + $0xa0] sm:$0xf]
        %v843 = vld [vmem:[#allocation3 + $0xa4] sm:$0xf]
        %v844 = vld [vmem:[#allocation3 + $0xa8] sm:$0xf]
        %v845 = vld [vmem:[#allocation3 + $0xac] sm:$0xf]
        %v846 = vld [vmem:[#allocation3 + $0xb0] sm:$0xf]
        %v847 = vld [vmem:[#allocation3 + $0xb4] sm:$0xf]
        %v848 = vld [vmem:[#allocation3 + $0xb8] sm:$0xf]
        %v849 = vld [vmem:[#allocation3 + $0xbc] sm:$0xf]
        %v850 = vld [vmem:[%s1] sm:$0xff]
        %v851 = vld [vmem:[%s1 + $0x8] sm:$0xff]
        %v852 = vld [vmem:[%s1 + $0x10] sm:$0xff]
        %v853 = vld [vmem:[%s1 + $0x18] sm:$0xff]
        %v854 = vld [vmem:[%s1 + $0x20] sm:$0xff]
        %v855 = vld [vmem:[%s1 + $0x28] sm:$0xff]
        %v856 = vld [vmem:[%s1 + $0x30] sm:$0xff]
        %v857 = vld [vmem:[%s1 + $0x38] sm:$0xff]
        %v858 = vld [vmem:[%s1 + $0x40] sm:$0xff]
        %v859 = vld [vmem:[%s1 + $0x48] sm:$0xff]
        %v860 = vld [vmem:[%s1 + $0x50] sm:$0xff]
        %v861 = vld [vmem:[%s1 + $0x58] sm:$0xff]
        %v862 = vld [vmem:[%s1 + $0x60] sm:$0xff]
        %v863 = vld [vmem:[%s1 + $0x68] sm:$0xff]
        %v864 = vld [vmem:[%s1 + $0x70] sm:$0xff]
        %v865 = vld [vmem:[%s1 + $0x78] sm:$0xff]
        %v866 = vld [vmem:[%s1 + $0x80] sm:$0xff]
        %v867 = vld [vmem:[%s1 + $0x88] sm:$0xff]
        %v868 = vpack.c.bf16 %v797, %v796
        %v869 = vpack.c.bf16 %v799, %v798
        %v870 = vpack.c.bf16 %v801, %v800
        %v871 = vld [vmem:[%s747] sm:$0xff]
        %v872 = vld [vmem:[%s747 + $0x8] sm:$0xf]
        %v873 = vld [vmem:[%s747 + $0xc] sm:$0xff]
        %v874 = vld [vmem:[%s747 + $0x14] sm:$0xf]
        %v875 = vld [vmem:[%s747 + $0x18] sm:$0xff]
        %v876 = vld [vmem:[%s747 + $0x20] sm:$0xf]
        %v877 = vld [vmem:[%s747 + $0x24] sm:$0xff]
        %v878 = vld [vmem:[%s747 + $0x2c] sm:$0xf]
        %v879 = vld [vmem:[%s747 + $0x30] sm:$0xff]
        %v880 = vld [vmem:[%s747 + $0x38] sm:$0xf]
        %v881 = vld [vmem:[%s747 + $0x3c] sm:$0xff]
        %v882 = vld [vmem:[%s747 + $0x44] sm:$0xf]
        %v883 = vld [vmem:[%s747 + $0x48] sm:$0xff]
        %v884 = vld [vmem:[%s747 + $0x50] sm:$0xf]
        %v885 = vld [vmem:[%s747 + $0x54] sm:$0xff]
        %v886 = vld [vmem:[%s747 + $0x5c] sm:$0xf]
        %v887 = vld [vmem:[%s747 + $0x60] sm:$0xff]
        %v888 = vld [vmem:[%s747 + $0x68] sm:$0xf]
        %v889 = vld [vmem:[%s747 + $0x6c] sm:$0xff]
        %v890 = vld [vmem:[%s747 + $0x74] sm:$0xf]
        %v891 = vld [vmem:[%s747 + $0x78] sm:$0xff]
        %v892 = vld [vmem:[%s747 + $0x80] sm:$0xf]
        %v893 = vld [vmem:[%s747 + $0x84] sm:$0xff]
        %v894 = vld [vmem:[%s747 + $0x8c] sm:$0xf]
        %v895 = vld [vmem:[%s747 + $0x90] sm:$0xff]
        %v896 = vld [vmem:[%s747 + $0x98] sm:$0xf]
        %v897 = vld [vmem:[%s747 + $0x9c] sm:$0xff]
        %v898 = vld [vmem:[%s747 + $0xa4] sm:$0xf]
        %v899 = vld [vmem:[%s747 + $0xa8] sm:$0xff]
        %v900 = vld [vmem:[%s747 + $0xb0] sm:$0xf]
        %v901 = vld [vmem:[%s747 + $0xb4] sm:$0xff]
        %v902 = vld [vmem:[%s747 + $0xbc] sm:$0xf]
        %v903 = vld [vmem:[%s751] sm:$0x7]
        %v905 = vlaneseq
        %v906 = vshrl.u32 %v905, 7
        %v907 = vsub.s32 0, %v906
        %v908 = vrot.slane %v903, %v907
        %v909 = vlaneseq
        %v910 = vshrl.u32 %v909, 7
        %v911 = vsub.s32 1, %v910
        %v912 = vrot.slane %v903, %v911
        %v913 = vlaneseq
        %v914 = vshrl.u32 %v913, 7
        %v915 = vsub.s32 2, %v914
        %v916 = vrot.slane %v903, %v915
        %v952 = vunpack.c.l.b16 %v871
        %v953 = vunpack.c.h.b16 %v871
        %v954 = vunpack.c.l.b16 %v872
        %v955 = vunpack.c.l.b16 %v873
        %v956 = vunpack.c.h.b16 %v873
        %v957 = vunpack.c.l.b16 %v874
        %v958 = vunpack.c.l.b16 %v875
        %v959 = vunpack.c.h.b16 %v875
        %v960 = vunpack.c.l.b16 %v876
        %v961 = vunpack.c.l.b16 %v877
        %v962 = vunpack.c.h.b16 %v877
        %v963 = vunpack.c.l.b16 %v878
        %v964 = vunpack.c.l.b16 %v879
        %v965 = vunpack.c.h.b16 %v879
        %v966 = vunpack.c.l.b16 %v880
        %v967 = vunpack.c.l.b16 %v881
        %v968 = vunpack.c.h.b16 %v881
        %v969 = vunpack.c.l.b16 %v882
        %v970 = vunpack.c.l.b16 %v883
        %v971 = vunpack.c.h.b16 %v883
        %v972 = vunpack.c.l.b16 %v884
        %v973 = vunpack.c.l.b16 %v885
        %v974 = vunpack.c.h.b16 %v885
        %v975 = vunpack.c.l.b16 %v886
        %v976 = vunpack.c.l.b16 %v887
        %v977 = vunpack.c.h.b16 %v887
        %v978 = vunpack.c.l.b16 %v888
        %v979 = vunpack.c.l.b16 %v889
        %v980 = vunpack.c.h.b16 %v889
        %v981 = vunpack.c.l.b16 %v890
        %v982 = vunpack.c.l.b16 %v891
        %v983 = vunpack.c.h.b16 %v891
        %v984 = vunpack.c.l.b16 %v892
        %v985 = vunpack.c.l.b16 %v893
        %v986 = vunpack.c.h.b16 %v893
        %v987 = vunpack.c.l.b16 %v894
        %v988 = vunpack.c.l.b16 %v895
        %v989 = vunpack.c.h.b16 %v895
        %v990 = vunpack.c.l.b16 %v896
        %v991 = vunpack.c.l.b16 %v897
        %v992 = vunpack.c.h.b16 %v897
        %v993 = vunpack.c.l.b16 %v898
        %v994 = vunpack.c.l.b16 %v899
        %v995 = vunpack.c.h.b16 %v899
        %v996 = vunpack.c.l.b16 %v900
        %v997 = vunpack.c.l.b16 %v901
        %v998 = vunpack.c.h.b16 %v901
        %v999 = vunpack.c.l.b16 %v902
        %v1000 = vpack.c.b16 %v955, %v952
        %v1001 = vpack.c.b16 %v956, %v953
        %v1002 = vpack.c.b16 %v957, %v954
        %v1003 = vpack.c.b16 %v961, %v958
        %v1004 = vpack.c.b16 %v962, %v959
        %v1005 = vpack.c.b16 %v963, %v960
        %v1006 = vpack.c.b16 %v967, %v964
        %v1007 = vpack.c.b16 %v968, %v965
        %v1008 = vpack.c.b16 %v969, %v966
        %v1009 = vpack.c.b16 %v973, %v970
        %v1010 = vpack.c.b16 %v974, %v971
        %v1011 = vpack.c.b16 %v975, %v972
        %v1012 = vpack.c.b16 %v979, %v976
        %v1013 = vpack.c.b16 %v980, %v977
        %v1014 = vpack.c.b16 %v981, %v978
        %v1015 = vpack.c.b16 %v985, %v982
        %v1016 = vpack.c.b16 %v986, %v983
        %v1017 = vpack.c.b16 %v987, %v984
        %v1018 = vpack.c.b16 %v991, %v988
        %v1019 = vpack.c.b16 %v992, %v989
        %v1020 = vpack.c.b16 %v993, %v990
        %v1021 = vpack.c.b16 %v997, %v994
        %v1022 = vpack.c.b16 %v998, %v995
        %v1023 = vpack.c.b16 %v999, %v996
        %1048 = vmatprep.subr.bf16.mxu0 %v1001
        %1049 = vmatpush1.bf16.msra.mxu0 %v1000
        %1050 = vmatprep.subr.bf16.mxu0 %v1004
        %1051 = vmatpush1.bf16.msra.mxu0 %v1003
        %1052 = vmatprep.subr.bf16.mxu0 %v1007
        %1053 = vmatpush1.bf16.msra.mxu0 %v1006
        %1054 = vmatprep.subr.bf16.mxu0 %v1010
        %1055 = vmatpush1.bf16.msra.mxu0 %v1009
        %1056 = vmatprep.subr.bf16.mxu0 %v1013
        %1057 = vmatpush1.bf16.msra.mxu0 %v1012
        %1058 = vmatprep.subr.bf16.mxu0 %v1016
        %1059 = vmatpush1.bf16.msra.mxu0 %v1015
        %1060 = vmatprep.subr.bf16.mxu0 %v1019
        %1061 = vmatpush1.bf16.msra.mxu0 %v1018
        %1062 = vmatprep.subr.bf16.mxu0 %v1022
        %1063 = vmatpush1.bf16.msra.mxu0 %v1021
        %1064 = vmatprep.subr.bf16.mxu0 0
        %1065 = vmatpush1.bf16.msra.mxu0 0
        %1066 = vmatprep.subr.bf16.mxu0 0
        %1067 = vmatpush1.bf16.msra.mxu0 0
        %1068 = vmatprep.subr.bf16.mxu0 0
        %1069 = vmatpush1.bf16.msra.mxu0 0
        %1070 = vmatprep.subr.bf16.mxu0 0
        %1071 = vmatpush1.bf16.msra.mxu0 0
        %1072 = vmatprep.subr.bf16.mxu0 0
        %1073 = vmatpush1.bf16.msra.mxu0 0
        %1074 = vmatprep.subr.bf16.mxu0 0
        %1075 = vmatpush1.bf16.msra.mxu0 0
        %1076 = vmatprep.subr.bf16.mxu0 0
        %1077 = vmatpush1.bf16.msra.mxu0 0
        %1078 = vmatprep.subr.bf16.mxu0 0
        %1079 = vmatpush1.bf16.msra.mxu0 0
        %1080 = vmatprep.mubr.bf16.mxu0 0
        %1081 = vmatmul.mubr.bf16.gmra.mrb[0].mxu0 %v868
        %v1082 = vpop.f32.mrb[0].mxu0
        %v1083 = vadd.f32 %v908, %v1082
        %v1084 = vpop.f32.mrb[0].mxu0
        %v1085 = vadd.f32 %v912, %v1084
        %v1086 = vpop.f32.mrb[0].mxu0
        %v1087 = vadd.f32 %v908, %v1086
        %v1088 = vpop.f32.mrb[0].mxu0
        %v1089 = vadd.f32 %v912, %v1088
        %1090 = vmatprep.mubr.bf16.mxu0 0
        %1091 = vmatmul.mubr.bf16.gmra.mrb[0].mxu0 %v869
        %v1092 = vpop.f32.mrb[0].mxu0
        %v1093 = vadd.f32 %v908, %v1092
        %v1094 = vpop.f32.mrb[0].mxu0
        %v1095 = vadd.f32 %v912, %v1094
        %v1096 = vpop.f32.mrb[0].mxu0
        %v1097 = vadd.f32 %v908, %v1096
        %v1098 = vpop.f32.mrb[0].mxu0
        %v1099 = vadd.f32 %v912, %v1098
        %1100 = vmatprep.mubr.bf16.mxu0 0
        %1101 = vmatmul.mubr.bf16.gmra.mrb[0].mxu0 %v870
        %v1102 = vpop.f32.mrb[0].mxu0
        %v1103 = vadd.f32 %v908, %v1102
        %v1104 = vpop.f32.mrb[0].mxu0
        %v1105 = vadd.f32 %v912, %v1104
        %v1106 = vpop.f32.mrb[0].mxu0
        %v1107 = vadd.f32 %v908, %v1106
        %v1108 = vpop.f32.mrb[0].mxu0
        %v1109 = vadd.f32 %v912, %v1108
        %1110 = vdwg.mxu0
        %1111 = vmatprep.subr.bf16.mxu0 0
        %1112 = vmatpush1.bf16.msra.mxu0 %v1002
        %1113 = vmatprep.subr.bf16.mxu0 0
        %1114 = vmatpush1.bf16.msra.mxu0 %v1005
        %1115 = vmatprep.subr.bf16.mxu0 0
        %1116 = vmatpush1.bf16.msra.mxu0 %v1008
        %1117 = vmatprep.subr.bf16.mxu0 0
        %1118 = vmatpush1.bf16.msra.mxu0 %v1011
        %1119 = vmatprep.subr.bf16.mxu0 0
        %1120 = vmatpush1.bf16.msra.mxu0 %v1014
        %1121 = vmatprep.subr.bf16.mxu0 0
        %1122 = vmatpush1.bf16.msra.mxu0 %v1017
        %1123 = vmatprep.subr.bf16.mxu0 0
        %1124 = vmatpush1.bf16.msra.mxu0 %v1020
        %1125 = vmatprep.subr.bf16.mxu0 0
        %1126 = vmatpush1.bf16.msra.mxu0 %v1023
        %1127 = vmatprep.subr.bf16.mxu0 0
        %1128 = vmatpush1.bf16.msra.mxu0 0
        %1129 = vmatprep.subr.bf16.mxu0 0
        %1130 = vmatpush1.bf16.msra.mxu0 0
        %1131 = vmatprep.subr.bf16.mxu0 0
        %1132 = vmatpush1.bf16.msra.mxu0 0
        %1133 = vmatprep.subr.bf16.mxu0 0
        %1134 = vmatpush1.bf16.msra.mxu0 0
        %1135 = vmatprep.subr.bf16.mxu0 0
        %1136 = vmatpush1.bf16.msra.mxu0 0
        %1137 = vmatprep.subr.bf16.mxu0 0
        %1138 = vmatpush1.bf16.msra.mxu0 0
        %1139 = vmatprep.subr.bf16.mxu0 0
        %1140 = vmatpush1.bf16.msra.mxu0 0
        %1141 = vmatprep.subr.bf16.mxu0 0
        %1142 = vmatpush1.bf16.msra.mxu0 0
        %1143 = vmatprep.mubr.bf16.mxu0 0
        %1144 = vmatmul.mubr.bf16.gmra.mrb[0].mxu0 %v868
        %v1145 = vpop.f32.mrb[0].mxu0
        %v1146 = vadd.f32 %v916, %v1145
        %v1147 = vpop.f32.mrb[0].mxu0
        %v1148 = vpop.f32.mrb[0].mxu0
        %v1149 = vadd.f32 %v916, %v1148
        %v1150 = vpop.f32.mrb[0].mxu0
        %1151 = vmatprep.mubr.bf16.mxu0 0
        %1152 = vmatmul.mubr.bf16.gmra.mrb[0].mxu0 %v869
        %v1153 = vpop.f32.mrb[0].mxu0
        %v1154 = vadd.f32 %v916, %v1153
        %v1155 = vpop.f32.mrb[0].mxu0
        %v1156 = vpop.f32.mrb[0].mxu0
        %v1157 = vadd.f32 %v916, %v1156
        %v1158 = vpop.f32.mrb[0].mxu0
        %1159 = vmatprep.mubr.bf16.mxu0 0
        %1160 = vmatmul.mubr.bf16.gmra.mrb[0].mxu0 %v870
        %v1161 = vpop.f32.mrb[0].mxu0
        %v1162 = vadd.f32 %v916, %v1161
        %v1163 = vpop.f32.mrb[0].mxu0
        %v1164 = vpop.f32.mrb[0].mxu0
        %v1165 = vadd.f32 %v916, %v1164
        %v1166 = vpop.f32.mrb[0].mxu0
        %1167 = vdwg.mxu0
        %v1168 = vpack.c.bf16 %v1087, %v1083
        %v1169 = vpack.c.bf16 %v1097, %v1093
        %v1170 = vpack.c.bf16 %v1107, %v1103
        %v1171 = vpack.c.bf16 %v1089, %v1085
        %v1172 = vpack.c.bf16 %v1099, %v1095
        %v1173 = vpack.c.bf16 %v1109, %v1105
        %v1174 = vpack.c.bf16 %v1149, %v1146
        %v1175 = vpack.c.bf16 %v1157, %v1154
        %v1176 = vpack.c.bf16 %v1165, %v1162
        %v1225 = vunpack.c.l.b16 %v802
        %v1226 = vunpack.c.l.b16 %v803
        %v1227 = vunpack.c.l.b16 %v804
        %v1228 = vunpack.c.l.b16 %v805
        %v1229 = vunpack.c.l.b16 %v806
        %v1230 = vunpack.c.l.b16 %v807
        %v1231 = vunpack.c.l.b16 %v808
        %v1232 = vunpack.c.l.b16 %v809
        %v1233 = vunpack.c.l.b16 %v810
        %v1234 = vunpack.c.l.b16 %v811
        %v1235 = vunpack.c.l.b16 %v812
        %v1236 = vunpack.c.l.b16 %v813
        %v1237 = vunpack.c.l.b16 %v814
        %v1238 = vunpack.c.l.b16 %v815
        %v1239 = vunpack.c.l.b16 %v816
        %v1240 = vunpack.c.l.b16 %v817
        %v1241 = vunpack.c.l.b16 %v818
        %v1242 = vunpack.c.l.b16 %v819
        %v1243 = vunpack.c.l.b16 %v820
        %v1244 = vunpack.c.l.b16 %v821
        %v1245 = vunpack.c.l.b16 %v822
        %v1246 = vunpack.c.l.b16 %v823
        %v1247 = vunpack.c.l.b16 %v824
        %v1248 = vunpack.c.l.b16 %v825
        %v1249 = vunpack.c.l.b16 %v826
        %v1250 = vunpack.c.l.b16 %v827
        %v1251 = vunpack.c.l.b16 %v828
        %v1252 = vunpack.c.l.b16 %v829
        %v1253 = vunpack.c.l.b16 %v830
        %v1254 = vunpack.c.l.b16 %v831
        %v1255 = vunpack.c.l.b16 %v832
        %v1256 = vunpack.c.l.b16 %v833
        %v1257 = vunpack.c.l.b16 %v834
        %v1258 = vunpack.c.l.b16 %v835
        %v1259 = vunpack.c.l.b16 %v836
        %v1260 = vunpack.c.l.b16 %v837
        %v1261 = vunpack.c.l.b16 %v838
        %v1262 = vunpack.c.l.b16 %v839
        %v1263 = vunpack.c.l.b16 %v840
        %v1264 = vunpack.c.l.b16 %v841
        %v1265 = vunpack.c.l.b16 %v842
        %v1266 = vunpack.c.l.b16 %v843
        %v1267 = vunpack.c.l.b16 %v844
        %v1268 = vunpack.c.l.b16 %v845
        %v1269 = vunpack.c.l.b16 %v846
        %v1270 = vunpack.c.l.b16 %v847
        %v1271 = vunpack.c.l.b16 %v848
        %v1272 = vunpack.c.l.b16 %v849
        %v1273 = vpack.c.b16 %v1226, %v1225
        %v1274 = vpack.c.b16 %v1228, %v1227
        %v1275 = vpack.c.b16 %v1230, %v1229
        %v1276 = vpack.c.b16 %v1232, %v1231
        %v1277 = vpack.c.b16 %v1234, %v1233
        %v1278 = vpack.c.b16 %v1236, %v1235
        %v1279 = vpack.c.b16 %v1238, %v1237
        %v1280 = vpack.c.b16 %v1240, %v1239
        %v1281 = vpack.c.b16 %v1242, %v1241
        %v1282 = vpack.c.b16 %v1244, %v1243
        %v1283 = vpack.c.b16 %v1246, %v1245
        %v1284 = vpack.c.b16 %v1248, %v1247
        %v1285 = vpack.c.b16 %v1250, %v1249
        %v1286 = vpack.c.b16 %v1252, %v1251
        %v1287 = vpack.c.b16 %v1254, %v1253
        %v1288 = vpack.c.b16 %v1256, %v1255
        %v1289 = vpack.c.b16 %v1258, %v1257
        %v1290 = vpack.c.b16 %v1260, %v1259
        %v1291 = vpack.c.b16 %v1262, %v1261
        %v1292 = vpack.c.b16 %v1264, %v1263
        %v1293 = vpack.c.b16 %v1266, %v1265
        %v1294 = vpack.c.b16 %v1268, %v1267
        %v1295 = vpack.c.b16 %v1270, %v1269
        %v1296 = vpack.c.b16 %v1272, %v1271
        %v1321 = vmul.bf16 %v1171, %v1273
        %v1322 = vmul.bf16 %v1172, %v1274
        %v1323 = vmul.bf16 %v1173, %v1275
        %v1324 = vmul.bf16 %v1171, %v1276
        %v1325 = vmul.bf16 %v1172, %v1277
        %v1326 = vmul.bf16 %v1173, %v1278
        %v1327 = vmul.bf16 %v1171, %v1279
        %v1328 = vmul.bf16 %v1172, %v1280
        %v1329 = vmul.bf16 %v1173, %v1281
        %v1330 = vmul.bf16 %v1171, %v1282
        %v1331 = vmul.bf16 %v1172, %v1283
        %v1332 = vmul.bf16 %v1173, %v1284
        %v1333 = vmul.bf16 %v1171, %v1285
        %v1334 = vmul.bf16 %v1172, %v1286
        %v1335 = vmul.bf16 %v1173, %v1287
        %v1336 = vmul.bf16 %v1171, %v1288
        %v1337 = vmul.bf16 %v1172, %v1289
        %v1338 = vmul.bf16 %v1173, %v1290
        %v1339 = vmul.bf16 %v1171, %v1291
        %v1340 = vmul.bf16 %v1172, %v1292
        %v1341 = vmul.bf16 %v1173, %v1293
        %v1342 = vmul.bf16 %v1171, %v1294
        %v1343 = vmul.bf16 %v1172, %v1295
        %v1344 = vmul.bf16 %v1173, %v1296
        %v1345 = vmul.bf16 %v1174, %v1273
        %v1346 = vmul.bf16 %v1175, %v1274
        %v1347 = vmul.bf16 %v1176, %v1275
        %v1348 = vmul.bf16 %v1174, %v1276
        %v1349 = vmul.bf16 %v1175, %v1277
        %v1350 = vmul.bf16 %v1176, %v1278
        %v1351 = vmul.bf16 %v1174, %v1279
        %v1352 = vmul.bf16 %v1175, %v1280
        %v1353 = vmul.bf16 %v1176, %v1281
        %v1354 = vmul.bf16 %v1174, %v1282
        %v1355 = vmul.bf16 %v1175, %v1283
        %v1356 = vmul.bf16 %v1176, %v1284
        %v1357 = vmul.bf16 %v1174, %v1285
        %v1358 = vmul.bf16 %v1175, %v1286
        %v1359 = vmul.bf16 %v1176, %v1287
        %v1360 = vmul.bf16 %v1174, %v1288
        %v1361 = vmul.bf16 %v1175, %v1289
        %v1362 = vmul.bf16 %v1176, %v1290
        %v1363 = vmul.bf16 %v1174, %v1291
        %v1364 = vmul.bf16 %v1175, %v1292
        %v1365 = vmul.bf16 %v1176, %v1293
        %v1366 = vmul.bf16 %v1174, %v1294
        %v1367 = vmul.bf16 %v1175, %v1295
        %v1368 = vmul.bf16 %v1176, %v1296
        %1369 = vmatprep.subr.bf16.mxu0 0
        %1370 = vmatpush1.bf16.xpose.msra.mxu0 %v1321
        %1371 = vmatprep.subr.bf16.mxu0 0
        %1372 = vmatpush1.bf16.xpose.msra.mxu0 %v1322
        %1373 = vmatprep.subr.bf16.mxu0 0
        %1374 = vmatpush1.bf16.xpose.msra.mxu0 %v1323
        %1375 = vmatprep.subr.bf16.mxu0 0
        %1376 = vmatpush1.bf16.xpose.msra.mxu0 %v1324
        %1377 = vmatprep.subr.bf16.mxu0 0
        %1378 = vmatpush1.bf16.xpose.msra.mxu0 %v1325
        %1379 = vmatprep.subr.bf16.mxu0 0
        %1380 = vmatpush1.bf16.xpose.msra.mxu0 %v1326
        %1381 = vmatprep.subr.bf16.mxu0 0
        %1382 = vmatpush1.bf16.xpose.msra.mxu0 %v1327
        %1383 = vmatprep.subr.bf16.mxu0 0
        %1384 = vmatpush1.bf16.xpose.msra.mxu0 %v1328
        %1385 = vmatprep.subr.bf16.mxu0 0
        %1386 = vmatpush1.bf16.xpose.msra.mxu0 %v1329
        %1387 = vmatprep.subr.bf16.mxu0 0
        %1388 = vmatpush1.bf16.xpose.msra.mxu0 %v1330
        %1389 = vmatprep.subr.bf16.mxu0 0
        %1390 = vmatpush1.bf16.xpose.msra.mxu0 %v1331
        %1391 = vmatprep.subr.bf16.mxu0 0
        %1392 = vmatpush1.bf16.xpose.msra.mxu0 %v1332
        %1393 = vmatprep.subr.bf16.mxu0 0
        %1394 = vmatpush1.bf16.xpose.msra.mxu0 %v1333
        %1395 = vmatprep.subr.bf16.mxu0 0
        %1396 = vmatpush1.bf16.xpose.msra.mxu0 %v1334
        %1397 = vmatprep.subr.bf16.mxu0 0
        %1398 = vmatpush1.bf16.xpose.msra.mxu0 %v1335
        %1399 = vmatprep.subr.bf16.mxu0 0
        %1400 = vmatpush1.bf16.xpose.msra.mxu0 %v1336
        %1401 = vmatprep.mubr.bf16.mxu0 0
        %1402 = vmatmul.mubr.bf16.gmra.mrb[0].mxu0 %v1168
        %v1403 = vpop.f32.mrb[0].mxu0
        %v1404 = vadd.f32 0.0, %v1403
        %v1405 = vpop.f32.mrb[0].mxu0
        %v1406 = vadd.f32 0.0, %v1405
        %v1407 = vpop.f32.mrb[0].mxu0
        %v1408 = vadd.f32 0.0, %v1407
        %v1409 = vpop.f32.mrb[0].mxu0
        %v1410 = vadd.f32 0.0, %v1409
        %1411 = vmatprep.mubr.bf16.mxu0 0
        %1412 = vmatmul.mubr.bf16.gmra.mrb[0].mxu0 %v1169
        %v1413 = vpop.f32.mrb[0].mxu0
        %v1414 = vadd.f32 0.0, %v1413
        %v1415 = vpop.f32.mrb[0].mxu0
        %v1416 = vadd.f32 0.0, %v1415
        %v1417 = vpop.f32.mrb[0].mxu0
        %v1418 = vadd.f32 0.0, %v1417
        %v1419 = vpop.f32.mrb[0].mxu0
        %v1420 = vadd.f32 0.0, %v1419
        %1421 = vmatprep.mubr.bf16.mxu0 0
        %1422 = vmatmul.mubr.bf16.gmra.mrb[0].mxu0 %v1170
        %v1423 = vpop.f32.mrb[0].mxu0
        %v1424 = vadd.f32 0.0, %v1423
        %v1425 = vpop.f32.mrb[0].mxu0
        %v1426 = vadd.f32 0.0, %v1425
        %v1427 = vpop.f32.mrb[0].mxu0
        %v1428 = vadd.f32 0.0, %v1427
        %v1429 = vpop.f32.mrb[0].mxu0
        %v1430 = vadd.f32 0.0, %v1429
        %1431 = vdwg.mxu0
        %1432 = vmatprep.subr.bf16.mxu0 0
        %1433 = vmatpush1.bf16.xpose.msra.mxu0 %v1337
        %1434 = vmatprep.subr.bf16.mxu0 0
        %1435 = vmatpush1.bf16.xpose.msra.mxu0 %v1338
        %1436 = vmatprep.subr.bf16.mxu0 0
        %1437 = vmatpush1.bf16.xpose.msra.mxu0 %v1339
        %1438 = vmatprep.subr.bf16.mxu0 0
        %1439 = vmatpush1.bf16.xpose.msra.mxu0 %v1340
        %1440 = vmatprep.subr.bf16.mxu0 0
        %1441 = vmatpush1.bf16.xpose.msra.mxu0 %v1341
        %1442 = vmatprep.subr.bf16.mxu0 0
        %1443 = vmatpush1.bf16.xpose.msra.mxu0 %v1342
        %1444 = vmatprep.subr.bf16.mxu0 0
        %1445 = vmatpush1.bf16.xpose.msra.mxu0 %v1343
        %1446 = vmatprep.subr.bf16.mxu0 0
        %1447 = vmatpush1.bf16.xpose.msra.mxu0 %v1344
        %1448 = vmatprep.subr.bf16.mxu0 0
        %1449 = vmatpush1.bf16.xpose.msra.mxu0 0
        %1450 = vmatprep.subr.bf16.mxu0 0
        %1451 = vmatpush1.bf16.xpose.msra.mxu0 0
        %1452 = vmatprep.subr.bf16.mxu0 0
        %1453 = vmatpush1.bf16.xpose.msra.mxu0 0
        %1454 = vmatprep.subr.bf16.mxu0 0
        %1455 = vmatpush1.bf16.xpose.msra.mxu0 0
        %1456 = vmatprep.subr.bf16.mxu0 0
        %1457 = vmatpush1.bf16.xpose.msra.mxu0 0
        %1458 = vmatprep.subr.bf16.mxu0 0
        %1459 = vmatpush1.bf16.xpose.msra.mxu0 0
        %1460 = vmatprep.subr.bf16.mxu0 0
        %1461 = vmatpush1.bf16.xpose.msra.mxu0 0
        %1462 = vmatprep.subr.bf16.mxu0 0
        %1463 = vmatpush1.bf16.xpose.msra.mxu0 0
        %1464 = vmatprep.mubr.bf16.mxu0 0
        %1465 = vmatmul.mubr.bf16.gmra.mrb[0].mxu0 %v1168
        %v1466 = vpop.f32.mrb[0].mxu0
        %v1467 = vadd.f32 0.0, %v1466
        %v1468 = vpop.f32.mrb[0].mxu0
        %v1469 = vpop.f32.mrb[0].mxu0
        %v1470 = vadd.f32 0.0, %v1469
        %v1471 = vpop.f32.mrb[0].mxu0
        %1472 = vmatprep.mubr.bf16.mxu0 0
        %1473 = vmatmul.mubr.bf16.gmra.mrb[0].mxu0 %v1169
        %v1474 = vpop.f32.mrb[0].mxu0
        %v1475 = vadd.f32 0.0, %v1474
        %v1476 = vpop.f32.mrb[0].mxu0
        %v1477 = vpop.f32.mrb[0].mxu0
        %v1478 = vadd.f32 0.0, %v1477
        %v1479 = vpop.f32.mrb[0].mxu0
        %1480 = vmatprep.mubr.bf16.mxu0 0
        %1481 = vmatmul.mubr.bf16.gmra.mrb[0].mxu0 %v1170
        %v1482 = vpop.f32.mrb[0].mxu0
        %v1483 = vadd.f32 0.0, %v1482
        %v1484 = vpop.f32.mrb[0].mxu0
        %v1485 = vpop.f32.mrb[0].mxu0
        %v1486 = vadd.f32 0.0, %v1485
        %v1487 = vpop.f32.mrb[0].mxu0
        %1488 = vdwg.mxu0
        %v1489 = vmul.f32 %v1404, 0.25
        %v1490 = vmul.f32 %v1406, 0.25
        %v1491 = vmul.f32 %v1467, 0.25
        %v1492 = vmul.f32 %v1408, 0.25
        %v1493 = vmul.f32 %v1410, 0.25
        %v1494 = vmul.f32 %v1470, 0.25
        %v1495 = vmul.f32 %v1414, 0.25
        %v1496 = vmul.f32 %v1416, 0.25
        %v1497 = vmul.f32 %v1475, 0.25
        %v1498 = vmul.f32 %v1418, 0.25
        %v1499 = vmul.f32 %v1420, 0.25
        %v1500 = vmul.f32 %v1478, 0.25
        %v1501 = vmul.f32 %v1424, 0.25
        %v1502 = vmul.f32 %v1426, 0.25
        %v1503 = vmul.f32 %v1483, 0.25
        %v1504 = vmul.f32 %v1428, 0.25
        %v1505 = vmul.f32 %v1430, 0.25
        %v1506 = vmul.f32 %v1486, 0.25
        %v1507 = vadd.f32 %v1489, %v850
        %v1508 = vadd.f32 %v1490, %v851
        %v1509 = vadd.f32 %v1491, %v852
        %v1510 = vadd.f32 %v1492, %v853
        %v1511 = vadd.f32 %v1493, %v854
        %v1512 = vadd.f32 %v1494, %v855
        %v1513 = vadd.f32 %v1495, %v856
        %v1514 = vadd.f32 %v1496, %v857
        %v1515 = vadd.f32 %v1497, %v858
        %v1516 = vadd.f32 %v1498, %v859
        %v1517 = vadd.f32 %v1499, %v860
        %v1518 = vadd.f32 %v1500, %v861
        %v1519 = vadd.f32 %v1501, %v862
        %v1520 = vadd.f32 %v1502, %v863
        %v1521 = vadd.f32 %v1503, %v864
        %v1522 = vadd.f32 %v1504, %v865
        %v1523 = vadd.f32 %v1505, %v866
        %v1524 = vadd.f32 %v1506, %v867
        %v1525 = vmax.f32 %v1507, %v1508
        %v1526 = vmax.f32 %v1525, %v1509
        %1527 = vmax.xlane.f32.xlu0 %v1526
        %v1528 = vpop.xlane.xlu0 %1527
        %v1529 = vmax.f32 %v1510, %v1511
        %v1530 = vmax.f32 %v1529, %v1512
        %1531 = vmax.xlane.f32.xlu0 %v1530
        %v1532 = vpop.xlane.xlu0 %1531
        %v1533 = vmax.f32 %v1513, %v1514
        %v1534 = vmax.f32 %v1533, %v1515
        %1535 = vmax.xlane.f32.xlu0 %v1534
        %v1536 = vpop.xlane.xlu0 %1535
        %v1537 = vmax.f32 %v1516, %v1517
        %v1538 = vmax.f32 %v1537, %v1518
        %1539 = vmax.xlane.f32.xlu0 %v1538
        %v1540 = vpop.xlane.xlu0 %1539
        %v1541 = vmax.f32 %v1519, %v1520
        %v1542 = vmax.f32 %v1541, %v1521
        %1543 = vmax.xlane.f32.xlu0 %v1542
        %v1544 = vpop.xlane.xlu0 %1543
        %v1545 = vmax.f32 %v1522, %v1523
        %v1546 = vmax.f32 %v1545, %v1524
        %1547 = vmax.xlane.f32.xlu0 %v1546
        %v1548 = vpop.xlane.xlu0 %1547
        %v1549 = vsub.f32 %v1507, %v1528
        %v1550 = vsub.f32 %v1508, %v1528
        %v1551 = vsub.f32 %v1509, %v1528
        %v1552 = vsub.f32 %v1510, %v1532
        %v1553 = vsub.f32 %v1511, %v1532
        %v1554 = vsub.f32 %v1512, %v1532
        %v1555 = vsub.f32 %v1513, %v1536
        %v1556 = vsub.f32 %v1514, %v1536
        %v1557 = vsub.f32 %v1515, %v1536
        %v1558 = vsub.f32 %v1516, %v1540
        %v1559 = vsub.f32 %v1517, %v1540
        %v1560 = vsub.f32 %v1518, %v1540
        %v1561 = vsub.f32 %v1519, %v1544
        %v1562 = vsub.f32 %v1520, %v1544
        %v1563 = vsub.f32 %v1521, %v1544
        %v1564 = vsub.f32 %v1522, %v1548
        %v1565 = vsub.f32 %v1523, %v1548
        %v1566 = vsub.f32 %v1524, %v1548
        %v1567 = vmul.f32 %v1549, 1.442695
        %v1568 = vpow.pop %v1567
        %v1569 = vmul.f32 %v1550, 1.442695
        %v1570 = vpow.pop %v1569
        %v1571 = vmul.f32 %v1551, 1.442695
        %v1572 = vpow.pop %v1571
        %v1573 = vmul.f32 %v1552, 1.442695
        %v1574 = vpow.pop %v1573
        %v1575 = vmul.f32 %v1553, 1.442695
        %v1576 = vpow.pop %v1575
        %v1577 = vmul.f32 %v1554, 1.442695
        %v1578 = vpow.pop %v1577
        %v1579 = vmul.f32 %v1555, 1.442695
        %v1580 = vpow.pop %v1579
        %v1581 = vmul.f32 %v1556, 1.442695
        %v1582 = vpow.pop %v1581
        %v1583 = vmul.f32 %v1557, 1.442695
        %v1584 = vpow.pop %v1583
        %v1585 = vmul.f32 %v1558, 1.442695
        %v1586 = vpow.pop %v1585
        %v1587 = vmul.f32 %v1559, 1.442695
        %v1588 = vpow.pop %v1587
        %v1589 = vmul.f32 %v1560, 1.442695
        %v1590 = vpow.pop %v1589
        %v1591 = vmul.f32 %v1561, 1.442695
        %v1592 = vpow.pop %v1591
        %v1593 = vmul.f32 %v1562, 1.442695
        %v1594 = vpow.pop %v1593
        %v1595 = vmul.f32 %v1563, 1.442695
        %v1596 = vpow.pop %v1595
        %v1597 = vmul.f32 %v1564, 1.442695
        %v1598 = vpow.pop %v1597
        %v1599 = vmul.f32 %v1565, 1.442695
        %v1600 = vpow.pop %v1599
        %v1601 = vmul.f32 %v1566, 1.442695
        %v1602 = vpow.pop %v1601
        %v1603 = vpack.c.bf16 %v1574, %v1568
        %v1604 = vpack.c.bf16 %v1576, %v1570
        %v1605 = vpack.c.bf16 %v1578, %v1572
        %v1606 = vpack.c.bf16 %v1586, %v1580
        %v1607 = vpack.c.bf16 %v1588, %v1582
        %v1608 = vpack.c.bf16 %v1590, %v1584
        %v1609 = vpack.c.bf16 %v1598, %v1592
        %v1610 = vpack.c.bf16 %v1600, %v1594
        %v1611 = vpack.c.bf16 %v1602, %v1596
        %1612 = vmatprep.subr.bf16.mxu0 0
        %1613 = vmatpush1.bf16.msra.mxu0 %v1345
        %1614 = vmatprep.subr.bf16.mxu0 0
        %1615 = vmatpush1.bf16.msra.mxu0 %v1346
        %1616 = vmatprep.subr.bf16.mxu0 0
        %1617 = vmatpush1.bf16.msra.mxu0 %v1347
        %1618 = vmatprep.subr.bf16.mxu0 0
        %1619 = vmatpush1.bf16.msra.mxu0 %v1348
        %1620 = vmatprep.subr.bf16.mxu0 0
        %1621 = vmatpush1.bf16.msra.mxu0 %v1349
        %1622 = vmatprep.subr.bf16.mxu0 0
        %1623 = vmatpush1.bf16.msra.mxu0 %v1350
        %1624 = vmatprep.subr.bf16.mxu0 0
        %1625 = vmatpush1.bf16.msra.mxu0 %v1351
        %1626 = vmatprep.subr.bf16.mxu0 0
        %1627 = vmatpush1.bf16.msra.mxu0 %v1352
        %1628 = vmatprep.subr.bf16.mxu0 0
        %1629 = vmatpush1.bf16.msra.mxu0 %v1353
        %1630 = vmatprep.subr.bf16.mxu0 0
        %1631 = vmatpush1.bf16.msra.mxu0 %v1354
        %1632 = vmatprep.subr.bf16.mxu0 0
        %1633 = vmatpush1.bf16.msra.mxu0 %v1355
        %1634 = vmatprep.subr.bf16.mxu0 0
        %1635 = vmatpush1.bf16.msra.mxu0 %v1356
        %1636 = vmatprep.subr.bf16.mxu0 0
        %1637 = vmatpush1.bf16.msra.mxu0 %v1357
        %1638 = vmatprep.subr.bf16.mxu0 0
        %1639 = vmatpush1.bf16.msra.mxu0 %v1358
        %1640 = vmatprep.subr.bf16.mxu0 0
        %1641 = vmatpush1.bf16.msra.mxu0 %v1359
        %1642 = vmatprep.subr.bf16.mxu0 0
        %1643 = vmatpush1.bf16.msra.mxu0 %v1360
        %1644 = vmatprep.mubr.bf16.mxu0 %v1604
        %1645 = vmatmul.mubr.bf16.gmra.mrb[0].mxu0 %v1603
        %v1646 = vpop.f32.mrb[0].mxu0
        %v1647 = vadd.f32 0.0, %v1646
        %v1648 = vpop.f32.mrb[0].mxu0
        %v1649 = vpop.f32.mrb[0].mxu0
        %v1650 = vadd.f32 0.0, %v1649
        %v1651 = vpop.f32.mrb[0].mxu0
        %1652 = vmatprep.mubr.bf16.mxu0 %v1607
        %1653 = vmatmul.mubr.bf16.gmra.mrb[0].mxu0 %v1606
        %v1654 = vpop.f32.mrb[0].mxu0
        %v1655 = vadd.f32 0.0, %v1654
        %v1656 = vpop.f32.mrb[0].mxu0
        %v1657 = vpop.f32.mrb[0].mxu0
        %v1658 = vadd.f32 0.0, %v1657
        %v1659 = vpop.f32.mrb[0].mxu0
        %1660 = vmatprep.mubr.bf16.mxu0 %v1610
        %1661 = vmatmul.mubr.bf16.gmra.mrb[0].mxu0 %v1609
        %v1662 = vpop.f32.mrb[0].mxu0
        %v1663 = vadd.f32 0.0, %v1662
        %v1664 = vpop.f32.mrb[0].mxu0
        %v1665 = vpop.f32.mrb[0].mxu0
        %v1666 = vadd.f32 0.0, %v1665
        %v1667 = vpop.f32.mrb[0].mxu0
        %1668 = vdwg.mxu0
        %1669 = vmatprep.subr.bf16.mxu0 0
        %1670 = vmatpush1.bf16.msra.mxu0 %v1361
        %1671 = vmatprep.subr.bf16.mxu0 0
        %1672 = vmatpush1.bf16.msra.mxu0 %v1362
        %1673 = vmatprep.subr.bf16.mxu0 0
        %1674 = vmatpush1.bf16.msra.mxu0 %v1363
        %1675 = vmatprep.subr.bf16.mxu0 0
        %1676 = vmatpush1.bf16.msra.mxu0 %v1364
        %1677 = vmatprep.subr.bf16.mxu0 0
        %1678 = vmatpush1.bf16.msra.mxu0 %v1365
        %1679 = vmatprep.subr.bf16.mxu0 0
        %1680 = vmatpush1.bf16.msra.mxu0 %v1366
        %1681 = vmatprep.subr.bf16.mxu0 0
        %1682 = vmatpush1.bf16.msra.mxu0 %v1367
        %1683 = vmatprep.subr.bf16.mxu0 0
        %1684 = vmatpush1.bf16.msra.mxu0 %v1368
        %1685 = vmatprep.subr.bf16.mxu0 0
        %1686 = vmatpush1.bf16.msra.mxu0 0
        %1687 = vmatprep.subr.bf16.mxu0 0
        %1688 = vmatpush1.bf16.msra.mxu0 0
        %1689 = vmatprep.subr.bf16.mxu0 0
        %1690 = vmatpush1.bf16.msra.mxu0 0
        %1691 = vmatprep.subr.bf16.mxu0 0
        %1692 = vmatpush1.bf16.msra.mxu0 0
        %1693 = vmatprep.subr.bf16.mxu0 0
        %1694 = vmatpush1.bf16.msra.mxu0 0
        %1695 = vmatprep.subr.bf16.mxu0 0
        %1696 = vmatpush1.bf16.msra.mxu0 0
        %1697 = vmatprep.subr.bf16.mxu0 0
        %1698 = vmatpush1.bf16.msra.mxu0 0
        %1699 = vmatprep.subr.bf16.mxu0 0
        %1700 = vmatpush1.bf16.msra.mxu0 0
        %1701 = vmatprep.mubr.bf16.mxu0 0
        %1702 = vmatmul.mubr.bf16.gmra.mrb[0].mxu0 %v1605
        %v1703 = vpop.f32.mrb[0].mxu0
        %v1704 = vadd.f32 %v1647, %v1703
        %v1705 = vpop.f32.mrb[0].mxu0
        %v1706 = vpop.f32.mrb[0].mxu0
        %v1707 = vadd.f32 %v1650, %v1706
        %v1708 = vpop.f32.mrb[0].mxu0
        %1709 = vmatprep.mubr.bf16.mxu0 0
        %1710 = vmatmul.mubr.bf16.gmra.mrb[0].mxu0 %v1608
        %v1711 = vpop.f32.mrb[0].mxu0
        %v1712 = vadd.f32 %v1655, %v1711
        %v1713 = vpop.f32.mrb[0].mxu0
        %v1714 = vpop.f32.mrb[0].mxu0
        %v1715 = vadd.f32 %v1658, %v1714
        %v1716 = vpop.f32.mrb[0].mxu0
        %1717 = vmatprep.mubr.bf16.mxu0 0
        %1718 = vmatmul.mubr.bf16.gmra.mrb[0].mxu0 %v1611
        %v1719 = vpop.f32.mrb[0].mxu0
        %v1720 = vadd.f32 %v1663, %v1719
        %v1721 = vpop.f32.mrb[0].mxu0
        %v1722 = vpop.f32.mrb[0].mxu0
        %v1723 = vadd.f32 %v1666, %v1722
        %v1724 = vpop.f32.mrb[0].mxu0
        %1725 = vdwg.mxu0
        %1726 = vmatprep.subr.bf16.mxu0 0
        %1727 = vmatpush1.bf16.msra.mxu0 %v1273
        %1728 = vmatprep.subr.bf16.mxu0 0
        %1729 = vmatpush1.bf16.msra.mxu0 %v1274
        %1730 = vmatprep.subr.bf16.mxu0 0
        %1731 = vmatpush1.bf16.msra.mxu0 %v1275
        %1732 = vmatprep.subr.bf16.mxu0 0
        %1733 = vmatpush1.bf16.msra.mxu0 %v1276
        %1734 = vmatprep.subr.bf16.mxu0 0
        %1735 = vmatpush1.bf16.msra.mxu0 %v1277
        %1736 = vmatprep.subr.bf16.mxu0 0
        %1737 = vmatpush1.bf16.msra.mxu0 %v1278
        %1738 = vmatprep.subr.bf16.mxu0 0
        %1739 = vmatpush1.bf16.msra.mxu0 %v1279
        %1740 = vmatprep.subr.bf16.mxu0 0
        %1741 = vmatpush1.bf16.msra.mxu0 %v1280
        %1742 = vmatprep.subr.bf16.mxu0 0
        %1743 = vmatpush1.bf16.msra.mxu0 %v1281
        %1744 = vmatprep.subr.bf16.mxu0 0
        %1745 = vmatpush1.bf16.msra.mxu0 %v1282
        %1746 = vmatprep.subr.bf16.mxu0 0
        %1747 = vmatpush1.bf16.msra.mxu0 %v1283
        %1748 = vmatprep.subr.bf16.mxu0 0
        %1749 = vmatpush1.bf16.msra.mxu0 %v1284
        %1750 = vmatprep.subr.bf16.mxu0 0
        %1751 = vmatpush1.bf16.msra.mxu0 %v1285
        %1752 = vmatprep.subr.bf16.mxu0 0
        %1753 = vmatpush1.bf16.msra.mxu0 %v1286
        %1754 = vmatprep.subr.bf16.mxu0 0
        %1755 = vmatpush1.bf16.msra.mxu0 %v1287
        %1756 = vmatprep.subr.bf16.mxu0 0
        %1757 = vmatpush1.bf16.msra.mxu0 %v1288
        %1758 = vmatprep.mubr.bf16.mxu0 %v1604
        %1759 = vmatmul.mubr.bf16.gmra.mrb[0].mxu0 %v1603
        %v1760 = vpop.f32.mrb[0].mxu0
        %v1761 = vadd.f32 0.0, %v1760
        %v1762 = vpop.f32.mrb[0].mxu0
        %v1763 = vpop.f32.mrb[0].mxu0
        %v1764 = vadd.f32 0.0, %v1763
        %v1765 = vpop.f32.mrb[0].mxu0
        %1766 = vmatprep.mubr.bf16.mxu0 %v1607
        %1767 = vmatmul.mubr.bf16.gmra.mrb[0].mxu0 %v1606
        %v1768 = vpop.f32.mrb[0].mxu0
        %v1769 = vadd.f32 0.0, %v1768
        %v1770 = vpop.f32.mrb[0].mxu0
        %v1771 = vpop.f32.mrb[0].mxu0
        %v1772 = vadd.f32 0.0, %v1771
        %v1773 = vpop.f32.mrb[0].mxu0
        %1774 = vmatprep.mubr.bf16.mxu0 %v1610
        %1775 = vmatmul.mubr.bf16.gmra.mrb[0].mxu0 %v1609
        %v1776 = vpop.f32.mrb[0].mxu0
        %v1777 = vadd.f32 0.0, %v1776
        %v1778 = vpop.f32.mrb[0].mxu0
        %v1779 = vpop.f32.mrb[0].mxu0
        %v1780 = vadd.f32 0.0, %v1779
        %v1781 = vpop.f32.mrb[0].mxu0
        %1782 = vdwg.mxu0
        %1783 = vmatprep.subr.bf16.mxu0 0
        %1784 = vmatpush1.bf16.msra.mxu0 %v1289
        %1785 = vmatprep.subr.bf16.mxu0 0
        %1786 = vmatpush1.bf16.msra.mxu0 %v1290
        %1787 = vmatprep.subr.bf16.mxu0 0
        %1788 = vmatpush1.bf16.msra.mxu0 %v1291
        %1789 = vmatprep.subr.bf16.mxu0 0
        %1790 = vmatpush1.bf16.msra.mxu0 %v1292
        %1791 = vmatprep.subr.bf16.mxu0 0
        %1792 = vmatpush1.bf16.msra.mxu0 %v1293
        %1793 = vmatprep.subr.bf16.mxu0 0
        %1794 = vmatpush1.bf16.msra.mxu0 %v1294
        %1795 = vmatprep.subr.bf16.mxu0 0
        %1796 = vmatpush1.bf16.msra.mxu0 %v1295
        %1797 = vmatprep.subr.bf16.mxu0 0
        %1798 = vmatpush1.bf16.msra.mxu0 %v1296
        %1799 = vmatprep.subr.bf16.mxu0 0
        %1800 = vmatpush1.bf16.msra.mxu0 0
        %1801 = vmatprep.subr.bf16.mxu0 0
        %1802 = vmatpush1.bf16.msra.mxu0 0
        %1803 = vmatprep.subr.bf16.mxu0 0
        %1804 = vmatpush1.bf16.msra.mxu0 0
        %1805 = vmatprep.subr.bf16.mxu0 0
        %1806 = vmatpush1.bf16.msra.mxu0 0
        %1807 = vmatprep.subr.bf16.mxu0 0
        %1808 = vmatpush1.bf16.msra.mxu0 0
        %1809 = vmatprep.subr.bf16.mxu0 0
        %1810 = vmatpush1.bf16.msra.mxu0 0
        %1811 = vmatprep.subr.bf16.mxu0 0
        %1812 = vmatpush1.bf16.msra.mxu0 0
        %1813 = vmatprep.subr.bf16.mxu0 0
        %1814 = vmatpush1.bf16.msra.mxu0 0
        %1815 = vmatprep.mubr.bf16.mxu0 0
        %1816 = vmatmul.mubr.bf16.gmra.mrb[0].mxu0 %v1605
        %v1817 = vpop.f32.mrb[0].mxu0
        %v1818 = vadd.f32 %v1761, %v1817
        %v1819 = vpop.f32.mrb[0].mxu0
        %v1820 = vpop.f32.mrb[0].mxu0
        %v1821 = vadd.f32 %v1764, %v1820
        %v1822 = vpop.f32.mrb[0].mxu0
        %1823 = vmatprep.mubr.bf16.mxu0 0
        %1824 = vmatmul.mubr.bf16.gmra.mrb[0].mxu0 %v1608
        %v1825 = vpop.f32.mrb[0].mxu0
        %v1826 = vadd.f32 %v1769, %v1825
        %v1827 = vpop.f32.mrb[0].mxu0
        %v1828 = vpop.f32.mrb[0].mxu0
        %v1829 = vadd.f32 %v1772, %v1828
        %v1830 = vpop.f32.mrb[0].mxu0
        %1831 = vmatprep.mubr.bf16.mxu0 0
        %1832 = vmatmul.mubr.bf16.gmra.mrb[0].mxu0 %v1611
        %v1833 = vpop.f32.mrb[0].mxu0
        %v1834 = vadd.f32 %v1777, %v1833
        %v1835 = vpop.f32.mrb[0].mxu0
        %v1836 = vpop.f32.mrb[0].mxu0
        %v1837 = vadd.f32 %v1780, %v1836
        %v1838 = vpop.f32.mrb[0].mxu0
        %1839 = vdwg.mxu0
        %v1840 = vmax.f32 %v1818, 1e-20
        %v1841 = vmax.f32 %v1821, 1e-20
        %v1842 = vmax.f32 %v1826, 1e-20
        %v1843 = vmax.f32 %v1829, 1e-20
        %v1844 = vmax.f32 %v1834, 1e-20
        %v1845 = vmax.f32 %v1837, 1e-20
        %v1846 = vrcp.pop %v1840
        %v1847 = vrcp.pop %v1841
        %v1848 = vrcp.pop %v1842
        %v1849 = vrcp.pop %v1843
        %v1850 = vrcp.pop %v1844
        %v1851 = vrcp.pop %v1845
        %v1852 = vmul.f32 %v1704, %v1846
        %v1853 = vmul.f32 %v1707, %v1847
        %v1854 = vmul.f32 %v1712, %v1848
        %v1855 = vmul.f32 %v1715, %v1849
        %v1856 = vmul.f32 %v1720, %v1850
        %v1857 = vmul.f32 %v1723, %v1851
        %v1858 = vpack.c.bf16 %v1853, %v1852
        %v1859 = vpack.c.bf16 %v1855, %v1854
        %v1860 = vpack.c.bf16 %v1857, %v1856
        %v1861 = vld [vmem:[%s643] sm:$0xf]
        %v1862 = vld [vmem:[%s643 + $0x4] sm:$0xf]
        %v1863 = vld [vmem:[%s643 + $0x8] sm:$0xf]
        %v1864 = vld [vmem:[%s643 + $0xc] sm:$0xf]
        %v1865 = vld [vmem:[%s643 + $0x10] sm:$0xf]
        %v1866 = vld [vmem:[%s643 + $0x14] sm:$0xf]
        %v1867 = vld [vmem:[%s643 + $0x18] sm:$0xf]
        %v1868 = vld [vmem:[%s643 + $0x1c] sm:$0xf]
        %v1869 = vld [vmem:[%s643 + $0x20] sm:$0xf]
        %v1870 = vld [vmem:[%s643 + $0x24] sm:$0xf]
        %v1871 = vld [vmem:[%s643 + $0x28] sm:$0xf]
        %v1872 = vld [vmem:[%s643 + $0x2c] sm:$0xf]
        %v1873 = vld [vmem:[%s643 + $0x30] sm:$0xf]
        %v1874 = vld [vmem:[%s643 + $0x34] sm:$0xf]
        %v1875 = vld [vmem:[%s643 + $0x38] sm:$0xf]
        %v1876 = vld [vmem:[%s643 + $0x3c] sm:$0xf]
        %v1877 = vld [vmem:[%s754] sm:$0x1]
        %v1879 = vlaneseq
        %v1880 = vshrl.u32 %v1879, 7
        %v1881 = vsub.s32 0, %v1880
        %v1882 = vrot.slane %v1877, %v1881
        %v1900 = vunpack.c.l.b16 %v1861
        %v1901 = vunpack.c.l.b16 %v1862
        %v1902 = vunpack.c.l.b16 %v1863
        %v1903 = vunpack.c.l.b16 %v1864
        %v1904 = vunpack.c.l.b16 %v1865
        %v1905 = vunpack.c.l.b16 %v1866
        %v1906 = vunpack.c.l.b16 %v1867
        %v1907 = vunpack.c.l.b16 %v1868
        %v1908 = vunpack.c.l.b16 %v1869
        %v1909 = vunpack.c.l.b16 %v1870
        %v1910 = vunpack.c.l.b16 %v1871
        %v1911 = vunpack.c.l.b16 %v1872
        %v1912 = vunpack.c.l.b16 %v1873
        %v1913 = vunpack.c.l.b16 %v1874
        %v1914 = vunpack.c.l.b16 %v1875
        %v1915 = vunpack.c.l.b16 %v1876
        %v1916 = vpack.c.b16 %v1901, %v1900
        %v1917 = vpack.c.b16 %v1903, %v1902
        %v1918 = vpack.c.b16 %v1905, %v1904
        %v1919 = vpack.c.b16 %v1907, %v1906
        %v1920 = vpack.c.b16 %v1909, %v1908
        %v1921 = vpack.c.b16 %v1911, %v1910
        %v1922 = vpack.c.b16 %v1913, %v1912
        %v1923 = vpack.c.b16 %v1915, %v1914
        %1932 = vmatprep.subr.bf16.mxu0 0
        %1933 = vmatpush1.bf16.msra.mxu0 %v1916
        %1934 = vmatprep.subr.bf16.mxu0 0
        %1935 = vmatpush1.bf16.msra.mxu0 %v1917
        %1936 = vmatprep.subr.bf16.mxu0 0
        %1937 = vmatpush1.bf16.msra.mxu0 %v1918
        %1938 = vmatprep.subr.bf16.mxu0 0
        %1939 = vmatpush1.bf16.msra.mxu0 %v1919
        %1940 = vmatprep.subr.bf16.mxu0 0
        %1941 = vmatpush1.bf16.msra.mxu0 %v1920
        %1942 = vmatprep.subr.bf16.mxu0 0
        %1943 = vmatpush1.bf16.msra.mxu0 %v1921
        %1944 = vmatprep.subr.bf16.mxu0 0
        %1945 = vmatpush1.bf16.msra.mxu0 %v1922
        %1946 = vmatprep.subr.bf16.mxu0 0
        %1947 = vmatpush1.bf16.msra.mxu0 %v1923
        %1948 = vmatprep.subr.bf16.mxu0 0
        %1949 = vmatpush1.bf16.msra.mxu0 0
        %1950 = vmatprep.subr.bf16.mxu0 0
        %1951 = vmatpush1.bf16.msra.mxu0 0
        %1952 = vmatprep.subr.bf16.mxu0 0
        %1953 = vmatpush1.bf16.msra.mxu0 0
        %1954 = vmatprep.subr.bf16.mxu0 0
        %1955 = vmatpush1.bf16.msra.mxu0 0
        %1956 = vmatprep.subr.bf16.mxu0 0
        %1957 = vmatpush1.bf16.msra.mxu0 0
        %1958 = vmatprep.subr.bf16.mxu0 0
        %1959 = vmatpush1.bf16.msra.mxu0 0
        %1960 = vmatprep.subr.bf16.mxu0 0
        %1961 = vmatpush1.bf16.msra.mxu0 0
        %1962 = vmatprep.subr.bf16.mxu0 0
        %1963 = vmatpush1.bf16.msra.mxu0 0
        %1964 = vmatprep.mubr.bf16.mxu0 0
        %1965 = vmatmul.mubr.bf16.gmra.mrb[0].mxu0 %v1858
        %v1966 = vpop.f32.mrb[0].mxu0
        %v1967 = vadd.f32 %v1882, %v1966
        %v1968 = vpop.f32.mrb[0].mxu0
        %v1969 = vpop.f32.mrb[0].mxu0
        %v1970 = vadd.f32 %v1882, %v1969
        %v1971 = vpop.f32.mrb[0].mxu0
        %1972 = vmatprep.mubr.bf16.mxu0 0
        %1973 = vmatmul.mubr.bf16.gmra.mrb[0].mxu0 %v1859
        %v1974 = vpop.f32.mrb[0].mxu0
        %v1975 = vadd.f32 %v1882, %v1974
        %v1976 = vpop.f32.mrb[0].mxu0
        %v1977 = vpop.f32.mrb[0].mxu0
        %v1978 = vadd.f32 %v1882, %v1977
        %v1979 = vpop.f32.mrb[0].mxu0
        %1980 = vmatprep.mubr.bf16.mxu0 0
        %1981 = vmatmul.mubr.bf16.gmra.mrb[0].mxu0 %v1860
        %v1982 = vpop.f32.mrb[0].mxu0
        %v1983 = vadd.f32 %v1882, %v1982
        %v1984 = vpop.f32.mrb[0].mxu0
        %v1985 = vpop.f32.mrb[0].mxu0
        %v1986 = vadd.f32 %v1882, %v1985
        %v1987 = vpop.f32.mrb[0].mxu0
        %1988 = vdwg.mxu0
        %v1989 = vadd.f32 %v796, %v1967
        %v1990 = vadd.f32 %v797, %v1970
        %v1991 = vadd.f32 %v798, %v1975
        %v1992 = vadd.f32 %v799, %v1978
        %v1993 = vadd.f32 %v800, %v1983
        %v1994 = vadd.f32 %v801, %v1986
        %v1995 = vld [vmem:[%s757] sm:$0x1]
        %v1996 = vld [vmem:[%s760] sm:$0x1]
        %1997 = vadd.xlane.f32.xlu0 %v1989
        %v1998 = vpop.xlane.xlu0 %1997
        %1999 = vadd.xlane.f32.xlu0 %v1990
        %v2000 = vpop.xlane.xlu0 %1999
        %2001 = vadd.xlane.f32.xlu0 %v1991
        %v2002 = vpop.xlane.xlu0 %2001
        %2003 = vadd.xlane.f32.xlu0 %v1992
        %v2004 = vpop.xlane.xlu0 %2003
        %2005 = vadd.xlane.f32.xlu0 %v1993
        %v2006 = vpop.xlane.xlu0 %2005
        %2007 = vadd.xlane.f32.xlu0 %v1994
        %v2008 = vpop.xlane.xlu0 %2007
        %v2009 = vrcp.pop 128.0
        %v2010 = vmul.f32 %v1998, %v2009
        %v2011 = vmul.f32 %v2000, %v2009
        %v2012 = vmul.f32 %v2002, %v2009
        %v2013 = vmul.f32 %v2004, %v2009
        %v2014 = vmul.f32 %v2006, %v2009
        %v2015 = vmul.f32 %v2008, %v2009
        %v2016 = vmul.f32 %v1989, %v1989
        %v2017 = vmul.f32 %v1990, %v1990
        %v2018 = vmul.f32 %v1991, %v1991
        %v2019 = vmul.f32 %v1992, %v1992
        %v2020 = vmul.f32 %v1993, %v1993
        %v2021 = vmul.f32 %v1994, %v1994
        %2022 = vadd.xlane.f32.xlu0 %v2016
        %v2023 = vpop.xlane.xlu0 %2022
        %2024 = vadd.xlane.f32.xlu0 %v2017
        %v2025 = vpop.xlane.xlu0 %2024
        %2026 = vadd.xlane.f32.xlu0 %v2018
        %v2027 = vpop.xlane.xlu0 %2026
        %2028 = vadd.xlane.f32.xlu0 %v2019
        %v2029 = vpop.xlane.xlu0 %2028
        %2030 = vadd.xlane.f32.xlu0 %v2020
        %v2031 = vpop.xlane.xlu0 %2030
        %2032 = vadd.xlane.f32.xlu0 %v2021
        %v2033 = vpop.xlane.xlu0 %2032
        %v2034 = vmul.f32 %v2023, %v2009
        %v2035 = vmul.f32 %v2025, %v2009
        %v2036 = vmul.f32 %v2027, %v2009
        %v2037 = vmul.f32 %v2029, %v2009
        %v2038 = vmul.f32 %v2031, %v2009
        %v2039 = vmul.f32 %v2033, %v2009
        %v2040 = vmul.f32 %v2010, %v2010
        %v2041 = vmul.f32 %v2011, %v2011
        %v2042 = vmul.f32 %v2012, %v2012
        %v2043 = vmul.f32 %v2013, %v2013
        %v2044 = vmul.f32 %v2014, %v2014
        %v2045 = vmul.f32 %v2015, %v2015
        %v2046 = vsub.f32 %v2034, %v2040
        %v2047 = vsub.f32 %v2035, %v2041
        %v2048 = vsub.f32 %v2036, %v2042
        %v2049 = vsub.f32 %v2037, %v2043
        %v2050 = vsub.f32 %v2038, %v2044
        %v2051 = vsub.f32 %v2039, %v2045
        %v2052 = vsub.f32 %v1989, %v2010
        %v2053 = vsub.f32 %v1990, %v2011
        %v2054 = vsub.f32 %v1991, %v2012
        %v2055 = vsub.f32 %v1992, %v2013
        %v2056 = vsub.f32 %v1993, %v2014
        %v2057 = vsub.f32 %v1994, %v2015
        %v2058 = vadd.f32 %v2046, 1e-05
        %v2059 = vadd.f32 %v2047, 1e-05
        %v2060 = vadd.f32 %v2048, 1e-05
        %v2061 = vadd.f32 %v2049, 1e-05
        %v2062 = vadd.f32 %v2050, 1e-05
        %v2063 = vadd.f32 %v2051, 1e-05
        %v2064 = vrsqrt.pop %v2058
        %v2065 = vrsqrt.pop %v2059
        %v2066 = vrsqrt.pop %v2060
        %v2067 = vrsqrt.pop %v2061
        %v2068 = vrsqrt.pop %v2062
        %v2069 = vrsqrt.pop %v2063
        %v2070 = vmul.f32 %v2052, %v2064
        %v2071 = vmul.f32 %v2053, %v2065
        %v2072 = vmul.f32 %v2054, %v2066
        %v2073 = vmul.f32 %v2055, %v2067
        %v2074 = vmul.f32 %v2056, %v2068
        %v2075 = vmul.f32 %v2057, %v2069
        %v2077 = vlaneseq
        %v2078 = vshrl.u32 %v2077, 7
        %v2079 = vsub.s32 0, %v2078
        %v2080 = vrot.slane %v1995, %v2079
        %v2082 = vmul.f32 %v2070, %v2080
        %v2083 = vmul.f32 %v2071, %v2080
        %v2084 = vmul.f32 %v2072, %v2080
        %v2085 = vmul.f32 %v2073, %v2080
        %v2086 = vmul.f32 %v2074, %v2080
        %v2087 = vmul.f32 %v2075, %v2080
        %v2089 = vlaneseq
        %v2090 = vshrl.u32 %v2089, 7
        %v2091 = vsub.s32 0, %v2090
        %v2092 = vrot.slane %v1996, %v2091
        %v2094 = vadd.f32 %v2082, %v2092
        %v2095 = vadd.f32 %v2083, %v2092
        %v2096 = vadd.f32 %v2084, %v2092
        %v2097 = vadd.f32 %v2085, %v2092
        %v2098 = vadd.f32 %v2086, %v2092
        %v2099 = vadd.f32 %v2087, %v2092
        %v2100 = vpack.c.bf16 %v2095, %v2094
        %v2101 = vpack.c.bf16 %v2097, %v2096
        %v2102 = vpack.c.bf16 %v2099, %v2098
        %v2103 = vld [vmem:[%s771] sm:$0xff]
        %v2104 = vld [vmem:[%s771 + $0x8] sm:$0xff]
        %v2105 = vld [vmem:[%s771 + $0x10] sm:$0xff]
        %v2106 = vld [vmem:[%s771 + $0x18] sm:$0xff]
        %v2107 = vld [vmem:[%s771 + $0x20] sm:$0xff]
        %v2108 = vld [vmem:[%s771 + $0x28] sm:$0xff]
        %v2109 = vld [vmem:[%s771 + $0x30] sm:$0xff]
        %v2110 = vld [vmem:[%s771 + $0x38] sm:$0xff]
        %v2111 = vld [vmem:[%s771 + $0x40] sm:$0xff]
        %v2112 = vld [vmem:[%s771 + $0x48] sm:$0xff]
        %v2113 = vld [vmem:[%s771 + $0x50] sm:$0xff]
        %v2114 = vld [vmem:[%s771 + $0x58] sm:$0xff]
        %v2115 = vld [vmem:[%s771 + $0x60] sm:$0xff]
        %v2116 = vld [vmem:[%s771 + $0x68] sm:$0xff]
        %v2117 = vld [vmem:[%s771 + $0x70] sm:$0xff]
        %v2118 = vld [vmem:[%s771 + $0x78] sm:$0xff]
        %v2119 = vld [vmem:[%s775] sm:$0x3]
        %v2121 = vlaneseq
        %v2122 = vshrl.u32 %v2121, 7
        %v2123 = vsub.s32 0, %v2122
        %v2124 = vrot.slane %v2119, %v2123
        %v2125 = vlaneseq
        %v2126 = vshrl.u32 %v2125, 7
        %v2127 = vsub.s32 1, %v2126
        %v2128 = vrot.slane %v2119, %v2127
        %v2147 = vunpack.c.l.b16 %v2103
        %v2148 = vunpack.c.h.b16 %v2103
        %v2149 = vunpack.c.l.b16 %v2104
        %v2150 = vunpack.c.h.b16 %v2104
        %v2151 = vunpack.c.l.b16 %v2105
        %v2152 = vunpack.c.h.b16 %v2105
        %v2153 = vunpack.c.l.b16 %v2106
        %v2154 = vunpack.c.h.b16 %v2106
        %v2155 = vunpack.c.l.b16 %v2107
        %v2156 = vunpack.c.h.b16 %v2107
        %v2157 = vunpack.c.l.b16 %v2108
        %v2158 = vunpack.c.h.b16 %v2108
        %v2159 = vunpack.c.l.b16 %v2109
        %v2160 = vunpack.c.h.b16 %v2109
        %v2161 = vunpack.c.l.b16 %v2110
        %v2162 = vunpack.c.h.b16 %v2110
        %v2163 = vunpack.c.l.b16 %v2111
        %v2164 = vunpack.c.h.b16 %v2111
        %v2165 = vunpack.c.l.b16 %v2112
        %v2166 = vunpack.c.h.b16 %v2112
        %v2167 = vunpack.c.l.b16 %v2113
        %v2168 = vunpack.c.h.b16 %v2113
        %v2169 = vunpack.c.l.b16 %v2114
        %v2170 = vunpack.c.h.b16 %v2114
        %v2171 = vunpack.c.l.b16 %v2115
        %v2172 = vunpack.c.h.b16 %v2115
        %v2173 = vunpack.c.l.b16 %v2116
        %v2174 = vunpack.c.h.b16 %v2116
        %v2175 = vunpack.c.l.b16 %v2117
        %v2176 = vunpack.c.h.b16 %v2117
        %v2177 = vunpack.c.l.b16 %v2118
        %v2178 = vunpack.c.h.b16 %v2118
        %v2179 = vpack.c.b16 %v2149, %v2147
        %v2180 = vpack.c.b16 %v2150, %v2148
        %v2181 = vpack.c.b16 %v2153, %v2151
        %v2182 = vpack.c.b16 %v2154, %v2152
        %v2183 = vpack.c.b16 %v2157, %v2155
        %v2184 = vpack.c.b16 %v2158, %v2156
        %v2185 = vpack.c.b16 %v2161, %v2159
        %v2186 = vpack.c.b16 %v2162, %v2160
        %v2187 = vpack.c.b16 %v2165, %v2163
        %v2188 = vpack.c.b16 %v2166, %v2164
        %v2189 = vpack.c.b16 %v2169, %v2167
        %v2190 = vpack.c.b16 %v2170, %v2168
        %v2191 = vpack.c.b16 %v2173, %v2171
        %v2192 = vpack.c.b16 %v2174, %v2172
        %v2193 = vpack.c.b16 %v2177, %v2175
        %v2194 = vpack.c.b16 %v2178, %v2176
        %2211 = vmatprep.subr.bf16.mxu0 %v2180
        %2212 = vmatpush1.bf16.msra.mxu0 %v2179
        %2213 = vmatprep.subr.bf16.mxu0 %v2182
        %2214 = vmatpush1.bf16.msra.mxu0 %v2181
        %2215 = vmatprep.subr.bf16.mxu0 %v2184
        %2216 = vmatpush1.bf16.msra.mxu0 %v2183
        %2217 = vmatprep.subr.bf16.mxu0 %v2186
        %2218 = vmatpush1.bf16.msra.mxu0 %v2185
        %2219 = vmatprep.subr.bf16.mxu0 %v2188
        %2220 = vmatpush1.bf16.msra.mxu0 %v2187
        %2221 = vmatprep.subr.bf16.mxu0 %v2190
        %2222 = vmatpush1.bf16.msra.mxu0 %v2189
        %2223 = vmatprep.subr.bf16.mxu0 %v2192
        %2224 = vmatpush1.bf16.msra.mxu0 %v2191
        %2225 = vmatprep.subr.bf16.mxu0 %v2194
        %2226 = vmatpush1.bf16.msra.mxu0 %v2193
        %2227 = vmatprep.subr.bf16.mxu0 0
        %2228 = vmatpush1.bf16.msra.mxu0 0
        %2229 = vmatprep.subr.bf16.mxu0 0
        %2230 = vmatpush1.bf16.msra.mxu0 0
        %2231 = vmatprep.subr.bf16.mxu0 0
        %2232 = vmatpush1.bf16.msra.mxu0 0
        %2233 = vmatprep.subr.bf16.mxu0 0
        %2234 = vmatpush1.bf16.msra.mxu0 0
        %2235 = vmatprep.subr.bf16.mxu0 0
        %2236 = vmatpush1.bf16.msra.mxu0 0
        %2237 = vmatprep.subr.bf16.mxu0 0
        %2238 = vmatpush1.bf16.msra.mxu0 0
        %2239 = vmatprep.subr.bf16.mxu0 0
        %2240 = vmatpush1.bf16.msra.mxu0 0
        %2241 = vmatprep.subr.bf16.mxu0 0
        %2242 = vmatpush1.bf16.msra.mxu0 0
        %2243 = vmatprep.mubr.bf16.mxu0 0
        %2244 = vmatmul.mubr.bf16.gmra.mrb[0].mxu0 %v2100
        %v2245 = vpop.f32.mrb[0].mxu0
        %v2246 = vadd.f32 %v2124, %v2245
        %v2247 = vpop.f32.mrb[0].mxu0
        %v2248 = vadd.f32 %v2128, %v2247
        %v2249 = vpop.f32.mrb[0].mxu0
        %v2250 = vadd.f32 %v2124, %v2249
        %v2251 = vpop.f32.mrb[0].mxu0
        %v2252 = vadd.f32 %v2128, %v2251
        %2253 = vmatprep.mubr.bf16.mxu0 0
        %2254 = vmatmul.mubr.bf16.gmra.mrb[0].mxu0 %v2101
        %v2255 = vpop.f32.mrb[0].mxu0
        %v2256 = vadd.f32 %v2124, %v2255
        %v2257 = vpop.f32.mrb[0].mxu0
        %v2258 = vadd.f32 %v2128, %v2257
        %v2259 = vpop.f32.mrb[0].mxu0
        %v2260 = vadd.f32 %v2124, %v2259
        %v2261 = vpop.f32.mrb[0].mxu0
        %v2262 = vadd.f32 %v2128, %v2261
        %2263 = vmatprep.mubr.bf16.mxu0 0
        %2264 = vmatmul.mubr.bf16.gmra.mrb[0].mxu0 %v2102
        %v2265 = vpop.f32.mrb[0].mxu0
        %v2266 = vadd.f32 %v2124, %v2265
        %v2267 = vpop.f32.mrb[0].mxu0
        %v2268 = vadd.f32 %v2128, %v2267
        %v2269 = vpop.f32.mrb[0].mxu0
        %v2270 = vadd.f32 %v2124, %v2269
        %v2271 = vpop.f32.mrb[0].mxu0
        %v2272 = vadd.f32 %v2128, %v2271
        %2273 = vdwg.mxu0
        %v2274 = vmax.f32 %v2246, 0.0
        %v2275 = vmax.f32 %v2248, 0.0
        %v2276 = vmax.f32 %v2250, 0.0
        %v2277 = vmax.f32 %v2252, 0.0
        %v2278 = vmax.f32 %v2256, 0.0
        %v2279 = vmax.f32 %v2258, 0.0
        %v2280 = vmax.f32 %v2260, 0.0
        %v2281 = vmax.f32 %v2262, 0.0
        %v2282 = vmax.f32 %v2266, 0.0
        %v2283 = vmax.f32 %v2268, 0.0
        %v2284 = vmax.f32 %v2270, 0.0
        %v2285 = vmax.f32 %v2272, 0.0
        %v2286 = vpack.c.bf16 %v2276, %v2274
        %v2287 = vpack.c.bf16 %v2277, %v2275
        %v2288 = vpack.c.bf16 %v2280, %v2278
        %v2289 = vpack.c.bf16 %v2281, %v2279
        %v2290 = vpack.c.bf16 %v2284, %v2282
        %v2291 = vpack.c.bf16 %v2285, %v2283
        %v2292 = vld [vmem:[%s652] sm:$0xf]
        %v2293 = vld [vmem:[%s652 + $0x4] sm:$0xf]
        %v2294 = vld [vmem:[%s652 + $0x8] sm:$0xf]
        %v2295 = vld [vmem:[%s652 + $0xc] sm:$0xf]
        %v2296 = vld [vmem:[%s652 + $0x10] sm:$0xf]
        %v2297 = vld [vmem:[%s652 + $0x14] sm:$0xf]
        %v2298 = vld [vmem:[%s652 + $0x18] sm:$0xf]
        %v2299 = vld [vmem:[%s652 + $0x1c] sm:$0xf]
        %v2300 = vld [vmem:[%s652 + $0x20] sm:$0xf]
        %v2301 = vld [vmem:[%s652 + $0x24] sm:$0xf]
        %v2302 = vld [vmem:[%s652 + $0x28] sm:$0xf]
        %v2303 = vld [vmem:[%s652 + $0x2c] sm:$0xf]
        %v2304 = vld [vmem:[%s652 + $0x30] sm:$0xf]
        %v2305 = vld [vmem:[%s652 + $0x34] sm:$0xf]
        %v2306 = vld [vmem:[%s652 + $0x38] sm:$0xf]
        %v2307 = vld [vmem:[%s652 + $0x3c] sm:$0xf]
        %v2308 = vld [vmem:[%s652 + $0x40] sm:$0xf]
        %v2309 = vld [vmem:[%s652 + $0x44] sm:$0xf]
        %v2310 = vld [vmem:[%s652 + $0x48] sm:$0xf]
        %v2311 = vld [vmem:[%s652 + $0x4c] sm:$0xf]
        %v2312 = vld [vmem:[%s652 + $0x50] sm:$0xf]
        %v2313 = vld [vmem:[%s652 + $0x54] sm:$0xf]
        %v2314 = vld [vmem:[%s652 + $0x58] sm:$0xf]
        %v2315 = vld [vmem:[%s652 + $0x5c] sm:$0xf]
        %v2316 = vld [vmem:[%s652 + $0x60] sm:$0xf]
        %v2317 = vld [vmem:[%s652 + $0x64] sm:$0xf]
        %v2318 = vld [vmem:[%s652 + $0x68] sm:$0xf]
        %v2319 = vld [vmem:[%s652 + $0x6c] sm:$0xf]
        %v2320 = vld [vmem:[%s652 + $0x70] sm:$0xf]
        %v2321 = vld [vmem:[%s652 + $0x74] sm:$0xf]
        %v2322 = vld [vmem:[%s652 + $0x78] sm:$0xf]
        %v2323 = vld [vmem:[%s652 + $0x7c] sm:$0xf]
        %v2324 = vld [vmem:[%s778] sm:$0x1]
        %v2326 = vlaneseq
        %v2327 = vshrl.u32 %v2326, 7
        %v2328 = vsub.s32 0, %v2327
        %v2329 = vrot.slane %v2324, %v2328
        %v2363 = vunpack.c.l.b16 %v2292
        %v2364 = vunpack.c.l.b16 %v2293
        %v2365 = vunpack.c.l.b16 %v2294
        %v2366 = vunpack.c.l.b16 %v2295
        %v2367 = vunpack.c.l.b16 %v2296
        %v2368 = vunpack.c.l.b16 %v2297
        %v2369 = vunpack.c.l.b16 %v2298
        %v2370 = vunpack.c.l.b16 %v2299
        %v2371 = vunpack.c.l.b16 %v2300
        %v2372 = vunpack.c.l.b16 %v2301
        %v2373 = vunpack.c.l.b16 %v2302
        %v2374 = vunpack.c.l.b16 %v2303
        %v2375 = vunpack.c.l.b16 %v2304
        %v2376 = vunpack.c.l.b16 %v2305
        %v2377 = vunpack.c.l.b16 %v2306
        %v2378 = vunpack.c.l.b16 %v2307
        %v2379 = vunpack.c.l.b16 %v2308
        %v2380 = vunpack.c.l.b16 %v2309
        %v2381 = vunpack.c.l.b16 %v2310
        %v2382 = vunpack.c.l.b16 %v2311
        %v2383 = vunpack.c.l.b16 %v2312
        %v2384 = vunpack.c.l.b16 %v2313
        %v2385 = vunpack.c.l.b16 %v2314
        %v2386 = vunpack.c.l.b16 %v2315
        %v2387 = vunpack.c.l.b16 %v2316
        %v2388 = vunpack.c.l.b16 %v2317
        %v2389 = vunpack.c.l.b16 %v2318
        %v2390 = vunpack.c.l.b16 %v2319
        %v2391 = vunpack.c.l.b16 %v2320
        %v2392 = vunpack.c.l.b16 %v2321
        %v2393 = vunpack.c.l.b16 %v2322
        %v2394 = vunpack.c.l.b16 %v2323
        %v2395 = vpack.c.b16 %v2364, %v2363
        %v2396 = vpack.c.b16 %v2366, %v2365
        %v2397 = vpack.c.b16 %v2368, %v2367
        %v2398 = vpack.c.b16 %v2370, %v2369
        %v2399 = vpack.c.b16 %v2372, %v2371
        %v2400 = vpack.c.b16 %v2374, %v2373
        %v2401 = vpack.c.b16 %v2376, %v2375
        %v2402 = vpack.c.b16 %v2378, %v2377
        %v2403 = vpack.c.b16 %v2380, %v2379
        %v2404 = vpack.c.b16 %v2382, %v2381
        %v2405 = vpack.c.b16 %v2384, %v2383
        %v2406 = vpack.c.b16 %v2386, %v2385
        %v2407 = vpack.c.b16 %v2388, %v2387
        %v2408 = vpack.c.b16 %v2390, %v2389
        %v2409 = vpack.c.b16 %v2392, %v2391
        %v2410 = vpack.c.b16 %v2394, %v2393
        %2427 = vmatprep.subr.bf16.mxu0 0
        %2428 = vmatpush1.bf16.msra.mxu0 %v2395
        %2429 = vmatprep.subr.bf16.mxu0 0
        %2430 = vmatpush1.bf16.msra.mxu0 %v2396
        %2431 = vmatprep.subr.bf16.mxu0 0
        %2432 = vmatpush1.bf16.msra.mxu0 %v2397
        %2433 = vmatprep.subr.bf16.mxu0 0
        %2434 = vmatpush1.bf16.msra.mxu0 %v2398
        %2435 = vmatprep.subr.bf16.mxu0 0
        %2436 = vmatpush1.bf16.msra.mxu0 %v2399
        %2437 = vmatprep.subr.bf16.mxu0 0
        %2438 = vmatpush1.bf16.msra.mxu0 %v2400
        %2439 = vmatprep.subr.bf16.mxu0 0
        %2440 = vmatpush1.bf16.msra.mxu0 %v2401
        %2441 = vmatprep.subr.bf16.mxu0 0
        %2442 = vmatpush1.bf16.msra.mxu0 %v2402
        %2443 = vmatprep.subr.bf16.mxu0 0
        %2444 = vmatpush1.bf16.msra.mxu0 %v2403
        %2445 = vmatprep.subr.bf16.mxu0 0
        %2446 = vmatpush1.bf16.msra.mxu0 %v2404
        %2447 = vmatprep.subr.bf16.mxu0 0
        %2448 = vmatpush1.bf16.msra.mxu0 %v2405
        %2449 = vmatprep.subr.bf16.mxu0 0
        %2450 = vmatpush1.bf16.msra.mxu0 %v2406
        %2451 = vmatprep.subr.bf16.mxu0 0
        %2452 = vmatpush1.bf16.msra.mxu0 %v2407
        %2453 = vmatprep.subr.bf16.mxu0 0
        %2454 = vmatpush1.bf16.msra.mxu0 %v2408
        %2455 = vmatprep.subr.bf16.mxu0 0
        %2456 = vmatpush1.bf16.msra.mxu0 %v2409
        %2457 = vmatprep.subr.bf16.mxu0 0
        %2458 = vmatpush1.bf16.msra.mxu0 %v2410
        %2459 = vmatprep.mubr.bf16.mxu0 %v2287
        %2460 = vmatmul.mubr.bf16.gmra.mrb[0].mxu0 %v2286
        %v2461 = vpop.f32.mrb[0].mxu0
        %v2462 = vadd.f32 %v2329, %v2461
        %v2463 = vpop.f32.mrb[0].mxu0
        %v2464 = vpop.f32.mrb[0].mxu0
        %v2465 = vadd.f32 %v2329, %v2464
        %v2466 = vpop.f32.mrb[0].mxu0
        %2467 = vmatprep.mubr.bf16.mxu0 %v2289
        %2468 = vmatmul.mubr.bf16.gmra.mrb[0].mxu0 %v2288
        %v2469 = vpop.f32.mrb[0].mxu0
        %v2470 = vadd.f32 %v2329, %v2469
        %v2471 = vpop.f32.mrb[0].mxu0
        %v2472 = vpop.f32.mrb[0].mxu0
        %v2473 = vadd.f32 %v2329, %v2472
        %v2474 = vpop.f32.mrb[0].mxu0
        %2475 = vmatprep.mubr.bf16.mxu0 %v2291
        %2476 = vmatmul.mubr.bf16.gmra.mrb[0].mxu0 %v2290
        %v2477 = vpop.f32.mrb[0].mxu0
        %v2478 = vadd.f32 %v2329, %v2477
        %v2479 = vpop.f32.mrb[0].mxu0
        %v2480 = vpop.f32.mrb[0].mxu0
        %v2481 = vadd.f32 %v2329, %v2480
        %v2482 = vpop.f32.mrb[0].mxu0
        %2483 = vdwg.mxu0
        %v2484 = vadd.f32 %v2094, %v2462
        %v2485 = vadd.f32 %v2095, %v2465
        %v2486 = vadd.f32 %v2096, %v2470
        %v2487 = vadd.f32 %v2097, %v2473
        %v2488 = vadd.f32 %v2098, %v2478
        %v2489 = vadd.f32 %v2099, %v2481
        %v2490 = vld [vmem:[%s763] sm:$0x1]
        %v2491 = vld [vmem:[%s766] sm:$0x1]
        %2492 = vadd.xlane.f32.xlu0 %v2484
        %v2493 = vpop.xlane.xlu0 %2492
        %2494 = vadd.xlane.f32.xlu0 %v2485
        %v2495 = vpop.xlane.xlu0 %2494
        %2496 = vadd.xlane.f32.xlu0 %v2486
        %v2497 = vpop.xlane.xlu0 %2496
        %2498 = vadd.xlane.f32.xlu0 %v2487
        %v2499 = vpop.xlane.xlu0 %2498
        %2500 = vadd.xlane.f32.xlu0 %v2488
        %v2501 = vpop.xlane.xlu0 %2500
        %2502 = vadd.xlane.f32.xlu0 %v2489
        %v2503 = vpop.xlane.xlu0 %2502
        %v2504 = vmul.f32 %v2493, %v2009
        %v2505 = vmul.f32 %v2495, %v2009
        %v2506 = vmul.f32 %v2497, %v2009
        %v2507 = vmul.f32 %v2499, %v2009
        %v2508 = vmul.f32 %v2501, %v2009
        %v2509 = vmul.f32 %v2503, %v2009
        %v2510 = vmul.f32 %v2484, %v2484
        %v2511 = vmul.f32 %v2485, %v2485
        %v2512 = vmul.f32 %v2486, %v2486
        %v2513 = vmul.f32 %v2487, %v2487
        %v2514 = vmul.f32 %v2488, %v2488
        %v2515 = vmul.f32 %v2489, %v2489
        %2516 = vadd.xlane.f32.xlu0 %v2510
        %v2517 = vpop.xlane.xlu0 %2516
        %2518 = vadd.xlane.f32.xlu0 %v2511
        %v2519 = vpop.xlane.xlu0 %2518
        %2520 = vadd.xlane.f32.xlu0 %v2512
        %v2521 = vpop.xlane.xlu0 %2520
        %2522 = vadd.xlane.f32.xlu0 %v2513
        %v2523 = vpop.xlane.xlu0 %2522
        %2524 = vadd.xlane.f32.xlu0 %v2514
        %v2525 = vpop.xlane.xlu0 %2524
        %2526 = vadd.xlane.f32.xlu0 %v2515
        %v2527 = vpop.xlane.xlu0 %2526
        %v2528 = vmul.f32 %v2517, %v2009
        %v2529 = vmul.f32 %v2519, %v2009
        %v2530 = vmul.f32 %v2521, %v2009
        %v2531 = vmul.f32 %v2523, %v2009
        %v2532 = vmul.f32 %v2525, %v2009
        %v2533 = vmul.f32 %v2527, %v2009
        %v2534 = vmul.f32 %v2504, %v2504
        %v2535 = vmul.f32 %v2505, %v2505
        %v2536 = vmul.f32 %v2506, %v2506
        %v2537 = vmul.f32 %v2507, %v2507
        %v2538 = vmul.f32 %v2508, %v2508
        %v2539 = vmul.f32 %v2509, %v2509
        %v2540 = vsub.f32 %v2528, %v2534
        %v2541 = vsub.f32 %v2529, %v2535
        %v2542 = vsub.f32 %v2530, %v2536
        %v2543 = vsub.f32 %v2531, %v2537
        %v2544 = vsub.f32 %v2532, %v2538
        %v2545 = vsub.f32 %v2533, %v2539
        %v2546 = vsub.f32 %v2484, %v2504
        %v2547 = vsub.f32 %v2485, %v2505
        %v2548 = vsub.f32 %v2486, %v2506
        %v2549 = vsub.f32 %v2487, %v2507
        %v2550 = vsub.f32 %v2488, %v2508
        %v2551 = vsub.f32 %v2489, %v2509
        %v2552 = vadd.f32 %v2540, 1e-05
        %v2553 = vadd.f32 %v2541, 1e-05
        %v2554 = vadd.f32 %v2542, 1e-05
        %v2555 = vadd.f32 %v2543, 1e-05
        %v2556 = vadd.f32 %v2544, 1e-05
        %v2557 = vadd.f32 %v2545, 1e-05
        %v2558 = vrsqrt.pop %v2552
        %v2559 = vrsqrt.pop %v2553
        %v2560 = vrsqrt.pop %v2554
        %v2561 = vrsqrt.pop %v2555
        %v2562 = vrsqrt.pop %v2556
        %v2563 = vrsqrt.pop %v2557
        %v2564 = vmul.f32 %v2546, %v2558
        %v2565 = vmul.f32 %v2547, %v2559
        %v2566 = vmul.f32 %v2548, %v2560
        %v2567 = vmul.f32 %v2549, %v2561
        %v2568 = vmul.f32 %v2550, %v2562
        %v2569 = vmul.f32 %v2551, %v2563
        %v2571 = vlaneseq
        %v2572 = vshrl.u32 %v2571, 7
        %v2573 = vsub.s32 0, %v2572
        %v2574 = vrot.slane %v2490, %v2573
        %v2576 = vmul.f32 %v2564, %v2574
        %v2577 = vmul.f32 %v2565, %v2574
        %v2578 = vmul.f32 %v2566, %v2574
        %v2579 = vmul.f32 %v2567, %v2574
        %v2580 = vmul.f32 %v2568, %v2574
        %v2581 = vmul.f32 %v2569, %v2574
        %v2583 = vlaneseq
        %v2584 = vshrl.u32 %v2583, 7
        %v2585 = vsub.s32 0, %v2584
        %v2586 = vrot.slane %v2491, %v2585
        %v2588 = vadd.f32 %v2576, %v2586
        %v2589 = vadd.f32 %v2577, %v2586
        %v2590 = vadd.f32 %v2578, %v2586
        %v2591 = vadd.f32 %v2579, %v2586
        %v2592 = vadd.f32 %v2580, %v2586
        %v2593 = vadd.f32 %v2581, %v2586
        %2594 = vst [vmem:[#allocation2] sm:$0xff] %v2588
        %2595 = vst [vmem:[#allocation2 + $0x8] sm:$0xff] %v2589
        %2596 = vst [vmem:[#allocation2 + $0x10] sm:$0xff] %v2590
        %2597 = vst [vmem:[#allocation2 + $0x18] sm:$0xff] %v2591
        %2598 = vst [vmem:[#allocation2 + $0x20] sm:$0xff] %v2592
        %2599 = vst [vmem:[#allocation2 + $0x28] sm:$0xff] %v2593
        %p2600 = scmp.eq.s32.totalorder %s33, 1
        // Predicated region
        $region109: #{forward.1} parent=87 // pred_check
          %p2601 = pneg %p2600
        $region110: #{forward.1} parent=87 // pred_check_branch
          %2603 = sbr.rel (%p2601) target = $region112
        $region111: #{forward.1} parent=87 // pred_region
          %v2604 = vpack.c.bf16 %v2589, %v2588
          %v2605 = vpack.c.bf16 %v2591, %v2590
          %v2606 = vpack.c.bf16 %v2593, %v2592
          %v2607 = vld [vmem:[#allocation8] sm:$0xf]
          %v2608 = vld [vmem:[#allocation8 + $0x4] sm:$0xf]
          %v2609 = vld [vmem:[#allocation8 + $0x8] sm:$0xf]
          %v2610 = vld [vmem:[#allocation8 + $0xc] sm:$0xf]
          %v2611 = vld [vmem:[#allocation8 + $0x10] sm:$0xf]
          %v2612 = vld [vmem:[#allocation8 + $0x14] sm:$0xf]
          %v2613 = vld [vmem:[#allocation8 + $0x18] sm:$0xf]
          %v2614 = vld [vmem:[#allocation8 + $0x1c] sm:$0xf]
          %v2615 = vld [vmem:[#allocation8 + $0x20] sm:$0xf]
          %v2616 = vld [vmem:[#allocation8 + $0x24] sm:$0xf]
          %v2617 = vld [vmem:[#allocation8 + $0x28] sm:$0xf]
          %v2618 = vld [vmem:[#allocation8 + $0x2c] sm:$0xf]
          %v2619 = vld [vmem:[#allocation8 + $0x30] sm:$0xf]
          %v2620 = vld [vmem:[#allocation8 + $0x34] sm:$0xf]
          %v2621 = vld [vmem:[#allocation8 + $0x38] sm:$0xf]
          %v2622 = vld [vmem:[#allocation8 + $0x3c] sm:$0xf]
          %v2623 = vld [vmem:[%s16] sm:$0x1]
          %v2625 = vlaneseq
          %v2626 = vshrl.u32 %v2625, 7
          %v2627 = vsub.s32 0, %v2626
          %v2628 = vrot.slane %v2623, %v2627
          %v2646 = vunpack.c.l.b16 %v2607
          %v2647 = vunpack.c.l.b16 %v2608
          %v2648 = vunpack.c.l.b16 %v2609
          %v2649 = vunpack.c.l.b16 %v2610
          %v2650 = vunpack.c.l.b16 %v2611
          %v2651 = vunpack.c.l.b16 %v2612
          %v2652 = vunpack.c.l.b16 %v2613
          %v2653 = vunpack.c.l.b16 %v2614
          %v2654 = vunpack.c.l.b16 %v2615
          %v2655 = vunpack.c.l.b16 %v2616
          %v2656 = vunpack.c.l.b16 %v2617
          %v2657 = vunpack.c.l.b16 %v2618
          %v2658 = vunpack.c.l.b16 %v2619
          %v2659 = vunpack.c.l.b16 %v2620
          %v2660 = vunpack.c.l.b16 %v2621
          %v2661 = vunpack.c.l.b16 %v2622
          %v2662 = vpack.c.b16 %v2647, %v2646
          %v2663 = vpack.c.b16 %v2649, %v2648
          %v2664 = vpack.c.b16 %v2651, %v2650
          %v2665 = vpack.c.b16 %v2653, %v2652
          %v2666 = vpack.c.b16 %v2655, %v2654
          %v2667 = vpack.c.b16 %v2657, %v2656
          %v2668 = vpack.c.b16 %v2659, %v2658
          %v2669 = vpack.c.b16 %v2661, %v2660
          %2678 = vmatprep.subr.bf16.mxu0 0
          %2679 = vmatpush1.bf16.msra.mxu0 %v2662
          %2680 = vmatprep.subr.bf16.mxu0 0
          %2681 = vmatpush1.bf16.msra.mxu0 %v2663
          %2682 = vmatprep.subr.bf16.mxu0 0
          %2683 = vmatpush1.bf16.msra.mxu0 %v2664
          %2684 = vmatprep.subr.bf16.mxu0 0
          %2685 = vmatpush1.bf16.msra.mxu0 %v2665
          %2686 = vmatprep.subr.bf16.mxu0 0
          %2687 = vmatpush1.bf16.msra.mxu0 %v2666
          %2688 = vmatprep.subr.bf16.mxu0 0
          %2689 = vmatpush1.bf16.msra.mxu0 %v2667
          %2690 = vmatprep.subr.bf16.mxu0 0
          %2691 = vmatpush1.bf16.msra.mxu0 %v2668
          %2692 = vmatprep.subr.bf16.mxu0 0
          %2693 = vmatpush1.bf16.msra.mxu0 %v2669
          %2694 = vmatprep.subr.bf16.mxu0 0
          %2695 = vmatpush1.bf16.msra.mxu0 0
          %2696 = vmatprep.subr.bf16.mxu0 0
          %2697 = vmatpush1.bf16.msra.mxu0 0
          %2698 = vmatprep.subr.bf16.mxu0 0
          %2699 = vmatpush1.bf16.msra.mxu0 0
          %2700 = vmatprep.subr.bf16.mxu0 0
          %2701 = vmatpush1.bf16.msra.mxu0 0
          %2702 = vmatprep.subr.bf16.mxu0 0
          %2703 = vmatpush1.bf16.msra.mxu0 0
          %2704 = vmatprep.subr.bf16.mxu0 0
          %2705 = vmatpush1.bf16.msra.mxu0 0
          %2706 = vmatprep.subr.bf16.mxu0 0
          %2707 = vmatpush1.bf16.msra.mxu0 0
          %2708 = vmatprep.subr.bf16.mxu0 0
          %2709 = vmatpush1.bf16.msra.mxu0 0
          %2710 = vmatprep.mubr.bf16.mxu0 0
          %2711 = vmatmul.mubr.bf16.gmra.mrb[0].mxu0 %v2604
          %v2712 = vpop.f32.mrb[0].mxu0
          %v2713 = vadd.f32 %v2628, %v2712
          %v2714 = vpop.f32.mrb[0].mxu0
          %v2715 = vpop.f32.mrb[0].mxu0
          %v2716 = vadd.f32 %v2628, %v2715
          %v2717 = vpop.f32.mrb[0].mxu0
          %2718 = vmatprep.mubr.bf16.mxu0 0
          %2719 = vmatmul.mubr.bf16.gmra.mrb[0].mxu0 %v2605
          %v2720 = vpop.f32.mrb[0].mxu0
          %v2721 = vadd.f32 %v2628, %v2720
          %v2722 = vpop.f32.mrb[0].mxu0
          %v2723 = vpop.f32.mrb[0].mxu0
          %v2724 = vadd.f32 %v2628, %v2723
          %v2725 = vpop.f32.mrb[0].mxu0
          %2726 = vmatprep.mubr.bf16.mxu0 0
          %2727 = vmatmul.mubr.bf16.gmra.mrb[0].mxu0 %v2606
          %v2728 = vpop.f32.mrb[0].mxu0
          %v2729 = vadd.f32 %v2628, %v2728
          %v2730 = vpop.f32.mrb[0].mxu0
          %v2731 = vpop.f32.mrb[0].mxu0
          %v2732 = vadd.f32 %v2628, %v2731
          %v2733 = vpop.f32.mrb[0].mxu0
          %2734 = vdwg.mxu0
          %2735 = vmax.xlane.f32.xlu0 %v2713
          %v2736 = vpop.xlane.xlu0 %2735
          %2737 = vmax.xlane.f32.xlu0 %v2716
          %v2738 = vpop.xlane.xlu0 %2737
          %2739 = vmax.xlane.f32.xlu0 %v2721
          %v2740 = vpop.xlane.xlu0 %2739
          %2741 = vmax.xlane.f32.xlu0 %v2724
          %v2742 = vpop.xlane.xlu0 %2741
          %2743 = vmax.xlane.f32.xlu0 %v2729
          %v2744 = vpop.xlane.xlu0 %2743
          %2745 = vmax.xlane.f32.xlu0 %v2732
          %v2746 = vpop.xlane.xlu0 %2745
          %v2747 = vsub.f32 %v2713, %v2736
          %v2748 = vsub.f32 %v2716, %v2738
          %v2749 = vsub.f32 %v2721, %v2740
          %v2750 = vsub.f32 %v2724, %v2742
          %v2751 = vsub.f32 %v2729, %v2744
          %v2752 = vsub.f32 %v2732, %v2746
          %v2753 = vmul.f32 %v2747, 1.442695
          %v2754 = vpow.pop %v2753
          %v2755 = vmul.f32 %v2748, 1.442695
          %v2756 = vpow.pop %v2755
          %v2757 = vmul.f32 %v2749, 1.442695
          %v2758 = vpow.pop %v2757
          %v2759 = vmul.f32 %v2750, 1.442695
          %v2760 = vpow.pop %v2759
          %v2761 = vmul.f32 %v2751, 1.442695
          %v2762 = vpow.pop %v2761
          %v2763 = vmul.f32 %v2752, 1.442695
          %v2764 = vpow.pop %v2763
          %2765 = vadd.xlane.f32.xlu0 %v2754
          %v2766 = vpop.xlane.xlu0 %2765
          %2767 = vadd.xlane.f32.xlu0 %v2756
          %v2768 = vpop.xlane.xlu0 %2767
          %2769 = vadd.xlane.f32.xlu0 %v2758
          %v2770 = vpop.xlane.xlu0 %2769
          %2771 = vadd.xlane.f32.xlu0 %v2760
          %v2772 = vpop.xlane.xlu0 %2771
          %2773 = vadd.xlane.f32.xlu0 %v2762
          %v2774 = vpop.xlane.xlu0 %2773
          %2775 = vadd.xlane.f32.xlu0 %v2764
          %v2776 = vpop.xlane.xlu0 %2775
          %v2777 = vlog2.pop %v2766
          %v2778 = vmul.f32 %v2777, 0.6931472
          %v2779 = vlog2.pop %v2768
          %v2780 = vmul.f32 %v2779, 0.6931472
          %v2781 = vlog2.pop %v2770
          %v2782 = vmul.f32 %v2781, 0.6931472
          %v2783 = vlog2.pop %v2772
          %v2784 = vmul.f32 %v2783, 0.6931472
          %v2785 = vlog2.pop %v2774
          %v2786 = vmul.f32 %v2785, 0.6931472
          %v2787 = vlog2.pop %v2776
          %v2788 = vmul.f32 %v2787, 0.6931472
          %v2789 = vadd.f32 %v2736, %v2778
          %v2790 = vadd.f32 %v2738, %v2780
          %v2791 = vadd.f32 %v2740, %v2782
          %v2792 = vadd.f32 %v2742, %v2784
          %v2793 = vadd.f32 %v2744, %v2786
          %v2794 = vadd.f32 %v2746, %v2788
          %v2795 = vsub.f32 %v2713, %v2789
          %v2796 = vsub.f32 %v2716, %v2790
          %v2797 = vsub.f32 %v2721, %v2791
          %v2798 = vsub.f32 %v2724, %v2792
          %v2799 = vsub.f32 %v2729, %v2793
          %v2800 = vsub.f32 %v2732, %v2794
          %2801 = vst [vmem:[%s17] sm:$0xff] %v2795
          %2802 = vst [vmem:[%s17 + $0x8] sm:$0xff] %v2796
          %2803 = vst [vmem:[%s17 + $0x10] sm:$0xff] %v2797
          %2804 = vst [vmem:[%s17 + $0x18] sm:$0xff] %v2798
          %2805 = vst [vmem:[%s17 + $0x20] sm:$0xff] %v2799
          %2806 = vst [vmem:[%s17 + $0x28] sm:$0xff] %v2800
        $region112: #{forward.1} parent=87 // pred_fallthru
          _
        // Predicated region
        $region113: #{forward.1} parent=87 // pred_check
          %p2807 = pneg %p463
        $region114: #{forward.1} parent=87 // pred_check_branch
          %2809 = sbr.rel (%p2807) target = $region116
        $region115: #{forward.1} parent=87 // pred_region
          _
        $region116: #{forward.1} parent=87 // pred_fallthru
          _
        // Predicated region
        $region117: #{forward.1} parent=87 // pred_check
          %p2810 = pneg %p463
        $region118: #{forward.1} parent=87 // pred_check_branch
          %2812 = sbr.rel (%p2810) target = $region120
        $region119: #{forward.1} parent=87 // pred_region
          _
        $region120: #{forward.1} parent=87 // pred_fallthru
          _
      $region88: #{forward.1} parent=5 // pred_fallthru
        _
      %p2813 = scmp.le.s32.totalorder 2, %s28
      // Predicated region
      $region121: #{forward.1} parent=5 // pred_check
        %p2814 = pneg %p2813
      $region122: #{forward.1} parent=5 // pred_check_branch
        %2816 = sbr.rel (%p2814) target = $region124
      $region123: #{forward.1} parent=5 // pred_region
        %s2817 = ssub.s32 %s28, 2
      $region124: #{forward.1} parent=5 // pred_fallthru
        _
    $region6: #{forward.1} parent=1 // loop_footer
      %s32 = sadd.s32 1, %s28
    $region7: #{forward.1} parent=1 // loop_footer_branch
      %27 = sbr.rel target = $region3
    $region8: #{forward.1} parent=1 // loop_exit
      _
    %2818 = vsyncpa [#allocation4], 1
    %s2819 = scalar_lea.sflag [#allocation4], 1
    %2820 = vsyncpa %s2819, 1
    %2821 = vsyncpa [#allocation6], 1
    %s2822 = scalar_lea.sflag [#allocation6], 1
    %2823 = vsyncpa %s2822, 1
    %2824 = vsyncpa [#allocation9], 1

</llo_original>
